<compile_context>
chip_gen: v5e
topology: v5e:2x2
jax: 0.10.0
libtpu: 0.0.40
codegen_flags: <defaults>
</compile_context>

<pallas_src>
import jax
import jax.numpy as jnp
from jax import lax
from jax.experimental import pallas as pl
from jax.experimental.pallas import tpu as pltpu

BN_EPS = 1e-5
LANE = 128
VMEM_LIMIT = 48 * 1024 * 1024


# ------------------------------ small helpers -------------------------------

def _round_up(x, m):
    return (x + m - 1) // m * m


def _pad_last(x, target):
    pad = target - x.shape[-1]
    if pad == 0:
        return x
    return jnp.pad(x, [(0, 0)] * (x.ndim - 1) + [(0, pad)])


def _pick_tile_h(H, W, c_pad, budget_bytes=2 << 20):
    """Largest even divisor of H whose f32 output tile stays within budget."""
    best = 2
    for t in range(2, H + 1, 2):
        if H % t == 0 and t * W * c_pad * 4 <= budget_bytes:
            best = t
    return best


# ----------------------------- Pallas kernels -------------------------------

def conv3x3_stats_kernel(x_ref, w_ref, b_ref, y_ref, stats_ref):
    """3x3 conv (input already halo-padded) + bias, plus per-tile sum/sumsq.

    x_ref:     (1, H+2, W+2, Cin_p)  bf16  full padded image of batch n (resident)
    w_ref:     (9, Cin_p, Cout_p)    bf16  resident
    b_ref:     (1, Cout_p)           f32   resident
    y_ref:     (1, tile_h, W, Cout_p) f32  conv output tile
    stats_ref: (1, 1, 2, Cout_p)      f32  per-tile [sum, sum of squares]
    """
    _, tile_h, W, cout_p = y_ref.shape
    cin_p = x_ref.shape[-1]
    row0 = pl.program_id(1) * tile_h

    acc = jnp.zeros((tile_h * W, cout_p), jnp.float32)
    for kh in range(3):
        xa = x_ref[0, pl.ds(row0 + kh, tile_h), :, :]      # (tile_h, W+2, Cin_p)
        for kw in range(3):
            a = xa[:, kw:kw + W, :].reshape(tile_h * W, cin_p)
            acc = acc + jnp.dot(a, w_ref[kh * 3 + kw],
                                preferred_element_type=jnp.float32)
    acc = acc + b_ref[...]                                 # conv bias (f32)

    y_ref[0] = acc.reshape(tile_h, W, cout_p)
    stats_ref[0, 0, 0:1, :] = jnp.sum(acc, axis=0, keepdims=True)
    stats_ref[0, 0, 1:2, :] = jnp.sum(acc * acc, axis=0, keepdims=True)


def bn_relu_kernel(y_ref, scale_ref, shift_ref, o_ref):
    """Apply folded BatchNorm (scale/shift) + ReLU to one tile."""
    cp = y_ref.shape[-1]
    s = scale_ref[...].reshape(1, 1, cp)
    t = shift_ref[...].reshape(1, 1, cp)
    o_ref[0] = jnp.maximum(y_ref[0] * s + t, 0.0).astype(o_ref.dtype)


def bn_relu_pool_kernel(y_ref, scale_ref, shift_ref, skip_ref, down_ref):
    """Folded BatchNorm + ReLU, plus fused 2x2 max-pool of the same tile."""
    _, tile_h, W, cp = y_ref.shape
    s = scale_ref[...].reshape(1, 1, cp)
    t = shift_ref[...].reshape(1, 1, cp)
    sk = jnp.maximum(y_ref[0] * s + t, 0.0)                # (tile_h, W, cp) f32
    skip_ref[0] = sk.astype(skip_ref.dtype)

    # Fused MaxPool2d(2) computed on the in-register value `sk`:
    #  - column pairs via a W -> (W//2, 2) split + max over the size-2 axis,
    #  - row pairs via a leading-dim split + max (free leading-dim reshape).
    cols = jnp.max(sk.reshape(tile_h, W // 2, 2, cp), axis=2)          # (tile_h, W//2, cp)
    down = jnp.max(cols.reshape(tile_h // 2, 2, W // 2, cp), axis=1)   # (tile_h//2, W//2, cp)
    down_ref[0] = down.astype(down_ref.dtype)


# ------------------------------ pallas wrappers ------------------------------

def _conv3x3_stats(x_pad, w9, bias, tile_h):
    N, hp2, wp2, cin_p = x_pad.shape
    H, W = hp2 - 2, wp2 - 2
    cout_p = w9.shape[-1]
    n_tiles = H // tile_h
    flops = 2 * N * H * W * 9 * cin_p * cout_p
    bytes_accessed = (x_pad.size * x_pad.dtype.itemsize
                      + w9.size * w9.dtype.itemsize
                      + N * H * W * cout_p * 4)
    return pl.pallas_call(
        conv3x3_stats_kernel,
        grid=(N, n_tiles),
        in_specs=[
            pl.BlockSpec((1, hp2, wp2, cin_p), lambda n, i: (n, 0, 0, 0)),
            pl.BlockSpec((9, cin_p, cout_p), lambda n, i: (0, 0, 0)),
            pl.BlockSpec((1, cout_p), lambda n, i: (0, 0)),
        ],
        out_specs=[
            pl.BlockSpec((1, tile_h, W, cout_p), lambda n, i: (n, i, 0, 0)),
            pl.BlockSpec((1, 1, 2, cout_p), lambda n, i: (n, i, 0, 0)),
        ],
        out_shape=[
            jax.ShapeDtypeStruct((N, H, W, cout_p), jnp.float32),
            jax.ShapeDtypeStruct((N, n_tiles, 2, cout_p), jnp.float32),
        ],
        compiler_params=pltpu.CompilerParams(
            dimension_semantics=("parallel", "parallel"),
            vmem_limit_bytes=VMEM_LIMIT),
        cost_estimate=pl.CostEstimate(flops=flops, transcendentals=0,
                                      bytes_accessed=bytes_accessed),
    )(x_pad, w9, bias)


def _bn_relu(y, scale, shift, tile_h, out_dtype):
    N, H, W, cp = y.shape
    n_tiles = H // tile_h
    return pl.pallas_call(
        bn_relu_kernel,
        grid=(N, n_tiles),
        in_specs=[
            pl.BlockSpec((1, tile_h, W, cp), lambda n, i: (n, i, 0, 0)),
            pl.BlockSpec((1, cp), lambda n, i: (0, 0)),
            pl.BlockSpec((1, cp), lambda n, i: (0, 0)),
        ],
        out_specs=pl.BlockSpec((1, tile_h, W, cp), lambda n, i: (n, i, 0, 0)),
        out_shape=jax.ShapeDtypeStruct((N, H, W, cp), out_dtype),
        compiler_params=pltpu.CompilerParams(
            dimension_semantics=("parallel", "parallel"),
            vmem_limit_bytes=VMEM_LIMIT),
    )(y, scale, shift)


def _bn_relu_pool(y, scale, shift, tile_h):
    N, H, W, cp = y.shape
    n_tiles = H // tile_h
    return pl.pallas_call(
        bn_relu_pool_kernel,
        grid=(N, n_tiles),
        in_specs=[
            pl.BlockSpec((1, tile_h, W, cp), lambda n, i: (n, i, 0, 0)),
            pl.BlockSpec((1, cp), lambda n, i: (0, 0)),
            pl.BlockSpec((1, cp), lambda n, i: (0, 0)),
        ],
        out_specs=[
            pl.BlockSpec((1, tile_h, W, cp), lambda n, i: (n, i, 0, 0)),
            pl.BlockSpec((1, tile_h // 2, W // 2, cp), lambda n, i: (n, i, 0, 0)),
        ],
        out_shape=[
            jax.ShapeDtypeStruct((N, H, W, cp), jnp.float32),
            jax.ShapeDtypeStruct((N, H // 2, W // 2, cp), jnp.float32),
        ],
        compiler_params=pltpu.CompilerParams(
            dimension_semantics=("parallel", "parallel"),
            vmem_limit_bytes=VMEM_LIMIT),
    )(y, scale, shift)


# ------------------------------ layer plumbing -------------------------------

def _fold_bn(stats, gamma_p, beta_p, count):
    """Reduce per-tile (sum, sumsq) partials into BN scale/shift (f32)."""
    s = jnp.sum(stats[:, :, 0, :], axis=(0, 1))
    ss = jnp.sum(stats[:, :, 1, :], axis=(0, 1))
    mean = s / count
    var = jnp.maximum(ss / count - mean * mean, 0.0)
    inv = lax.rsqrt(var + BN_EPS)
    scale = gamma_p * inv
    shift = beta_p - mean * scale
    cp = scale.shape[0]
    return scale.reshape(1, cp), shift.reshape(1, cp)


def _prep_weight(w_oihw, cin_p, cout_p):
    cout, cin = w_oihw.shape[0], w_oihw.shape[1]
    wt = jnp.transpose(w_oihw, (2, 3, 1, 0))               # (kh, kw, cin, cout)
    wt = jnp.pad(wt, ((0, 0), (0, 0), (0, cin_p - cin), (0, cout_p - cout)))
    return wt.reshape(9, cin_p, cout_p).astype(jnp.bfloat16)


def down_block(x_nchw, params):
    """Equivalent of DownBlock.forward: returns (down_out, skip_out) in NCHW."""
    N, cin, H, W = x_nchw.shape
    cout = params["w1"].shape[0]
    assert H % 2 == 0 and W % 2 == 0, "MaxPool2d(2) needs even spatial dims"
    cin_p = _round_up(cin, LANE)
    cout_p = _round_up(cout, LANE)
    tile_h = _pick_tile_h(H, W, cout_p)
    count = N * H * W

    # layout glue: NCHW -> NHWC, lane-pad channels, halo pad, cast to bf16.
    x = jnp.transpose(x_nchw, (0, 2, 3, 1))
    x = _pad_last(x, cin_p).astype(jnp.bfloat16)
    x_pad = jnp.pad(x, ((0, 0), (1, 1), (1, 1), (0, 0)))

    w1 = _prep_weight(params["w1"], cin_p, cout_p)
    b1 = _pad_last(params["b1"], cout_p).reshape(1, cout_p)
    g1 = _pad_last(params["g1"], cout_p)
    be1 = _pad_last(params["be1"], cout_p)
    w2 = _prep_weight(params["w2"], cout_p, cout_p)
    b2 = _pad_last(params["b2"], cout_p).reshape(1, cout_p)
    g2 = _pad_last(params["g2"], cout_p)
    be2 = _pad_last(params["be2"], cout_p)

    # conv1: matmul+stats pass, then fused BN+ReLU pass (bf16 for conv2 input)
    y1, st1 = _conv3x3_stats(x_pad, w1, b1, tile_h)
    sc1, sh1 = _fold_bn(st1, g1, be1, count)
    h = _bn_relu(y1, sc1, sh1, tile_h, jnp.bfloat16)

    # TODO(synk): for very large images, keep h resident per row-tile and fuse
    # conv1->conv2 with a manual halo DMA instead of this HBM round-trip + pad.
    h_pad = jnp.pad(h, ((0, 0), (1, 1), (1, 1), (0, 0)))

    # conv2: matmul+stats pass, then fused BN+ReLU+MaxPool2d(2) epilogue.
    y2, st2 = _conv3x3_stats(h_pad, w2, b2, tile_h)
    sc2, sh2 = _fold_bn(st2, g2, be2, count)
    skip_p, down_p = _bn_relu_pool(y2, sc2, sh2, tile_h)

    skip = jnp.transpose(skip_p[..., :cout], (0, 3, 1, 2))
    down = jnp.transpose(down_p[..., :cout], (0, 3, 1, 2))
    return down, skip


# ----------------------------- pure-JAX reference ----------------------------

def _ref_conv_bn_relu(x_nhwc, w_oihw, bias, gamma, beta):
    y = lax.conv_general_dilated(
        x_nhwc, jnp.transpose(w_oihw, (2, 3, 1, 0)),
        window_strides=(1, 1), padding=((1, 1), (1, 1)),
        dimension_numbers=("NHWC", "HWIO", "NHWC"))
    y = y + bias.reshape(1, 1, 1, -1)
    mean = jnp.mean(y, axis=(0, 1, 2), keepdims=True)
    var = jnp.mean((y - mean) ** 2, axis=(0, 1, 2), keepdims=True)
    y = gamma.reshape(1, 1, 1, -1) * (y - mean) * lax.rsqrt(var + BN_EPS) \
        + beta.reshape(1, 1, 1, -1)
    return jnp.maximum(y, 0.0)


def _ref_down_block(x_nchw, p):
    x = jnp.transpose(x_nchw, (0, 2, 3, 1))
    h = _ref_conv_bn_relu(x, p["w1"], p["b1"], p["g1"], p["be1"])
    skip = _ref_conv_bn_relu(h, p["w2"], p["b2"], p["g2"], p["be2"])
    N, H, W, C = skip.shape
    down = jnp.max(skip.reshape(N, H // 2, 2, W // 2, 2, C), axis=(2, 4))
    return (jnp.transpose(down, (0, 3, 1, 2)),
            jnp.transpose(skip, (0, 3, 1, 2)))


# ----------------------------------- main ------------------------------------

if __name__ == "__main__":
    N, Cin, Cout, H, W = 2, 4, 8, 16, 16

    key = jax.random.PRNGKey(0)
    k_x, k_w1, k_b1, k_w2, k_b2 = jax.random.split(key, 5)

    x = jax.random.normal(k_x, (N, Cin, H, W), dtype=jnp.float32)

    params = {
        "w1": jax.random.normal(k_w1, (Cout, Cin, 3, 3), jnp.float32)
              * (1.0 / (3.0 * (Cin ** 0.5))),
        "b1": jax.random.normal(k_b1, (Cout,), jnp.float32) * 0.1,
        "g1": jnp.ones((Cout,), jnp.float32),
        "be1": jnp.zeros((Cout,), jnp.float32),
        "w2": jax.random.normal(k_w2, (Cout, Cout, 3, 3), jnp.float32)
              * (1.0 / (3.0 * (Cout ** 0.5))),
        "b2": jax.random.normal(k_b2, (Cout,), jnp.float32) * 0.1,
        "g2": jnp.ones((Cout,), jnp.float32),
        "be2": jnp.zeros((Cout,), jnp.float32),
    }

    down_out, skip_out = jax.jit(down_block)(x, params)
    jax.block_until_ready((down_out, skip_out))

    assert skip_out.shape == (N, Cout, H, W)
    assert down_out.shape == (N, Cout, H // 2, W // 2)

    # correctness vs pure-JAX f32 reference (matmuls run in bf16 on the MXU,
    # so the tolerance is relaxed accordingly).
    ref_down, ref_skip = _ref_down_block(x, params)
    assert jnp.allclose(skip_out, ref_skip, atol=1e-1, rtol=1e-1)
    assert jnp.allclose(down_out, ref_down, atol=1e-1, rtol=1e-1)

    print("KERNEL_OK")
</pallas_src>

<mosaic_0001>
module attributes {stable_mosaic.version = 11 : i64} {
  func.func @bn_relu_kernel(%arg0: i32, %arg1: i32, %arg2: memref<1x16x16x128xf32, #tpu.memory_space<vmem>>, %arg3: memref<1x128xf32, #tpu.memory_space<vmem>>, %arg4: memref<1x128xf32, #tpu.memory_space<vmem>>, %arg5: memref<1x16x16x128xbf16, #tpu.memory_space<vmem>>) attributes {dimension_semantics = [#tpu.dimension_semantics<parallel>, #tpu.dimension_semantics<parallel>], iteration_bounds = array<i64: 2, 1>, scalar_prefetch = 0 : i64, scratch_operands = 0 : i64, tpu.core_type = #tpu.core_type<tc>, window_params = [{transform_indices = @transform_0, window_bounds = array<i64: 1, 16, 16, 128>}, {pipeline_mode = #tpu.pipeline_mode<synchronous>, transform_indices = @transform_1, window_bounds = array<i64: 1, 128>}, {pipeline_mode = #tpu.pipeline_mode<synchronous>, transform_indices = @transform_2, window_bounds = array<i64: 1, 128>}, {transform_indices = @transform_3, window_bounds = array<i64: 1, 16, 16, 128>}]} {
    %c0 = arith.constant 0 : index
    %c0_0 = arith.constant 0 : index
    %0 = vector.load %arg3[%c0, %c0_0] : memref<1x128xf32, #tpu.memory_space<vmem>>, vector<1x128xf32>
    %1 = vector.shape_cast %0 : vector<1x128xf32> to vector<1x1x128xf32>
    %c0_1 = arith.constant 0 : index
    %c0_2 = arith.constant 0 : index
    %2 = vector.load %arg4[%c0_1, %c0_2] : memref<1x128xf32, #tpu.memory_space<vmem>>, vector<1x128xf32>
    %3 = vector.shape_cast %2 : vector<1x128xf32> to vector<1x1x128xf32>
    %c0_3 = arith.constant 0 : index
    %c0_4 = arith.constant 0 : index
    %c0_5 = arith.constant 0 : index
    %c0_6 = arith.constant 0 : index
    %4 = vector.load %arg2[%c0_3, %c0_4, %c0_5, %c0_6] : memref<1x16x16x128xf32, #tpu.memory_space<vmem>>, vector<1x16x16x128xf32>
    %5 = vector.shape_cast %4 : vector<1x16x16x128xf32> to vector<16x16x128xf32>
    %6 = vector.broadcast %1 : vector<1x1x128xf32> to vector<16x16x128xf32>
    %7 = arith.mulf %5, %6 : vector<16x16x128xf32>
    %8 = vector.broadcast %3 : vector<1x1x128xf32> to vector<16x16x128xf32>
    %9 = arith.addf %7, %8 : vector<16x16x128xf32>
    %cst = arith.constant 0.000000e+00 : f32
    %10 = vector.broadcast %cst : f32 to vector<16x16x128xf32>
    %11 = arith.maximumf %9, %10 : vector<16x16x128xf32>
    %12 = arith.truncf %11 : vector<16x16x128xf32> to vector<16x16x128xbf16>
    %c0_7 = arith.constant 0 : index
    %c0_8 = arith.constant 0 : index
    %c0_9 = arith.constant 0 : index
    %c0_10 = arith.constant 0 : index
    %13 = vector.load %arg5[%c0_7, %c0_8, %c0_9, %c0_10] : memref<1x16x16x128xbf16, #tpu.memory_space<vmem>>, vector<1x16x16x128xbf16>
    %14 = vector.shape_cast %13 : vector<1x16x16x128xbf16> to vector<16x16x128xbf16>
    %15 = vector.shape_cast %12 : vector<16x16x128xbf16> to vector<1x16x16x128xbf16>
    tpu.vector_store %arg5[%c0_7, %c0_8, %c0_9, %c0_10], %15 {strides = array<i32>} : memref<1x16x16x128xbf16, #tpu.memory_space<vmem>>, vector<1x16x16x128xbf16>,
    return
  }
  func.func @transform_0(%arg0: i32, %arg1: i32) -> (i32, i32, i32, i32) {
    %c0_i32 = arith.constant 0 : i32
    %c0_i32_0 = arith.constant 0 : i32
    %c0_i32_1 = arith.constant 0 : i32
    return %arg0, %arg1, %c0_i32, %c0_i32_0 : i32, i32, i32, i32
  }
  func.func @transform_1(%arg0: i32, %arg1: i32) -> (i32, i32) {
    %c0_i32 = arith.constant 0 : i32
    %c0_i32_0 = arith.constant 0 : i32
    %c0_i32_1 = arith.constant 0 : i32
    return %c0_i32, %c0_i32_0 : i32, i32
  }
  func.func @transform_2(%arg0: i32, %arg1: i32) -> (i32, i32) {
    %c0_i32 = arith.constant 0 : i32
    %c0_i32_0 = arith.constant 0 : i32
    %c0_i32_1 = arith.constant 0 : i32
    return %c0_i32, %c0_i32_0 : i32, i32
  }
  func.func @transform_3(%arg0: i32, %arg1: i32) -> (i32, i32, i32, i32) {
    %c0_i32 = arith.constant 0 : i32
    %c0_i32_0 = arith.constant 0 : i32
    %c0_i32_1 = arith.constant 0 : i32
    return %arg0, %arg1, %c0_i32, %c0_i32_0 : i32, i32, i32, i32
  }
}

module attributes {stable_mosaic.version = 11 : i64} {
  func.func @conv3x3_stats_kernel(%arg0: i32, %arg1: i32, %arg2: memref<1x18x18x128xbf16, #tpu.memory_space<vmem>>, %arg3: memref<9x128x128xbf16, #tpu.memory_space<vmem>>, %arg4: memref<1x128xf32, #tpu.memory_space<vmem>>, %arg5: memref<1x16x16x128xf32, #tpu.memory_space<vmem>>, %arg6: memref<1x1x2x128xf32, #tpu.memory_space<vmem>>) attributes {dimension_semantics = [#tpu.dimension_semantics<parallel>, #tpu.dimension_semantics<parallel>], iteration_bounds = array<i64: 2, 1>, scalar_prefetch = 0 : i64, scratch_operands = 0 : i64, tpu.core_type = #tpu.core_type<tc>, window_params = [{transform_indices = @transform_0, window_bounds = array<i64: 1, 18, 18, 128>}, {pipeline_mode = #tpu.pipeline_mode<synchronous>, transform_indices = @transform_1, window_bounds = array<i64: 9, 128, 128>}, {pipeline_mode = #tpu.pipeline_mode<synchronous>, transform_indices = @transform_2, window_bounds = array<i64: 1, 128>}, {transform_indices = @transform_3, window_bounds = array<i64: 1, 16, 16, 128>}, {transform_indices = @transform_4, window_bounds = array<i64: 1, 1, 2, 128>}]} {
    %c16_i32 = arith.constant 16 : i32
    %0 = arith.muli %arg1, %c16_i32 : i32
    %cst = arith.constant 0.000000e+00 : f32
    %1 = vector.broadcast %cst : f32 to vector<256x128xf32>
    %c0_i32 = arith.constant 0 : i32
    %2 = arith.addi %0, %c0_i32 : i32
    %c0 = arith.constant 0 : index
    %3 = arith.index_cast %2 : i32 to index
    %c0_0 = arith.constant 0 : index
    %c0_1 = arith.constant 0 : index
    %4 = vector.load %arg2[%c0, %3, %c0_0, %c0_1] : memref<1x18x18x128xbf16, #tpu.memory_space<vmem>>, vector<1x16x18x128xbf16>
    %5 = vector.shape_cast %4 : vector<1x16x18x128xbf16> to vector<16x18x128xbf16>
    %6 = vector.extract_strided_slice %5 {offsets = [0, 0, 0], sizes = [16, 16, 128], strides = [1, 1, 1]} : vector<16x18x128xbf16> to vector<16x16x128xbf16>
    %7 = vector.shape_cast %6 : vector<16x16x128xbf16> to vector<256x128xbf16>
    %c0_2 = arith.constant 0 : index
    %c0_3 = arith.constant 0 : index
    %c0_4 = arith.constant 0 : index
    %8 = vector.load %arg3[%c0_2, %c0_3, %c0_4] : memref<9x128x128xbf16, #tpu.memory_space<vmem>>, vector<1x128x128xbf16>
    %9 = vector.shape_cast %8 : vector<1x128x128xbf16> to vector<128x128xbf16>
    %cst_5 = arith.constant dense<0.000000e+00> : vector<256x128xf32>
    %10 = tpu.matmul %7, %9, %cst_5 {dimension_numbers = #tpu.dot_dimension_numbers<[1], [0], [0], [1], [0, 0, 1, 1], [], []>} : vector<256x128xbf16>, vector<128x128xbf16>, vector<256x128xf32> -> vector<256x128xf32>
    %11 = arith.addf %1, %10 : vector<256x128xf32>
    %12 = vector.extract_strided_slice %5 {offsets = [0, 1, 0], sizes = [16, 16, 128], strides = [1, 1, 1]} : vector<16x18x128xbf16> to vector<16x16x128xbf16>
    %13 = vector.shape_cast %12 : vector<16x16x128xbf16> to vector<256x128xbf16>
    %c1 = arith.constant 1 : index
    %c0_6 = arith.constant 0 : index
    %c0_7 = arith.constant 0 : index
    %14 = vector.load %arg3[%c1, %c0_6, %c0_7] : memref<9x128x128xbf16, #tpu.memory_space<vmem>>, vector<1x128x128xbf16>
    %15 = vector.shape_cast %14 : vector<1x128x128xbf16> to vector<128x128xbf16>
    %cst_8 = arith.constant dense<0.000000e+00> : vector<256x128xf32>
    %16 = tpu.matmul %13, %15, %cst_8 {dimension_numbers = #tpu.dot_dimension_numbers<[1], [0], [0], [1], [0, 0, 1, 1], [], []>} : vector<256x128xbf16>, vector<128x128xbf16>, vector<256x128xf32> -> vector<256x128xf32>
    %17 = arith.addf %11, %16 : vector<256x128xf32>
    %18 = vector.extract_strided_slice %5 {offsets = [0, 2, 0], sizes = [16, 16, 128], strides = [1, 1, 1]} : vector<16x18x128xbf16> to vector<16x16x128xbf16>
    %19 = vector.shape_cast %18 : vector<16x16x128xbf16> to vector<256x128xbf16>
    %c2 = arith.constant 2 : index
    %c0_9 = arith.constant 0 : index
    %c0_10 = arith.constant 0 : index
    %20 = vector.load %arg3[%c2, %c0_9, %c0_10] : memref<9x128x128xbf16, #tpu.memory_space<vmem>>, vector<1x128x128xbf16>
    %21 = vector.shape_cast %20 : vector<1x128x128xbf16> to vector<128x128xbf16>
    %cst_11 = arith.constant dense<0.000000e+00> : vector<256x128xf32>
    %22 = tpu.matmul %19, %21, %cst_11 {dimension_numbers = #tpu.dot_dimension_numbers<[1], [0], [0], [1], [0, 0, 1, 1], [], []>} : vector<256x128xbf16>, vector<128x128xbf16>, vector<256x128xf32> -> vector<256x128xf32>
    %23 = arith.addf %17, %22 : vector<256x128xf32>
    %c1_i32 = arith.constant 1 : i32
    %24 = arith.addi %0, %c1_i32 : i32
    %c0_12 = arith.constant 0 : index
    %25 = arith.index_cast %24 : i32 to index
    %c0_13 = arith.constant 0 : index
    %c0_14 = arith.constant 0 : index
    %26 = vector.load %arg2[%c0_12, %25, %c0_13, %c0_14] : memref<1x18x18x128xbf16, #tpu.memory_space<vmem>>, vector<1x16x18x128xbf16>
    %27 = vector.shape_cast %26 : vector<1x16x18x128xbf16> to vector<16x18x128xbf16>
    %28 = vector.extract_strided_slice %27 {offsets = [0, 0, 0], sizes = [16, 16, 128], strides = [1, 1, 1]} : vector<16x18x128xbf16> to vector<16x16x128xbf16>
    %29 = vector.shape_cast %28 : vector<16x16x128xbf16> to vector<256x128xbf16>
    %c3 = arith.constant 3 : index
    %c0_15 = arith.constant 0 : index
    %c0_16 = arith.constant 0 : index
    %30 = vector.load %arg3[%c3, %c0_15, %c0_16] : memref<9x128x128xbf16, #tpu.memory_space<vmem>>, vector<1x128x128xbf16>
    %31 = vector.shape_cast %30 : vector<1x128x128xbf16> to vector<128x128xbf16>
    %cst_17 = arith.constant dense<0.000000e+00> : vector<256x128xf32>
    %32 = tpu.matmul %29, %31, %cst_17 {dimension_numbers = #tpu.dot_dimension_numbers<[1], [0], [0], [1], [0, 0, 1, 1], [], []>} : vector<256x128xbf16>, vector<128x128xbf16>, vector<256x128xf32> -> vector<256x128xf32>
    %33 = arith.addf %23, %32 : vector<256x128xf32>
    %34 = vector.extract_strided_slice %27 {offsets = [0, 1, 0], sizes = [16, 16, 128], strides = [1, 1, 1]} : vector<16x18x128xbf16> to vector<16x16x128xbf16>
    %35 = vector.shape_cast %34 : vector<16x16x128xbf16> to vector<256x128xbf16>
    %c4 = arith.constant 4 : index
    %c0_18 = arith.constant 0 : index
    %c0_19 = arith.constant 0 : index
    %36 = vector.load %arg3[%c4, %c0_18, %c0_19] : memref<9x128x128xbf16, #tpu.memory_space<vmem>>, vector<1x128x128xbf16>
    %37 = vector.shape_cast %36 : vector<1x128x128xbf16> to vector<128x128xbf16>
    %cst_20 = arith.constant dense<0.000000e+00> : vector<256x128xf32>
    %38 = tpu.matmul %35, %37, %cst_20 {dimension_numbers = #tpu.dot_dimension_numbers<[1], [0], [0], [1], [0, 0, 1, 1], [], []>} : vector<256x128xbf16>, vector<128x128xbf16>, vector<256x128xf32> -> vector<256x128xf32>
    %39 = arith.addf %33, %38 : vector<256x128xf32>
    %40 = vector.extract_strided_slice %27 {offsets = [0, 2, 0], sizes = [16, 16, 128], strides = [1, 1, 1]} : vector<16x18x128xbf16> to vector<16x16x128xbf16>
    %41 = vector.shape_cast %40 : vector<16x16x128xbf16> to vector<256x128xbf16>
    %c5 = arith.constant 5 : index
    %c0_21 = arith.constant 0 : index
    %c0_22 = arith.constant 0 : index
    %42 = vector.load %arg3[%c5, %c0_21, %c0_22] : memref<9x128x128xbf16, #tpu.memory_space<vmem>>, vector<1x128x128xbf16>
    %43 = vector.shape_cast %42 : vector<1x128x128xbf16> to vector<128x128xbf16>
    %cst_23 = arith.constant dense<0.000000e+00> : vector<256x128xf32>
    %44 = tpu.matmul %41, %43, %cst_23 {dimension_numbers = #tpu.dot_dimension_numbers<[1], [0], [0], [1], [0, 0, 1, 1], [], []>} : vector<256x128xbf16>, vector<128x128xbf16>, vector<256x128xf32> -> vector<256x128xf32>
    %45 = arith.addf %39, %44 : vector<256x128xf32>
    %c2_i32 = arith.constant 2 : i32
    %46 = arith.addi %0, %c2_i32 : i32
    %c0_24 = arith.constant 0 : index
    %47 = arith.index_cast %46 : i32 to index
    %c0_25 = arith.constant 0 : index
    %c0_26 = arith.constant 0 : index
    %48 = vector.load %arg2[%c0_24, %47, %c0_25, %c0_26] : memref<1x18x18x128xbf16, #tpu.memory_space<vmem>>, vector<1x16x18x128xbf16>
    %49 = vector.shape_cast %48 : vector<1x16x18x128xbf16> to vector<16x18x128xbf16>
    %50 = vector.extract_strided_slice %49 {offsets = [0, 0, 0], sizes = [16, 16, 128], strides = [1, 1, 1]} : vector<16x18x128xbf16> to vector<16x16x128xbf16>
    %51 = vector.shape_cast %50 : vector<16x16x128xbf16> to vector<256x128xbf16>
    %c6 = arith.constant 6 : index
    %c0_27 = arith.constant 0 : index
    %c0_28 = arith.constant 0 : index
    %52 = vector.load %arg3[%c6, %c0_27, %c0_28] : memref<9x128x128xbf16, #tpu.memory_space<vmem>>, vector<1x128x128xbf16>
    %53 = vector.shape_cast %52 : vector<1x128x128xbf16> to vector<128x128xbf16>
    %cst_29 = arith.constant dense<0.000000e+00> : vector<256x128xf32>
    %54 = tpu.matmul %51, %53, %cst_29 {dimension_numbers = #tpu.dot_dimension_numbers<[1], [0], [0], [1], [0, 0, 1, 1], [], []>} : vector<256x128xbf16>, vector<128x128xbf16>, vector<256x128xf32> -> vector<256x128xf32>
    %55 = arith.addf %45, %54 : vector<256x128xf32>
    %56 = vector.extract_strided_slice %49 {offsets = [0, 1, 0], sizes = [16, 16, 128], strides = [1, 1, 1]} : vector<16x18x128xbf16> to vector<16x16x128xbf16>
    %57 = vector.shape_cast %56 : vector<16x16x128xbf16> to vector<256x128xbf16>
    %c7 = arith.constant 7 : index
    %c0_30 = arith.constant 0 : index
    %c0_31 = arith.constant 0 : index
    %58 = vector.load %arg3[%c7, %c0_30, %c0_31] : memref<9x128x128xbf16, #tpu.memory_space<vmem>>, vector<1x128x128xbf16>
    %59 = vector.shape_cast %58 : vector<1x128x128xbf16> to vector<128x128xbf16>
    %cst_32 = arith.constant dense<0.000000e+00> : vector<256x128xf32>
    %60 = tpu.matmul %57, %59, %cst_32 {dimension_numbers = #tpu.dot_dimension_numbers<[1], [0], [0], [1], [0, 0, 1, 1], [], []>} : vector<256x128xbf16>, vector<128x128xbf16>, vector<256x128xf32> -> vector<256x128xf32>
    %61 = arith.addf %55, %60 : vector<256x128xf32>
    %62 = vector.extract_strided_slice %49 {offsets = [0, 2, 0], sizes = [16, 16, 128], strides = [1, 1, 1]} : vector<16x18x128xbf16> to vector<16x16x128xbf16>
    %63 = vector.shape_cast %62 : vector<16x16x128xbf16> to vector<256x128xbf16>
    %c8 = arith.constant 8 : index
    %c0_33 = arith.constant 0 : index
    %c0_34 = arith.constant 0 : index
    %64 = vector.load %arg3[%c8, %c0_33, %c0_34] : memref<9x128x128xbf16, #tpu.memory_space<vmem>>, vector<1x128x128xbf16>
    %65 = vector.shape_cast %64 : vector<1x128x128xbf16> to vector<128x128xbf16>
    %cst_35 = arith.constant dense<0.000000e+00> : vector<256x128xf32>
    %66 = tpu.matmul %63, %65, %cst_35 {dimension_numbers = #tpu.dot_dimension_numbers<[1], [0], [0], [1], [0, 0, 1, 1], [], []>} : vector<256x128xbf16>, vector<128x128xbf16>, vector<256x128xf32> -> vector<256x128xf32>
    %67 = arith.addf %61, %66 : vector<256x128xf32>
    %c0_36 = arith.constant 0 : index
    %c0_37 = arith.constant 0 : index
    %68 = vector.load %arg4[%c0_36, %c0_37] : memref<1x128xf32, #tpu.memory_space<vmem>>, vector<1x128xf32>
    %69 = vector.broadcast %68 : vector<1x128xf32> to vector<256x128xf32>
    %70 = arith.addf %67, %69 : vector<256x128xf32>
    %71 = vector.shape_cast %70 : vector<256x128xf32> to vector<16x16x128xf32>
    %c0_38 = arith.constant 0 : index
    %c0_39 = arith.constant 0 : index
    %c0_40 = arith.constant 0 : index
    %c0_41 = arith.constant 0 : index
    %72 = vector.load %arg5[%c0_38, %c0_39, %c0_40, %c0_41] : memref<1x16x16x128xf32, #tpu.memory_space<vmem>>, vector<1x16x16x128xf32>
    %73 = vector.shape_cast %72 : vector<1x16x16x128xf32> to vector<16x16x128xf32>
    %74 = vector.shape_cast %71 : vector<16x16x128xf32> to vector<1x16x16x128xf32>
    tpu.vector_store %arg5[%c0_38, %c0_39, %c0_40, %c0_41], %74 {strides = array<i32>} : memref<1x16x16x128xf32, #tpu.memory_space<vmem>>, vector<1x16x16x128xf32>,
    %cst_42 = arith.constant dense<0.000000e+00> : vector<128xf32>
    %75 = vector.multi_reduction <add>, %70, %cst_42 [0] : vector<256x128xf32> to vector<128xf32>
    %76 = vector.shape_cast %75 : vector<128xf32> to vector<1x128xf32>
    %c0_43 = arith.constant 0 : index
    %c0_44 = arith.constant 0 : index
    %c0_45 = arith.constant 0 : index
    %c0_46 = arith.constant 0 : index
    %77 = vector.load %arg6[%c0_43, %c0_44, %c0_45, %c0_46] : memref<1x1x2x128xf32, #tpu.memory_space<vmem>>, vector<1x1x1x128xf32>
    %78 = vector.shape_cast %77 : vector<1x1x1x128xf32> to vector<1x128xf32>
    %79 = vector.shape_cast %76 : vector<1x128xf32> to vector<1x1x1x128xf32>
    tpu.vector_store %arg6[%c0_43, %c0_44, %c0_45, %c0_46], %79 {strides = array<i32>} : memref<1x1x2x128xf32, #tpu.memory_space<vmem>>, vector<1x1x1x128xf32>,
    %80 = arith.mulf %70, %70 : vector<256x128xf32>
    %cst_47 = arith.constant dense<0.000000e+00> : vector<128xf32>
    %81 = vector.multi_reduction <add>, %80, %cst_47 [0] : vector<256x128xf32> to vector<128xf32>
    %82 = vector.shape_cast %81 : vector<128xf32> to vector<1x128xf32>
    %c0_48 = arith.constant 0 : index
    %c0_49 = arith.constant 0 : index
    %c1_50 = arith.constant 1 : index
    %c0_51 = arith.constant 0 : index
    %83 = vector.load %arg6[%c0_48, %c0_49, %c1_50, %c0_51] : memref<1x1x2x128xf32, #tpu.memory_space<vmem>>, vector<1x1x1x128xf32>
    %84 = vector.shape_cast %83 : vector<1x1x1x128xf32> to vector<1x128xf32>
    %85 = vector.shape_cast %82 : vector<1x128xf32> to vector<1x1x1x128xf32>
    tpu.vector_store %arg6[%c0_48, %c0_49, %c1_50, %c0_51], %85 {strides = array<i32>} : memref<1x1x2x128xf32, #tpu.memory_space<vmem>>, vector<1x1x1x128xf32>,
    return
  }
  func.func @transform_0(%arg0: i32, %arg1: i32) -> (i32, i32, i32, i32) {
    %c0_i32 = arith.constant 0 : i32
    %c0_i32_0 = arith.constant 0 : i32
    %c0_i32_1 = arith.constant 0 : i32
    %c0_i32_2 = arith.constant 0 : i32
    return %arg0, %c0_i32, %c0_i32_0, %c0_i32_1 : i32, i32, i32, i32
  }
  func.func @transform_1(%arg0: i32, %arg1: i32) -> (i32, i32, i32) {
    %c0_i32 = arith.constant 0 : i32
    %c0_i32_0 = arith.constant 0 : i32
    %c0_i32_1 = arith.constant 0 : i32
    %c0_i32_2 = arith.constant 0 : i32
    return %c0_i32, %c0_i32_0, %c0_i32_1 : i32, i32, i32
  }
  func.func @transform_2(%arg0: i32, %arg1: i32) -> (i32, i32) {
    %c0_i32 = arith.constant 0 : i32
    %c0_i32_0 = arith.constant 0 : i32
    %c0_i32_1 = arith.constant 0 : i32
    return %c0_i32, %c0_i32_0 : i32, i32
  }
  func.func @transform_3(%arg0: i32, %arg1: i32) -> (i32, i32, i32, i32) {
    %c0_i32 = arith.constant 0 : i32
    %c0_i32_0 = arith.constant 0 : i32
    %c0_i32_1 = arith.constant 0 : i32
    return %arg0, %arg1, %c0_i32, %c0_i32_0 : i32, i32, i32, i32
  }
  func.func @transform_4(%arg0: i32, %arg1: i32) -> (i32, i32, i32, i32) {
    %c0_i32 = arith.constant 0 : i32
    %c0_i32_0 = arith.constant 0 : i32
    %c0_i32_1 = arith.constant 0 : i32
    return %arg0, %arg1, %c0_i32, %c0_i32_0 : i32, i32, i32, i32
  }
}

module attributes {stable_mosaic.version = 11 : i64} {
  func.func @bn_relu_pool_kernel(%arg0: i32, %arg1: i32, %arg2: memref<1x16x16x128xf32, #tpu.memory_space<vmem>>, %arg3: memref<1x128xf32, #tpu.memory_space<vmem>>, %arg4: memref<1x128xf32, #tpu.memory_space<vmem>>, %arg5: memref<1x16x16x128xf32, #tpu.memory_space<vmem>>, %arg6: memref<1x8x8x128xf32, #tpu.memory_space<vmem>>) attributes {dimension_semantics = [#tpu.dimension_semantics<parallel>, #tpu.dimension_semantics<parallel>], iteration_bounds = array<i64: 2, 1>, scalar_prefetch = 0 : i64, scratch_operands = 0 : i64, tpu.core_type = #tpu.core_type<tc>, window_params = [{transform_indices = @transform_0, window_bounds = array<i64: 1, 16, 16, 128>}, {pipeline_mode = #tpu.pipeline_mode<synchronous>, transform_indices = @transform_1, window_bounds = array<i64: 1, 128>}, {pipeline_mode = #tpu.pipeline_mode<synchronous>, transform_indices = @transform_2, window_bounds = array<i64: 1, 128>}, {transform_indices = @transform_3, window_bounds = array<i64: 1, 16, 16, 128>}, {transform_indices = @transform_4, window_bounds = array<i64: 1, 8, 8, 128>}]} {
    %c0 = arith.constant 0 : index
    %c0_0 = arith.constant 0 : index
    %0 = vector.load %arg3[%c0, %c0_0] : memref<1x128xf32, #tpu.memory_space<vmem>>, vector<1x128xf32>
    %1 = vector.shape_cast %0 : vector<1x128xf32> to vector<1x1x128xf32>
    %c0_1 = arith.constant 0 : index
    %c0_2 = arith.constant 0 : index
    %2 = vector.load %arg4[%c0_1, %c0_2] : memref<1x128xf32, #tpu.memory_space<vmem>>, vector<1x128xf32>
    %3 = vector.shape_cast %2 : vector<1x128xf32> to vector<1x1x128xf32>
    %c0_3 = arith.constant 0 : index
    %c0_4 = arith.constant 0 : index
    %c0_5 = arith.constant 0 : index
    %c0_6 = arith.constant 0 : index
    %4 = vector.load %arg2[%c0_3, %c0_4, %c0_5, %c0_6] : memref<1x16x16x128xf32, #tpu.memory_space<vmem>>, vector<1x16x16x128xf32>
    %5 = vector.shape_cast %4 : vector<1x16x16x128xf32> to vector<16x16x128xf32>
    %6 = vector.broadcast %1 : vector<1x1x128xf32> to vector<16x16x128xf32>
    %7 = arith.mulf %5, %6 : vector<16x16x128xf32>
    %8 = vector.broadcast %3 : vector<1x1x128xf32> to vector<16x16x128xf32>
    %9 = arith.addf %7, %8 : vector<16x16x128xf32>
    %cst = arith.constant 0.000000e+00 : f32
    %10 = vector.broadcast %cst : f32 to vector<16x16x128xf32>
    %11 = arith.maximumf %9, %10 : vector<16x16x128xf32>
    %c0_7 = arith.constant 0 : index
    %c0_8 = arith.constant 0 : index
    %c0_9 = arith.constant 0 : index
    %c0_10 = arith.constant 0 : index
    %12 = vector.load %arg5[%c0_7, %c0_8, %c0_9, %c0_10] : memref<1x16x16x128xf32, #tpu.memory_space<vmem>>, vector<1x16x16x128xf32>
    %13 = vector.shape_cast %12 : vector<1x16x16x128xf32> to vector<16x16x128xf32>
    %14 = vector.shape_cast %11 : vector<16x16x128xf32> to vector<1x16x16x128xf32>
    tpu.vector_store %arg5[%c0_7, %c0_8, %c0_9, %c0_10], %14 {strides = array<i32>} : memref<1x16x16x128xf32, #tpu.memory_space<vmem>>, vector<1x16x16x128xf32>,
    %15 = vector.shape_cast %11 : vector<16x16x128xf32> to vector<16x8x2x128xf32>
    %cst_11 = arith.constant dense<0xFF800000> : vector<16x8x128xf32>
    %16 = vector.multi_reduction <maximumf>, %15, %cst_11 [2] : vector<16x8x2x128xf32> to vector<16x8x128xf32>
    %17 = vector.shape_cast %16 : vector<16x8x128xf32> to vector<8x2x8x128xf32>
    %cst_12 = arith.constant dense<0xFF800000> : vector<8x8x128xf32>
    %18 = vector.multi_reduction <maximumf>, %17, %cst_12 [1] : vector<8x2x8x128xf32> to vector<8x8x128xf32>
    %c0_13 = arith.constant 0 : index
    %c0_14 = arith.constant 0 : index
    %c0_15 = arith.constant 0 : index
    %c0_16 = arith.constant 0 : index
    %19 = vector.load %arg6[%c0_13, %c0_14, %c0_15, %c0_16] : memref<1x8x8x128xf32, #tpu.memory_space<vmem>>, vector<1x8x8x128xf32>
    %20 = vector.shape_cast %19 : vector<1x8x8x128xf32> to vector<8x8x128xf32>
    %21 = vector.shape_cast %18 : vector<8x8x128xf32> to vector<1x8x8x128xf32>
    tpu.vector_store %arg6[%c0_13, %c0_14, %c0_15, %c0_16], %21 {strides = array<i32>} : memref<1x8x8x128xf32, #tpu.memory_space<vmem>>, vector<1x8x8x128xf32>,
    return
  }
  func.func @transform_0(%arg0: i32, %arg1: i32) -> (i32, i32, i32, i32) {
    %c0_i32 = arith.constant 0 : i32
    %c0_i32_0 = arith.constant 0 : i32
    %c0_i32_1 = arith.constant 0 : i32
    return %arg0, %arg1, %c0_i32, %c0_i32_0 : i32, i32, i32, i32
  }
  func.func @transform_1(%arg0: i32, %arg1: i32) -> (i32, i32) {
    %c0_i32 = arith.constant 0 : i32
    %c0_i32_0 = arith.constant 0 : i32
    %c0_i32_1 = arith.constant 0 : i32
    return %c0_i32, %c0_i32_0 : i32, i32
  }
  func.func @transform_2(%arg0: i32, %arg1: i32) -> (i32, i32) {
    %c0_i32 = arith.constant 0 : i32
    %c0_i32_0 = arith.constant 0 : i32
    %c0_i32_1 = arith.constant 0 : i32
    return %c0_i32, %c0_i32_0 : i32, i32
  }
  func.func @transform_3(%arg0: i32, %arg1: i32) -> (i32, i32, i32, i32) {
    %c0_i32 = arith.constant 0 : i32
    %c0_i32_0 = arith.constant 0 : i32
    %c0_i32_1 = arith.constant 0 : i32
    return %arg0, %arg1, %c0_i32, %c0_i32_0 : i32, i32, i32, i32
  }
  func.func @transform_4(%arg0: i32, %arg1: i32) -> (i32, i32, i32, i32) {
    %c0_i32 = arith.constant 0 : i32
    %c0_i32_0 = arith.constant 0 : i32
    %c0_i32_1 = arith.constant 0 : i32
    return %arg0, %arg1, %c0_i32, %c0_i32_0 : i32, i32, i32, i32
  }
}

</mosaic_0001>

<llo_original>
// kernel: down_block.5
$region0: #{down_block.5}
  #allocation0 [shape = 'u32[]', space=smem, size = 0x4, offset = 0x4, fixed_abs, tag = 'smem constant byte address 0x4 - core index']
  #allocation1 [shape = 'u32[72,128]{1,0:T(1,128)}', space=vmem, size = 0x9000, scoped, tag = 'internal scratch']
  %s0 = inlined_call_operand.vmem [shape: f32[2,16,16,128], index: 0, kind: input, shape index: {}]
  %s1 = inlined_call_operand.vmem [shape: f32[1,128], index: 1, kind: input, shape index: {}]
  %s2 = inlined_call_operand.vmem [shape: f32[1,128], index: 2, kind: input, shape index: {}]
  %s3 = inlined_call_operand.vmem [shape: bf16[2,16,16,128], index: 3, kind: output, shape index: {}]
  %s4 = sld [smem:[#allocation0]]
  $region45: #{down_block.5} parent=0
    _
  %s6 = ssub.s32 1, %s4
  %s7 = scalar_select 0, %s6, %s4
  loop: start=0, step=1, limit=4
  $region2: #{down_block.5} parent=0 // loop_pre_header
    _
  $region3: #{down_block.5} parent=0 // loop_header
    %s9 = sphi 0, %s13
    %p10 = scmp.ge.s32.totalorder %s9, 4
    %s16 = sphi 0, %s28
    %s17 = sphi 0, %s24
    %s18 = sphi 0, %s16
    %s19 = sphi 0, %s17
    %s20 = sphi 0, %s18
    %s21 = sphi 0, %s19
    %s33 = sphi 0, %s35
    %s36 = sphi 0, %s33
    %s37 = sphi 0, %s36
    %s53 = sphi 0, %s37
    %s57 = sphi 0, %s57
    %s59 = sphi 0, %s57
    %s60 = sphi 0, %s59
    %s74 = sphi 0, %s60
    %s78 = sphi 0, %s78
    %s80 = sphi 0, %s78
    %s81 = sphi 0, %s80
    %s95 = sphi 0, %s81
    %s103 = sphi 0, %s105
    %s106 = sphi 0, %s103
    %s107 = sphi 0, %s106
    %s123 = sphi 0, %s107
  $region4: #{down_block.5} parent=0 // loop_header_branch
    %12 = sbr.rel (%p10) target = $region8
  $region5: #{down_block.5} parent=0 // loop_body
    %s14 = ssub.s32 %s9, 1
    %s15 = ssub.s32 %s9, 2
    %s22 = sadd.s32 1, %s17
    %p23 = scmp.ge.s32.totalorder %s22, 1
    %s24 = scalar_select %p23, 0, %s22
    %s25 = sadd.s32 1, %s16
    %s26 = scalar_select %p23, %s25, %s16
    %p27 = scmp.ge.s32.totalorder %s26, 2
    %s28 = scalar_select %p27, 0, %s26
    %s29 = ssub.s32 %s16, %s28
    %s30 = ssub.s32 %s17, %s24
    %s31 = sor.u32 %s29, %s30
    %p32 = scmp.eq.s32.totalorder %s31, 0
    %s34 = sadd.s32 %s33, 1
    %s35 = scalar_select %p32, %s33, %s34
    %p38 = pneg %p32
    %p39 = scmp.eq.s32.totalorder %s9, 1
    %p40 = por %p38, %p39
    %p41 = scmp.ne.s32.totalorder %s33, %s36
    %p42 = scmp.eq.s32.totalorder %s9, 0
    %p43 = por %p41, %p42
    %p44 = scmp.ne.s32.totalorder %s33, %s36
    %p45 = scmp.eq.s32.totalorder %s14, 1
    %p46 = por %p44, %p45
    %p47 = scmp.ne.s32.totalorder %s36, %s37
    %p48 = scmp.eq.s32.totalorder %s14, 0
    %p49 = por %p47, %p48
    %p50 = scmp.ne.s32.totalorder %s36, %s37
    %p51 = scmp.eq.s32.totalorder %s15, 1
    %p52 = por %p50, %p51
    %p54 = scmp.ne.s32.totalorder %s37, %s53
    %p55 = scmp.eq.s32.totalorder %s15, 0
    %p56 = por %p54, %p55
    %s58 = sadd.s32 %s57, 1
    %p61 = scmp.eq.s32.totalorder %s9, 1
    %p62 = scmp.ne.s32.totalorder %s57, %s59
    %p63 = scmp.eq.s32.totalorder %s9, 0
    %p64 = por %p62, %p63
    %p65 = scmp.ne.s32.totalorder %s57, %s59
    %p66 = scmp.eq.s32.totalorder %s14, 1
    %p67 = por %p65, %p66
    %p68 = scmp.ne.s32.totalorder %s59, %s60
    %p69 = scmp.eq.s32.totalorder %s14, 0
    %p70 = por %p68, %p69
    %p71 = scmp.ne.s32.totalorder %s59, %s60
    %p72 = scmp.eq.s32.totalorder %s15, 1
    %p73 = por %p71, %p72
    %p75 = scmp.ne.s32.totalorder %s60, %s74
    %p76 = scmp.eq.s32.totalorder %s15, 0
    %p77 = por %p75, %p76
    %s79 = sadd.s32 %s78, 1
    %p82 = scmp.eq.s32.totalorder %s9, 1
    %p83 = scmp.ne.s32.totalorder %s78, %s80
    %p84 = scmp.eq.s32.totalorder %s9, 0
    %p85 = por %p83, %p84
    %p86 = scmp.ne.s32.totalorder %s78, %s80
    %p87 = scmp.eq.s32.totalorder %s14, 1
    %p88 = por %p86, %p87
    %p89 = scmp.ne.s32.totalorder %s80, %s81
    %p90 = scmp.eq.s32.totalorder %s14, 0
    %p91 = por %p89, %p90
    %p92 = scmp.ne.s32.totalorder %s80, %s81
    %p93 = scmp.eq.s32.totalorder %s15, 1
    %p94 = por %p92, %p93
    %p96 = scmp.ne.s32.totalorder %s81, %s95
    %p97 = scmp.eq.s32.totalorder %s15, 0
    %p98 = por %p96, %p97
    %s99 = ssub.s32 %s16, %s28
    %s100 = ssub.s32 %s17, %s24
    %s101 = sor.u32 %s99, %s100
    %p102 = scmp.eq.s32.totalorder %s101, 0
    %s104 = sadd.s32 %s103, 1
    %s105 = scalar_select %p102, %s103, %s104
    %p108 = pneg %p102
    %p109 = scmp.eq.s32.totalorder %s9, 1
    %p110 = por %p108, %p109
    %p111 = scmp.ne.s32.totalorder %s103, %s106
    %p112 = scmp.eq.s32.totalorder %s9, 0
    %p113 = por %p111, %p112
    %p114 = scmp.ne.s32.totalorder %s103, %s106
    %p115 = scmp.eq.s32.totalorder %s14, 1
    %p116 = por %p114, %p115
    %p117 = scmp.ne.s32.totalorder %s106, %s107
    %p118 = scmp.eq.s32.totalorder %s14, 0
    %p119 = por %p117, %p118
    %p120 = scmp.ne.s32.totalorder %s106, %s107
    %p121 = scmp.eq.s32.totalorder %s15, 1
    %p122 = por %p120, %p121
    %p124 = scmp.ne.s32.totalorder %s107, %s123
    %p125 = scmp.eq.s32.totalorder %s15, 0
    %p126 = por %p124, %p125
    %p127 = scmp.le.s32.totalorder 1, %s9
    %p128 = scmp.lt.s32.totalorder %s9, 3
    %p129 = pnand %p127, %p128
    %p130 = pneg %p129
    // Predicated region
    $region9: #{down_block.5} parent=5 // pred_check
      _
    $region10: #{down_block.5} parent=5 // pred_check_branch
      %132 = sbr.rel (%p129) target = $region12
    $region11: #{down_block.5} parent=5 // pred_region
      %s133 = ssub.s32 %s9, 1
      // Predicated region
      $region13: #{down_block.5} parent=11 // pred_check
        %p134 = pneg %p70
      $region14: #{down_block.5} parent=11 // pred_check_branch
        %136 = sbr.rel (%p134) target = $region16
      $region15: #{down_block.5} parent=11 // pred_region
        _
      $region16: #{down_block.5} parent=11 // pred_fallthru
        _
      // Predicated region
      $region17: #{down_block.5} parent=11 // pred_check
        %p137 = pneg %p91
      $region18: #{down_block.5} parent=11 // pred_check_branch
        %139 = sbr.rel (%p137) target = $region20
      $region19: #{down_block.5} parent=11 // pred_region
        _
      $region20: #{down_block.5} parent=11 // pred_fallthru
        _
    $region12: #{down_block.5} parent=5 // pred_fallthru
      _
    %p140 = scmp.lt.s32.totalorder %s9, 2
    // Predicated region
    $region21: #{down_block.5} parent=5 // pred_check
      %p141 = pneg %p140
    $region22: #{down_block.5} parent=5 // pred_check_branch
      %143 = sbr.rel (%p141) target = $region24
    $region23: #{down_block.5} parent=5 // pred_region
      // Predicated region
      $region25: #{down_block.5} parent=23 // pred_check
        %p144 = pneg %p43
      $region26: #{down_block.5} parent=23 // pred_check_branch
        %146 = sbr.rel (%p144) target = $region28
      $region27: #{down_block.5} parent=23 // pred_region
        %s147 = smul.u32 16, %s17
        %p148 = scmp.lt.s32.totalorder %s16, 1
        %s149 = scalar_select %p148, %s16, 1
        %p150 = scmp.lt.s32.totalorder %s147, 15
        %s151 = scalar_select %p150, %s147, 15
        %s152 = smul.addr %s151, 2
        %s153 = smul.addr %s149, 32
        %s154 = sadd.s32 %s152, %s153
        %s155 = smul.addr %s154, 8
        %s156 = scalar_lea.vmem %s0, %s155
        %s157 = smul.u32 16, %s17
      $region28: #{down_block.5} parent=23 // pred_fallthru
        _
    $region24: #{down_block.5} parent=5 // pred_fallthru
      _
    %p158 = scmp.le.s32.totalorder 1, %s9
    %p159 = scmp.lt.s32.totalorder %s9, 3
    %p160 = pnand %p158, %p159
    %p161 = pneg %p160
    // Predicated region
    $region29: #{down_block.5} parent=5 // pred_check
      _
    $region30: #{down_block.5} parent=5 // pred_check_branch
      %163 = sbr.rel (%p160) target = $region32
    $region31: #{down_block.5} parent=5 // pred_region
      %s164 = ssub.s32 %s9, 1
      %s165 = smul.u32 16, %s19
      %p166 = scmp.lt.s32.totalorder %s18, 1
      %s167 = scalar_select %p166, %s18, 1
      %p168 = scmp.lt.s32.totalorder %s165, 15
      %s169 = scalar_select %p168, %s165, 15
      %s170 = smul.addr %s169, 2
      %s171 = smul.addr %s167, 32
      %s172 = sadd.s32 %s170, %s171
      %s173 = smul.addr %s172, 8
      %s174 = scalar_lea.vmem %s0, %s173
      %p175 = pneg %p49
      %p176 = pneg %p46
      %p177 = pneg %p70
      %p178 = pneg %p67
      %p179 = pneg %p91
      %p180 = pneg %p88
      %p181 = pneg %p119
      %p182 = pneg %p116
      %s183 = smul.u32 16, %s19
      %p184 = scmp.lt.s32.totalorder %s18, 1
      %s185 = scalar_select %p184, %s18, 1
      %p186 = scmp.lt.s32.totalorder %s183, 15
      %s187 = scalar_select %p186, %s183, 15
      %s188 = smul.addr %s187, 2
      %s189 = smul.addr %s185, 32
      %s190 = sadd.s32 %s188, %s189
      %s191 = smul.addr %s190, 4
      %s192 = scalar_lea.vmem %s3, %s191
      %s193 = smul.u32 16, %s19
      %p194 = scmp.lt.s32.totalorder %s18, 1
      %s195 = scalar_select %p194, %s18, 1
      %p196 = scmp.lt.s32.totalorder %s193, 15
      %s197 = scalar_select %p196, %s193, 15
      %s198 = smul.addr %s197, 2
      %s199 = smul.addr %s195, 32
      %s200 = sadd.s32 %s198, %s199
      %s201 = smul.addr %s200, 8
      %s202 = scalar_lea.vmem %s0, %s201
      %s203 = smul.u32 16, %s19
      %s204 = smul.u32 16, %s19
      %p205 = scmp.lt.s32.totalorder %s18, 1
      %s206 = scalar_select %p205, %s18, 1
      %p207 = scmp.lt.s32.totalorder %s204, 15
      %s208 = scalar_select %p207, %s204, 15
      %s209 = smul.addr %s208, 2
      %s210 = smul.addr %s206, 32
      %s211 = sadd.s32 %s209, %s210
      %s212 = smul.addr %s211, 4
      %s213 = scalar_lea.vmem %s3, %s212
      %s214 = smul.u32 16, %s19
      %v215 = vld [vmem:[%s1] sm:$0x1]
      %v216 = vld [vmem:[%s2] sm:$0x1]
      %v217 = vld [vmem:[%s202] sm:$0xff]
      %v218 = vld [vmem:[%s202 + $0x8] sm:$0xff]
      %v219 = vld [vmem:[%s202 + $0x10] sm:$0xff]
      %v220 = vld [vmem:[%s202 + $0x18] sm:$0xff]
      %v221 = vld [vmem:[%s202 + $0x20] sm:$0xff]
      %v222 = vld [vmem:[%s202 + $0x28] sm:$0xff]
      %v223 = vld [vmem:[%s202 + $0x30] sm:$0xff]
      %v224 = vld [vmem:[%s202 + $0x38] sm:$0xff]
      %v225 = vld [vmem:[%s202 + $0x40] sm:$0xff]
      %v226 = vld [vmem:[%s202 + $0x48] sm:$0xff]
      %v227 = vld [vmem:[%s202 + $0x50] sm:$0xff]
      %v228 = vld [vmem:[%s202 + $0x58] sm:$0xff]
      %v229 = vld [vmem:[%s202 + $0x60] sm:$0xff]
      %v230 = vld [vmem:[%s202 + $0x68] sm:$0xff]
      %v231 = vld [vmem:[%s202 + $0x70] sm:$0xff]
      %v232 = vld [vmem:[%s202 + $0x78] sm:$0xff]
      %v233 = vld [vmem:[%s202 + $0x80] sm:$0xff]
      %v234 = vld [vmem:[%s202 + $0x88] sm:$0xff]
      %v235 = vld [vmem:[%s202 + $0x90] sm:$0xff]
      %v236 = vld [vmem:[%s202 + $0x98] sm:$0xff]
      %v237 = vld [vmem:[%s202 + $0xa0] sm:$0xff]
      %v238 = vld [vmem:[%s202 + $0xa8] sm:$0xff]
      %v239 = vld [vmem:[%s202 + $0xb0] sm:$0xff]
      %v240 = vld [vmem:[%s202 + $0xb8] sm:$0xff]
      %v241 = vld [vmem:[%s202 + $0xc0] sm:$0xff]
      %v242 = vld [vmem:[%s202 + $0xc8] sm:$0xff]
      %v243 = vld [vmem:[%s202 + $0xd0] sm:$0xff]
      %v244 = vld [vmem:[%s202 + $0xd8] sm:$0xff]
      %v245 = vld [vmem:[%s202 + $0xe0] sm:$0xff]
      %v246 = vld [vmem:[%s202 + $0xe8] sm:$0xff]
      %v247 = vld [vmem:[%s202 + $0xf0] sm:$0xff]
      %v248 = vld [vmem:[%s202 + $0xf8] sm:$0xff]
      %v250 = vperm.slane %v215, 0
      %v252 = vmul.f32 %v217, %v250
      %v253 = vmul.f32 %v218, %v250
      %v254 = vmul.f32 %v219, %v250
      %v255 = vmul.f32 %v220, %v250
      %v256 = vmul.f32 %v221, %v250
      %v257 = vmul.f32 %v222, %v250
      %v258 = vmul.f32 %v223, %v250
      %v259 = vmul.f32 %v224, %v250
      %v260 = vmul.f32 %v225, %v250
      %v261 = vmul.f32 %v226, %v250
      %v262 = vmul.f32 %v227, %v250
      %v263 = vmul.f32 %v228, %v250
      %v264 = vmul.f32 %v229, %v250
      %v265 = vmul.f32 %v230, %v250
      %v266 = vmul.f32 %v231, %v250
      %v267 = vmul.f32 %v232, %v250
      %v268 = vmul.f32 %v233, %v250
      %v269 = vmul.f32 %v234, %v250
      %v270 = vmul.f32 %v235, %v250
      %v271 = vmul.f32 %v236, %v250
      %v272 = vmul.f32 %v237, %v250
      %v273 = vmul.f32 %v238, %v250
      %v274 = vmul.f32 %v239, %v250
      %v275 = vmul.f32 %v240, %v250
      %v276 = vmul.f32 %v241, %v250
      %v277 = vmul.f32 %v242, %v250
      %v278 = vmul.f32 %v243, %v250
      %v279 = vmul.f32 %v244, %v250
      %v280 = vmul.f32 %v245, %v250
      %v281 = vmul.f32 %v246, %v250
      %v282 = vmul.f32 %v247, %v250
      %v283 = vmul.f32 %v248, %v250
      %v285 = vperm.slane %v216, 0
      %v287 = vadd.f32 %v252, %v285
      %v288 = vadd.f32 %v253, %v285
      %v289 = vadd.f32 %v254, %v285
      %v290 = vadd.f32 %v255, %v285
      %v291 = vadd.f32 %v256, %v285
      %v292 = vadd.f32 %v257, %v285
      %v293 = vadd.f32 %v258, %v285
      %v294 = vadd.f32 %v259, %v285
      %v295 = vadd.f32 %v260, %v285
      %v296 = vadd.f32 %v261, %v285
      %v297 = vadd.f32 %v262, %v285
      %v298 = vadd.f32 %v263, %v285
      %v299 = vadd.f32 %v264, %v285
      %v300 = vadd.f32 %v265, %v285
      %v301 = vadd.f32 %v266, %v285
      %v302 = vadd.f32 %v267, %v285
      %v303 = vadd.f32 %v268, %v285
      %v304 = vadd.f32 %v269, %v285
      %v305 = vadd.f32 %v270, %v285
      %v306 = vadd.f32 %v271, %v285
      %v307 = vadd.f32 %v272, %v285
      %v308 = vadd.f32 %v273, %v285
      %v309 = vadd.f32 %v274, %v285
      %v310 = vadd.f32 %v275, %v285
      %v311 = vadd.f32 %v276, %v285
      %v312 = vadd.f32 %v277, %v285
      %v313 = vadd.f32 %v278, %v285
      %v314 = vadd.f32 %v279, %v285
      %v315 = vadd.f32 %v280, %v285
      %v316 = vadd.f32 %v281, %v285
      %v317 = vadd.f32 %v282, %v285
      %v318 = vadd.f32 %v283, %v285
      %v319 = vmax.f32 %v287, 0.0
      %v320 = vmax.f32 %v288, 0.0
      %v321 = vmax.f32 %v289, 0.0
      %v322 = vmax.f32 %v290, 0.0
      %v323 = vmax.f32 %v291, 0.0
      %v324 = vmax.f32 %v292, 0.0
      %v325 = vmax.f32 %v293, 0.0
      %v326 = vmax.f32 %v294, 0.0
      %v327 = vmax.f32 %v295, 0.0
      %v328 = vmax.f32 %v296, 0.0
      %v329 = vmax.f32 %v297, 0.0
      %v330 = vmax.f32 %v298, 0.0
      %v331 = vmax.f32 %v299, 0.0
      %v332 = vmax.f32 %v300, 0.0
      %v333 = vmax.f32 %v301, 0.0
      %v334 = vmax.f32 %v302, 0.0
      %v335 = vmax.f32 %v303, 0.0
      %v336 = vmax.f32 %v304, 0.0
      %v337 = vmax.f32 %v305, 0.0
      %v338 = vmax.f32 %v306, 0.0
      %v339 = vmax.f32 %v307, 0.0
      %v340 = vmax.f32 %v308, 0.0
      %v341 = vmax.f32 %v309, 0.0
      %v342 = vmax.f32 %v310, 0.0
      %v343 = vmax.f32 %v311, 0.0
      %v344 = vmax.f32 %v312, 0.0
      %v345 = vmax.f32 %v313, 0.0
      %v346 = vmax.f32 %v314, 0.0
      %v347 = vmax.f32 %v315, 0.0
      %v348 = vmax.f32 %v316, 0.0
      %v349 = vmax.f32 %v317, 0.0
      %v350 = vmax.f32 %v318, 0.0
      %v351 = vpack.c.bf16 %v319, %v319
      %v352 = vpack.c.bf16 %v320, %v320
      %v353 = vpack.c.bf16 %v321, %v321
      %v354 = vpack.c.bf16 %v322, %v322
      %v355 = vpack.c.bf16 %v323, %v323
      %v356 = vpack.c.bf16 %v324, %v324
      %v357 = vpack.c.bf16 %v325, %v325
      %v358 = vpack.c.bf16 %v326, %v326
      %v359 = vpack.c.bf16 %v327, %v327
      %v360 = vpack.c.bf16 %v328, %v328
      %v361 = vpack.c.bf16 %v329, %v329
      %v362 = vpack.c.bf16 %v330, %v330
      %v363 = vpack.c.bf16 %v331, %v331
      %v364 = vpack.c.bf16 %v332, %v332
      %v365 = vpack.c.bf16 %v333, %v333
      %v366 = vpack.c.bf16 %v334, %v334
      %v367 = vpack.c.bf16 %v335, %v335
      %v368 = vpack.c.bf16 %v336, %v336
      %v369 = vpack.c.bf16 %v337, %v337
      %v370 = vpack.c.bf16 %v338, %v338
      %v371 = vpack.c.bf16 %v339, %v339
      %v372 = vpack.c.bf16 %v340, %v340
      %v373 = vpack.c.bf16 %v341, %v341
      %v374 = vpack.c.bf16 %v342, %v342
      %v375 = vpack.c.bf16 %v343, %v343
      %v376 = vpack.c.bf16 %v344, %v344
      %v377 = vpack.c.bf16 %v345, %v345
      %v378 = vpack.c.bf16 %v346, %v346
      %v379 = vpack.c.bf16 %v347, %v347
      %v380 = vpack.c.bf16 %v348, %v348
      %v381 = vpack.c.bf16 %v349, %v349
      %v382 = vpack.c.bf16 %v350, %v350
      %383 = vst [vmem:[%s213] sm:$0xf] %v351
      %384 = vst [vmem:[%s213 + $0x4] sm:$0xf] %v352
      %385 = vst [vmem:[%s213 + $0x8] sm:$0xf] %v353
      %386 = vst [vmem:[%s213 + $0xc] sm:$0xf] %v354
      %387 = vst [vmem:[%s213 + $0x10] sm:$0xf] %v355
      %388 = vst [vmem:[%s213 + $0x14] sm:$0xf] %v356
      %389 = vst [vmem:[%s213 + $0x18] sm:$0xf] %v357
      %390 = vst [vmem:[%s213 + $0x1c] sm:$0xf] %v358
      %391 = vst [vmem:[%s213 + $0x20] sm:$0xf] %v359
      %392 = vst [vmem:[%s213 + $0x24] sm:$0xf] %v360
      %393 = vst [vmem:[%s213 + $0x28] sm:$0xf] %v361
      %394 = vst [vmem:[%s213 + $0x2c] sm:$0xf] %v362
      %395 = vst [vmem:[%s213 + $0x30] sm:$0xf] %v363
      %396 = vst [vmem:[%s213 + $0x34] sm:$0xf] %v364
      %397 = vst [vmem:[%s213 + $0x38] sm:$0xf] %v365
      %398 = vst [vmem:[%s213 + $0x3c] sm:$0xf] %v366
      %399 = vst [vmem:[%s213 + $0x40] sm:$0xf] %v367
      %400 = vst [vmem:[%s213 + $0x44] sm:$0xf] %v368
      %401 = vst [vmem:[%s213 + $0x48] sm:$0xf] %v369
      %402 = vst [vmem:[%s213 + $0x4c] sm:$0xf] %v370
      %403 = vst [vmem:[%s213 + $0x50] sm:$0xf] %v371
      %404 = vst [vmem:[%s213 + $0x54] sm:$0xf] %v372
      %405 = vst [vmem:[%s213 + $0x58] sm:$0xf] %v373
      %406 = vst [vmem:[%s213 + $0x5c] sm:$0xf] %v374
      %407 = vst [vmem:[%s213 + $0x60] sm:$0xf] %v375
      %408 = vst [vmem:[%s213 + $0x64] sm:$0xf] %v376
      %409 = vst [vmem:[%s213 + $0x68] sm:$0xf] %v377
      %410 = vst [vmem:[%s213 + $0x6c] sm:$0xf] %v378
      %411 = vst [vmem:[%s213 + $0x70] sm:$0xf] %v379
      %412 = vst [vmem:[%s213 + $0x74] sm:$0xf] %v380
      %413 = vst [vmem:[%s213 + $0x78] sm:$0xf] %v381
      %414 = vst [vmem:[%s213 + $0x7c] sm:$0xf] %v382
      %s415 = smul.u32 16, %s19
      %p416 = scmp.lt.s32.totalorder %s18, 1
      %s417 = scalar_select %p416, %s18, 1
      %p418 = scmp.lt.s32.totalorder %s415, 15
      %s419 = scalar_select %p418, %s415, 15
      %s420 = smul.addr %s419, 2
      %s421 = smul.addr %s417, 32
      %s422 = sadd.s32 %s420, %s421
      %s423 = smul.addr %s422, 4
      %s424 = scalar_lea.vmem %s3, %s423
      // Predicated region
      $region33: #{down_block.5} parent=31 // pred_check
        %p425 = pneg %p116
      $region34: #{down_block.5} parent=31 // pred_check_branch
        %427 = sbr.rel (%p425) target = $region36
      $region35: #{down_block.5} parent=31 // pred_region
        %s428 = smul.u32 16, %s19
      $region36: #{down_block.5} parent=31 // pred_fallthru
        _
    $region32: #{down_block.5} parent=5 // pred_fallthru
      _
    %p429 = scmp.le.s32.totalorder 2, %s9
    // Predicated region
    $region37: #{down_block.5} parent=5 // pred_check
      %p430 = pneg %p429
    $region38: #{down_block.5} parent=5 // pred_check_branch
      %432 = sbr.rel (%p430) target = $region40
    $region39: #{down_block.5} parent=5 // pred_region
      %s433 = ssub.s32 %s9, 2
      // Predicated region
      $region41: #{down_block.5} parent=39 // pred_check
        %p434 = pneg %p122
      $region42: #{down_block.5} parent=39 // pred_check_branch
        %436 = sbr.rel (%p434) target = $region44
      $region43: #{down_block.5} parent=39 // pred_region
        %s437 = smul.u32 16, %s21
        %p438 = scmp.lt.s32.totalorder %s20, 1
        %s439 = scalar_select %p438, %s20, 1
        %p440 = scmp.lt.s32.totalorder %s437, 15
        %s441 = scalar_select %p440, %s437, 15
        %s442 = smul.addr %s441, 2
        %s443 = smul.addr %s439, 32
        %s444 = sadd.s32 %s442, %s443
        %s445 = smul.addr %s444, 4
        %s446 = scalar_lea.vmem %s3, %s445
      $region44: #{down_block.5} parent=39 // pred_fallthru
        _
    $region40: #{down_block.5} parent=5 // pred_fallthru
      _
  $region6: #{down_block.5} parent=0 // loop_footer
    %s13 = sadd.s32 1, %s9
  $region7: #{down_block.5} parent=0 // loop_footer_branch
    %8 = sbr.rel target = $region3
  $region8: #{down_block.5} parent=0 // loop_exit
    _

// kernel: down_block.7
$region0: #{down_block.7}
  #allocation0 [shape = 'u32[]', space=smem, size = 0x4, offset = 0x4, fixed_abs, tag = 'smem constant byte address 0x4 - core index']
  #allocation1 [shape = 'u32[72,128]{1,0:T(1,128)}', space=vmem, size = 0x9000, scoped, tag = 'internal scratch']
  %s0 = inlined_call_operand.vmem [shape: f32[2,16,16,128], index: 0, kind: input, shape index: {}]
  %s1 = inlined_call_operand.vmem [shape: f32[1,128], index: 1, kind: input, shape index: {}]
  %s2 = inlined_call_operand.vmem [shape: f32[1,128], index: 2, kind: input, shape index: {}]
  %s3 = inlined_call_operand.vmem [shape: f32[2,16,16,128], index: 3, kind: output, shape index: {0}]
  %s4 = inlined_call_operand.vmem [shape: f32[2,8,8,128], index: 4, kind: output, shape index: {1}]
  %5 = xla_tuple %s3, %s4
  %s6 = sld [smem:[#allocation0]]
  $region53: #{down_block.7} parent=0
    _
  %s8 = ssub.s32 1, %s6
  %s9 = scalar_select 0, %s8, %s6
  loop: start=0, step=1, limit=4
  $region2: #{down_block.7} parent=0 // loop_pre_header
    _
  $region3: #{down_block.7} parent=0 // loop_header
    %s11 = sphi 0, %s15
    %p12 = scmp.ge.s32.totalorder %s11, 4
    %s18 = sphi 0, %s30
    %s19 = sphi 0, %s26
    %s20 = sphi 0, %s18
    %s21 = sphi 0, %s19
    %s22 = sphi 0, %s20
    %s23 = sphi 0, %s21
    %s35 = sphi 0, %s37
    %s38 = sphi 0, %s35
    %s39 = sphi 0, %s38
    %s55 = sphi 0, %s39
    %s59 = sphi 0, %s59
    %s61 = sphi 0, %s59
    %s62 = sphi 0, %s61
    %s76 = sphi 0, %s62
    %s80 = sphi 0, %s80
    %s82 = sphi 0, %s80
    %s83 = sphi 0, %s82
    %s97 = sphi 0, %s83
    %s105 = sphi 0, %s107
    %s108 = sphi 0, %s105
    %s109 = sphi 0, %s108
    %s125 = sphi 0, %s109
    %s133 = sphi 0, %s135
    %s136 = sphi 0, %s133
    %s137 = sphi 0, %s136
    %s153 = sphi 0, %s137
  $region4: #{down_block.7} parent=0 // loop_header_branch
    %14 = sbr.rel (%p12) target = $region8
  $region5: #{down_block.7} parent=0 // loop_body
    %s16 = ssub.s32 %s11, 1
    %s17 = ssub.s32 %s11, 2
    %s24 = sadd.s32 1, %s19
    %p25 = scmp.ge.s32.totalorder %s24, 1
    %s26 = scalar_select %p25, 0, %s24
    %s27 = sadd.s32 1, %s18
    %s28 = scalar_select %p25, %s27, %s18
    %p29 = scmp.ge.s32.totalorder %s28, 2
    %s30 = scalar_select %p29, 0, %s28
    %s31 = ssub.s32 %s18, %s30
    %s32 = ssub.s32 %s19, %s26
    %s33 = sor.u32 %s31, %s32
    %p34 = scmp.eq.s32.totalorder %s33, 0
    %s36 = sadd.s32 %s35, 1
    %s37 = scalar_select %p34, %s35, %s36
    %p40 = pneg %p34
    %p41 = scmp.eq.s32.totalorder %s11, 1
    %p42 = por %p40, %p41
    %p43 = scmp.ne.s32.totalorder %s35, %s38
    %p44 = scmp.eq.s32.totalorder %s11, 0
    %p45 = por %p43, %p44
    %p46 = scmp.ne.s32.totalorder %s35, %s38
    %p47 = scmp.eq.s32.totalorder %s16, 1
    %p48 = por %p46, %p47
    %p49 = scmp.ne.s32.totalorder %s38, %s39
    %p50 = scmp.eq.s32.totalorder %s16, 0
    %p51 = por %p49, %p50
    %p52 = scmp.ne.s32.totalorder %s38, %s39
    %p53 = scmp.eq.s32.totalorder %s17, 1
    %p54 = por %p52, %p53
    %p56 = scmp.ne.s32.totalorder %s39, %s55
    %p57 = scmp.eq.s32.totalorder %s17, 0
    %p58 = por %p56, %p57
    %s60 = sadd.s32 %s59, 1
    %p63 = scmp.eq.s32.totalorder %s11, 1
    %p64 = scmp.ne.s32.totalorder %s59, %s61
    %p65 = scmp.eq.s32.totalorder %s11, 0
    %p66 = por %p64, %p65
    %p67 = scmp.ne.s32.totalorder %s59, %s61
    %p68 = scmp.eq.s32.totalorder %s16, 1
    %p69 = por %p67, %p68
    %p70 = scmp.ne.s32.totalorder %s61, %s62
    %p71 = scmp.eq.s32.totalorder %s16, 0
    %p72 = por %p70, %p71
    %p73 = scmp.ne.s32.totalorder %s61, %s62
    %p74 = scmp.eq.s32.totalorder %s17, 1
    %p75 = por %p73, %p74
    %p77 = scmp.ne.s32.totalorder %s62, %s76
    %p78 = scmp.eq.s32.totalorder %s17, 0
    %p79 = por %p77, %p78
    %s81 = sadd.s32 %s80, 1
    %p84 = scmp.eq.s32.totalorder %s11, 1
    %p85 = scmp.ne.s32.totalorder %s80, %s82
    %p86 = scmp.eq.s32.totalorder %s11, 0
    %p87 = por %p85, %p86
    %p88 = scmp.ne.s32.totalorder %s80, %s82
    %p89 = scmp.eq.s32.totalorder %s16, 1
    %p90 = por %p88, %p89
    %p91 = scmp.ne.s32.totalorder %s82, %s83
    %p92 = scmp.eq.s32.totalorder %s16, 0
    %p93 = por %p91, %p92
    %p94 = scmp.ne.s32.totalorder %s82, %s83
    %p95 = scmp.eq.s32.totalorder %s17, 1
    %p96 = por %p94, %p95
    %p98 = scmp.ne.s32.totalorder %s83, %s97
    %p99 = scmp.eq.s32.totalorder %s17, 0
    %p100 = por %p98, %p99
    %s101 = ssub.s32 %s18, %s30
    %s102 = ssub.s32 %s19, %s26
    %s103 = sor.u32 %s101, %s102
    %p104 = scmp.eq.s32.totalorder %s103, 0
    %s106 = sadd.s32 %s105, 1
    %s107 = scalar_select %p104, %s105, %s106
    %p110 = pneg %p104
    %p111 = scmp.eq.s32.totalorder %s11, 1
    %p112 = por %p110, %p111
    %p113 = scmp.ne.s32.totalorder %s105, %s108
    %p114 = scmp.eq.s32.totalorder %s11, 0
    %p115 = por %p113, %p114
    %p116 = scmp.ne.s32.totalorder %s105, %s108
    %p117 = scmp.eq.s32.totalorder %s16, 1
    %p118 = por %p116, %p117
    %p119 = scmp.ne.s32.totalorder %s108, %s109
    %p120 = scmp.eq.s32.totalorder %s16, 0
    %p121 = por %p119, %p120
    %p122 = scmp.ne.s32.totalorder %s108, %s109
    %p123 = scmp.eq.s32.totalorder %s17, 1
    %p124 = por %p122, %p123
    %p126 = scmp.ne.s32.totalorder %s109, %s125
    %p127 = scmp.eq.s32.totalorder %s17, 0
    %p128 = por %p126, %p127
    %s129 = ssub.s32 %s18, %s30
    %s130 = ssub.s32 %s19, %s26
    %s131 = sor.u32 %s129, %s130
    %p132 = scmp.eq.s32.totalorder %s131, 0
    %s134 = sadd.s32 %s133, 1
    %s135 = scalar_select %p132, %s133, %s134
    %p138 = pneg %p132
    %p139 = scmp.eq.s32.totalorder %s11, 1
    %p140 = por %p138, %p139
    %p141 = scmp.ne.s32.totalorder %s133, %s136
    %p142 = scmp.eq.s32.totalorder %s11, 0
    %p143 = por %p141, %p142
    %p144 = scmp.ne.s32.totalorder %s133, %s136
    %p145 = scmp.eq.s32.totalorder %s16, 1
    %p146 = por %p144, %p145
    %p147 = scmp.ne.s32.totalorder %s136, %s137
    %p148 = scmp.eq.s32.totalorder %s16, 0
    %p149 = por %p147, %p148
    %p150 = scmp.ne.s32.totalorder %s136, %s137
    %p151 = scmp.eq.s32.totalorder %s17, 1
    %p152 = por %p150, %p151
    %p154 = scmp.ne.s32.totalorder %s137, %s153
    %p155 = scmp.eq.s32.totalorder %s17, 0
    %p156 = por %p154, %p155
    %p157 = scmp.le.s32.totalorder 1, %s11
    %p158 = scmp.lt.s32.totalorder %s11, 3
    %p159 = pnand %p157, %p158
    %p160 = pneg %p159
    // Predicated region
    $region9: #{down_block.7} parent=5 // pred_check
      _
    $region10: #{down_block.7} parent=5 // pred_check_branch
      %162 = sbr.rel (%p159) target = $region12
    $region11: #{down_block.7} parent=5 // pred_region
      %s163 = ssub.s32 %s11, 1
      // Predicated region
      $region13: #{down_block.7} parent=11 // pred_check
        %p164 = pneg %p72
      $region14: #{down_block.7} parent=11 // pred_check_branch
        %166 = sbr.rel (%p164) target = $region16
      $region15: #{down_block.7} parent=11 // pred_region
        _
      $region16: #{down_block.7} parent=11 // pred_fallthru
        _
      // Predicated region
      $region17: #{down_block.7} parent=11 // pred_check
        %p167 = pneg %p93
      $region18: #{down_block.7} parent=11 // pred_check_branch
        %169 = sbr.rel (%p167) target = $region20
      $region19: #{down_block.7} parent=11 // pred_region
        _
      $region20: #{down_block.7} parent=11 // pred_fallthru
        _
    $region12: #{down_block.7} parent=5 // pred_fallthru
      _
    %p170 = scmp.lt.s32.totalorder %s11, 2
    // Predicated region
    $region21: #{down_block.7} parent=5 // pred_check
      %p171 = pneg %p170
    $region22: #{down_block.7} parent=5 // pred_check_branch
      %173 = sbr.rel (%p171) target = $region24
    $region23: #{down_block.7} parent=5 // pred_region
      // Predicated region
      $region25: #{down_block.7} parent=23 // pred_check
        %p174 = pneg %p45
      $region26: #{down_block.7} parent=23 // pred_check_branch
        %176 = sbr.rel (%p174) target = $region28
      $region27: #{down_block.7} parent=23 // pred_region
        %s177 = smul.u32 16, %s19
        %p178 = scmp.lt.s32.totalorder %s18, 1
        %s179 = scalar_select %p178, %s18, 1
        %p180 = scmp.lt.s32.totalorder %s177, 15
        %s181 = scalar_select %p180, %s177, 15
        %s182 = smul.addr %s181, 2
        %s183 = smul.addr %s179, 32
        %s184 = sadd.s32 %s182, %s183
        %s185 = smul.addr %s184, 8
        %s186 = scalar_lea.vmem %s0, %s185
        %s187 = smul.u32 16, %s19
      $region28: #{down_block.7} parent=23 // pred_fallthru
        _
    $region24: #{down_block.7} parent=5 // pred_fallthru
      _
    %p188 = scmp.le.s32.totalorder 1, %s11
    %p189 = scmp.lt.s32.totalorder %s11, 3
    %p190 = pnand %p188, %p189
    %p191 = pneg %p190
    // Predicated region
    $region29: #{down_block.7} parent=5 // pred_check
      _
    $region30: #{down_block.7} parent=5 // pred_check_branch
      %193 = sbr.rel (%p190) target = $region32
    $region31: #{down_block.7} parent=5 // pred_region
      %s194 = ssub.s32 %s11, 1
      %s195 = smul.u32 16, %s21
      %p196 = scmp.lt.s32.totalorder %s20, 1
      %s197 = scalar_select %p196, %s20, 1
      %p198 = scmp.lt.s32.totalorder %s195, 15
      %s199 = scalar_select %p198, %s195, 15
      %s200 = smul.addr %s199, 2
      %s201 = smul.addr %s197, 32
      %s202 = sadd.s32 %s200, %s201
      %s203 = smul.addr %s202, 8
      %s204 = scalar_lea.vmem %s0, %s203
      %p205 = pneg %p51
      %p206 = pneg %p48
      %p207 = pneg %p72
      %p208 = pneg %p69
      %p209 = pneg %p93
      %p210 = pneg %p90
      %p211 = pneg %p121
      %p212 = pneg %p118
      %s213 = smul.u32 16, %s21
      %p214 = scmp.lt.s32.totalorder %s20, 1
      %s215 = scalar_select %p214, %s20, 1
      %p216 = scmp.lt.s32.totalorder %s213, 15
      %s217 = scalar_select %p216, %s213, 15
      %s218 = smul.addr %s217, 2
      %s219 = smul.addr %s215, 32
      %s220 = sadd.s32 %s218, %s219
      %s221 = smul.addr %s220, 8
      %s222 = scalar_lea.vmem %s3, %s221
      %p223 = pneg %p149
      %p224 = pneg %p146
      %s225 = smul.u32 8, %s21
      %p226 = scmp.lt.s32.totalorder %s20, 1
      %s227 = scalar_select %p226, %s20, 1
      %p228 = scmp.lt.s32.totalorder %s225, 7
      %s229 = scalar_select %p228, %s225, 7
      %s230 = smul.addr %s227, 8
      %s231 = sadd.s32 %s229, %s230
      %s232 = smul.addr %s231, 8
      %s233 = scalar_lea.vmem %s4, %s232
      %s234 = smul.u32 16, %s21
      %p235 = scmp.lt.s32.totalorder %s20, 1
      %s236 = scalar_select %p235, %s20, 1
      %p237 = scmp.lt.s32.totalorder %s234, 15
      %s238 = scalar_select %p237, %s234, 15
      %s239 = smul.addr %s238, 2
      %s240 = smul.addr %s236, 32
      %s241 = sadd.s32 %s239, %s240
      %s242 = smul.addr %s241, 8
      %s243 = scalar_lea.vmem %s0, %s242
      %s244 = smul.u32 16, %s21
      %s245 = smul.u32 16, %s21
      %p246 = scmp.lt.s32.totalorder %s20, 1
      %s247 = scalar_select %p246, %s20, 1
      %p248 = scmp.lt.s32.totalorder %s245, 15
      %s249 = scalar_select %p248, %s245, 15
      %s250 = smul.addr %s249, 2
      %s251 = smul.addr %s247, 32
      %s252 = sadd.s32 %s250, %s251
      %s253 = smul.addr %s252, 8
      %s254 = scalar_lea.vmem %s3, %s253
      %s255 = smul.u32 16, %s21
      %s256 = smul.u32 8, %s21
      %p257 = scmp.lt.s32.totalorder %s20, 1
      %s258 = scalar_select %p257, %s20, 1
      %p259 = scmp.lt.s32.totalorder %s256, 7
      %s260 = scalar_select %p259, %s256, 7
      %s261 = smul.addr %s258, 8
      %s262 = sadd.s32 %s260, %s261
      %s263 = smul.addr %s262, 8
      %s264 = scalar_lea.vmem %s4, %s263
      %s265 = smul.u32 8, %s21
      %v266 = vld [vmem:[%s1] sm:$0x1]
      %v267 = vld [vmem:[%s2] sm:$0x1]
      %v268 = vld [vmem:[%s243] sm:$0xff]
      %v269 = vld [vmem:[%s243 + $0x8] sm:$0xff]
      %v270 = vld [vmem:[%s243 + $0x10] sm:$0xff]
      %v271 = vld [vmem:[%s243 + $0x18] sm:$0xff]
      %v272 = vld [vmem:[%s243 + $0x20] sm:$0xff]
      %v273 = vld [vmem:[%s243 + $0x28] sm:$0xff]
      %v274 = vld [vmem:[%s243 + $0x30] sm:$0xff]
      %v275 = vld [vmem:[%s243 + $0x38] sm:$0xff]
      %v276 = vld [vmem:[%s243 + $0x40] sm:$0xff]
      %v277 = vld [vmem:[%s243 + $0x48] sm:$0xff]
      %v278 = vld [vmem:[%s243 + $0x50] sm:$0xff]
      %v279 = vld [vmem:[%s243 + $0x58] sm:$0xff]
      %v280 = vld [vmem:[%s243 + $0x60] sm:$0xff]
      %v281 = vld [vmem:[%s243 + $0x68] sm:$0xff]
      %v282 = vld [vmem:[%s243 + $0x70] sm:$0xff]
      %v283 = vld [vmem:[%s243 + $0x78] sm:$0xff]
      %v284 = vld [vmem:[%s243 + $0x80] sm:$0xff]
      %v285 = vld [vmem:[%s243 + $0x88] sm:$0xff]
      %v286 = vld [vmem:[%s243 + $0x90] sm:$0xff]
      %v287 = vld [vmem:[%s243 + $0x98] sm:$0xff]
      %v288 = vld [vmem:[%s243 + $0xa0] sm:$0xff]
      %v289 = vld [vmem:[%s243 + $0xa8] sm:$0xff]
      %v290 = vld [vmem:[%s243 + $0xb0] sm:$0xff]
      %v291 = vld [vmem:[%s243 + $0xb8] sm:$0xff]
      %v292 = vld [vmem:[%s243 + $0xc0] sm:$0xff]
      %v293 = vld [vmem:[%s243 + $0xc8] sm:$0xff]
      %v294 = vld [vmem:[%s243 + $0xd0] sm:$0xff]
      %v295 = vld [vmem:[%s243 + $0xd8] sm:$0xff]
      %v296 = vld [vmem:[%s243 + $0xe0] sm:$0xff]
      %v297 = vld [vmem:[%s243 + $0xe8] sm:$0xff]
      %v298 = vld [vmem:[%s243 + $0xf0] sm:$0xff]
      %v299 = vld [vmem:[%s243 + $0xf8] sm:$0xff]
      %v301 = vperm.slane %v266, 0
      %v303 = vmul.f32 %v268, %v301
      %v304 = vmul.f32 %v269, %v301
      %v305 = vmul.f32 %v270, %v301
      %v306 = vmul.f32 %v271, %v301
      %v307 = vmul.f32 %v272, %v301
      %v308 = vmul.f32 %v273, %v301
      %v309 = vmul.f32 %v274, %v301
      %v310 = vmul.f32 %v275, %v301
      %v311 = vmul.f32 %v276, %v301
      %v312 = vmul.f32 %v277, %v301
      %v313 = vmul.f32 %v278, %v301
      %v314 = vmul.f32 %v279, %v301
      %v315 = vmul.f32 %v280, %v301
      %v316 = vmul.f32 %v281, %v301
      %v317 = vmul.f32 %v282, %v301
      %v318 = vmul.f32 %v283, %v301
      %v319 = vmul.f32 %v284, %v301
      %v320 = vmul.f32 %v285, %v301
      %v321 = vmul.f32 %v286, %v301
      %v322 = vmul.f32 %v287, %v301
      %v323 = vmul.f32 %v288, %v301
      %v324 = vmul.f32 %v289, %v301
      %v325 = vmul.f32 %v290, %v301
      %v326 = vmul.f32 %v291, %v301
      %v327 = vmul.f32 %v292, %v301
      %v328 = vmul.f32 %v293, %v301
      %v329 = vmul.f32 %v294, %v301
      %v330 = vmul.f32 %v295, %v301
      %v331 = vmul.f32 %v296, %v301
      %v332 = vmul.f32 %v297, %v301
      %v333 = vmul.f32 %v298, %v301
      %v334 = vmul.f32 %v299, %v301
      %v336 = vperm.slane %v267, 0
      %v338 = vadd.f32 %v303, %v336
      %v339 = vadd.f32 %v304, %v336
      %v340 = vadd.f32 %v305, %v336
      %v341 = vadd.f32 %v306, %v336
      %v342 = vadd.f32 %v307, %v336
      %v343 = vadd.f32 %v308, %v336
      %v344 = vadd.f32 %v309, %v336
      %v345 = vadd.f32 %v310, %v336
      %v346 = vadd.f32 %v311, %v336
      %v347 = vadd.f32 %v312, %v336
      %v348 = vadd.f32 %v313, %v336
      %v349 = vadd.f32 %v314, %v336
      %v350 = vadd.f32 %v315, %v336
      %v351 = vadd.f32 %v316, %v336
      %v352 = vadd.f32 %v317, %v336
      %v353 = vadd.f32 %v318, %v336
      %v354 = vadd.f32 %v319, %v336
      %v355 = vadd.f32 %v320, %v336
      %v356 = vadd.f32 %v321, %v336
      %v357 = vadd.f32 %v322, %v336
      %v358 = vadd.f32 %v323, %v336
      %v359 = vadd.f32 %v324, %v336
      %v360 = vadd.f32 %v325, %v336
      %v361 = vadd.f32 %v326, %v336
      %v362 = vadd.f32 %v327, %v336
      %v363 = vadd.f32 %v328, %v336
      %v364 = vadd.f32 %v329, %v336
      %v365 = vadd.f32 %v330, %v336
      %v366 = vadd.f32 %v331, %v336
      %v367 = vadd.f32 %v332, %v336
      %v368 = vadd.f32 %v333, %v336
      %v369 = vadd.f32 %v334, %v336
      %v370 = vmax.f32 %v338, 0.0
      %v371 = vmax.f32 %v339, 0.0
      %v372 = vmax.f32 %v340, 0.0
      %v373 = vmax.f32 %v341, 0.0
      %v374 = vmax.f32 %v342, 0.0
      %v375 = vmax.f32 %v343, 0.0
      %v376 = vmax.f32 %v344, 0.0
      %v377 = vmax.f32 %v345, 0.0
      %v378 = vmax.f32 %v346, 0.0
      %v379 = vmax.f32 %v347, 0.0
      %v380 = vmax.f32 %v348, 0.0
      %v381 = vmax.f32 %v349, 0.0
      %v382 = vmax.f32 %v350, 0.0
      %v383 = vmax.f32 %v351, 0.0
      %v384 = vmax.f32 %v352, 0.0
      %v385 = vmax.f32 %v353, 0.0
      %v386 = vmax.f32 %v354, 0.0
      %v387 = vmax.f32 %v355, 0.0
      %v388 = vmax.f32 %v356, 0.0
      %v389 = vmax.f32 %v357, 0.0
      %v390 = vmax.f32 %v358, 0.0
      %v391 = vmax.f32 %v359, 0.0
      %v392 = vmax.f32 %v360, 0.0
      %v393 = vmax.f32 %v361, 0.0
      %v394 = vmax.f32 %v362, 0.0
      %v395 = vmax.f32 %v363, 0.0
      %v396 = vmax.f32 %v364, 0.0
      %v397 = vmax.f32 %v365, 0.0
      %v398 = vmax.f32 %v366, 0.0
      %v399 = vmax.f32 %v367, 0.0
      %v400 = vmax.f32 %v368, 0.0
      %v401 = vmax.f32 %v369, 0.0
      %402 = vst [vmem:[%s254] sm:$0xff] %v370
      %403 = vst [vmem:[%s254 + $0x8] sm:$0xff] %v371
      %404 = vst [vmem:[%s254 + $0x10] sm:$0xff] %v372
      %405 = vst [vmem:[%s254 + $0x18] sm:$0xff] %v373
      %406 = vst [vmem:[%s254 + $0x20] sm:$0xff] %v374
      %407 = vst [vmem:[%s254 + $0x28] sm:$0xff] %v375
      %408 = vst [vmem:[%s254 + $0x30] sm:$0xff] %v376
      %409 = vst [vmem:[%s254 + $0x38] sm:$0xff] %v377
      %410 = vst [vmem:[%s254 + $0x40] sm:$0xff] %v378
      %411 = vst [vmem:[%s254 + $0x48] sm:$0xff] %v379
      %412 = vst [vmem:[%s254 + $0x50] sm:$0xff] %v380
      %413 = vst [vmem:[%s254 + $0x58] sm:$0xff] %v381
      %414 = vst [vmem:[%s254 + $0x60] sm:$0xff] %v382
      %415 = vst [vmem:[%s254 + $0x68] sm:$0xff] %v383
      %416 = vst [vmem:[%s254 + $0x70] sm:$0xff] %v384
      %417 = vst [vmem:[%s254 + $0x78] sm:$0xff] %v385
      %418 = vst [vmem:[%s254 + $0x80] sm:$0xff] %v386
      %419 = vst [vmem:[%s254 + $0x88] sm:$0xff] %v387
      %420 = vst [vmem:[%s254 + $0x90] sm:$0xff] %v388
      %421 = vst [vmem:[%s254 + $0x98] sm:$0xff] %v389
      %422 = vst [vmem:[%s254 + $0xa0] sm:$0xff] %v390
      %423 = vst [vmem:[%s254 + $0xa8] sm:$0xff] %v391
      %424 = vst [vmem:[%s254 + $0xb0] sm:$0xff] %v392
      %425 = vst [vmem:[%s254 + $0xb8] sm:$0xff] %v393
      %426 = vst [vmem:[%s254 + $0xc0] sm:$0xff] %v394
      %427 = vst [vmem:[%s254 + $0xc8] sm:$0xff] %v395
      %428 = vst [vmem:[%s254 + $0xd0] sm:$0xff] %v396
      %429 = vst [vmem:[%s254 + $0xd8] sm:$0xff] %v397
      %430 = vst [vmem:[%s254 + $0xe0] sm:$0xff] %v398
      %431 = vst [vmem:[%s254 + $0xe8] sm:$0xff] %v399
      %432 = vst [vmem:[%s254 + $0xf0] sm:$0xff] %v400
      %433 = vst [vmem:[%s254 + $0xf8] sm:$0xff] %v401
      %v466 = vrot.slane %v370, 2
      %v467 = vrot.slane %v370, 4
      %v468 = vrot.slane %v370, 6
      %v469 = vrot.slane %v371, 2
      %v470 = vrot.slane %v371, 4
      %v471 = vrot.slane %v371, 6
      %v472 = vrot.slane %v372, 2
      %v473 = vrot.slane %v372, 4
      %v474 = vrot.slane %v372, 6
      %v475 = vrot.slane %v373, 2
      %v476 = vrot.slane %v373, 4
      %v477 = vrot.slane %v373, 6
      %v478 = vrot.slane %v374, 2
      %v479 = vrot.slane %v374, 4
      %v480 = vrot.slane %v374, 6
      %v481 = vrot.slane %v375, 2
      %v482 = vrot.slane %v375, 4
      %v483 = vrot.slane %v375, 6
      %v484 = vrot.slane %v376, 2
      %v485 = vrot.slane %v376, 4
      %v486 = vrot.slane %v376, 6
      %v487 = vrot.slane %v377, 2
      %v488 = vrot.slane %v377, 4
      %v489 = vrot.slane %v377, 6
      %v490 = vrot.slane %v378, 2
      %v491 = vrot.slane %v378, 4
      %v492 = vrot.slane %v378, 6
      %v493 = vrot.slane %v379, 2
      %v494 = vrot.slane %v379, 4
      %v495 = vrot.slane %v379, 6
      %v496 = vrot.slane %v380, 2
      %v497 = vrot.slane %v380, 4
      %v498 = vrot.slane %v380, 6
      %v499 = vrot.slane %v381, 2
      %v500 = vrot.slane %v381, 4
      %v501 = vrot.slane %v381, 6
      %v502 = vrot.slane %v382, 2
      %v503 = vrot.slane %v382, 4
      %v504 = vrot.slane %v382, 6
      %v505 = vrot.slane %v383, 2
      %v506 = vrot.slane %v383, 4
      %v507 = vrot.slane %v383, 6
      %v508 = vrot.slane %v384, 2
      %v509 = vrot.slane %v384, 4
      %v510 = vrot.slane %v384, 6
      %v511 = vrot.slane %v385, 2
      %v512 = vrot.slane %v385, 4
      %v513 = vrot.slane %v385, 6
      %v514 = vrot.slane %v386, 2
      %v515 = vrot.slane %v386, 4
      %v516 = vrot.slane %v386, 6
      %v517 = vrot.slane %v387, 2
      %v518 = vrot.slane %v387, 4
      %v519 = vrot.slane %v387, 6
      %v520 = vrot.slane %v388, 2
      %v521 = vrot.slane %v388, 4
      %v522 = vrot.slane %v388, 6
      %v523 = vrot.slane %v389, 2
      %v524 = vrot.slane %v389, 4
      %v525 = vrot.slane %v389, 6
      %v526 = vrot.slane %v390, 2
      %v527 = vrot.slane %v390, 4
      %v528 = vrot.slane %v390, 6
      %v529 = vrot.slane %v391, 2
      %v530 = vrot.slane %v391, 4
      %v531 = vrot.slane %v391, 6
      %v532 = vrot.slane %v392, 2
      %v533 = vrot.slane %v392, 4
      %v534 = vrot.slane %v392, 6
      %v535 = vrot.slane %v393, 2
      %v536 = vrot.slane %v393, 4
      %v537 = vrot.slane %v393, 6
      %v538 = vrot.slane %v394, 2
      %v539 = vrot.slane %v394, 4
      %v540 = vrot.slane %v394, 6
      %v541 = vrot.slane %v395, 2
      %v542 = vrot.slane %v395, 4
      %v543 = vrot.slane %v395, 6
      %v544 = vrot.slane %v396, 2
      %v545 = vrot.slane %v396, 4
      %v546 = vrot.slane %v396, 6
      %v547 = vrot.slane %v397, 2
      %v548 = vrot.slane %v397, 4
      %v549 = vrot.slane %v397, 6
      %v550 = vrot.slane %v398, 2
      %v551 = vrot.slane %v398, 4
      %v552 = vrot.slane %v398, 6
      %v553 = vrot.slane %v399, 2
      %v554 = vrot.slane %v399, 4
      %v555 = vrot.slane %v399, 6
      %v556 = vrot.slane %v400, 2
      %v557 = vrot.slane %v400, 4
      %v558 = vrot.slane %v400, 6
      %v559 = vrot.slane %v401, 2
      %v560 = vrot.slane %v401, 4
      %v561 = vrot.slane %v401, 6
      %vm658 = vcmask 1041408
      %v659 = vsel %vm658, %v370, -inf
      %v660 = vrot.slane %v659, 4
      %v661 = vmax.f32 %v659, %v660
      %v662 = vrot.slane %v661, 2
      %v663 = vmax.f32 %v661, %v662
      %v664 = vrot.slane %v663, 1
      %v665 = vmax.f32 %v663, %v664
      %v666 = vsel %vm658, %v466, -inf
      %v667 = vrot.slane %v666, 4
      %v668 = vmax.f32 %v666, %v667
      %v669 = vrot.slane %v668, 2
      %v670 = vmax.f32 %v668, %v669
      %v671 = vrot.slane %v670, 1
      %v672 = vmax.f32 %v670, %v671
      %v673 = vsel %vm658, %v467, -inf
      %v674 = vrot.slane %v673, 4
      %v675 = vmax.f32 %v673, %v674
      %v676 = vrot.slane %v675, 2
      %v677 = vmax.f32 %v675, %v676
      %v678 = vrot.slane %v677, 1
      %v679 = vmax.f32 %v677, %v678
      %v680 = vsel %vm658, %v468, -inf
      %v681 = vrot.slane %v680, 4
      %v682 = vmax.f32 %v680, %v681
      %v683 = vrot.slane %v682, 2
      %v684 = vmax.f32 %v682, %v683
      %v685 = vrot.slane %v684, 1
      %v686 = vmax.f32 %v684, %v685
      %v687 = vsel %vm658, %v371, -inf
      %v688 = vrot.slane %v687, 4
      %v689 = vmax.f32 %v687, %v688
      %v690 = vrot.slane %v689, 2
      %v691 = vmax.f32 %v689, %v690
      %v692 = vrot.slane %v691, 1
      %v693 = vmax.f32 %v691, %v692
      %v694 = vsel %vm658, %v469, -inf
      %v695 = vrot.slane %v694, 4
      %v696 = vmax.f32 %v694, %v695
      %v697 = vrot.slane %v696, 2
      %v698 = vmax.f32 %v696, %v697
      %v699 = vrot.slane %v698, 1
      %v700 = vmax.f32 %v698, %v699
      %v701 = vsel %vm658, %v470, -inf
      %v702 = vrot.slane %v701, 4
      %v703 = vmax.f32 %v701, %v702
      %v704 = vrot.slane %v703, 2
      %v705 = vmax.f32 %v703, %v704
      %v706 = vrot.slane %v705, 1
      %v707 = vmax.f32 %v705, %v706
      %v708 = vsel %vm658, %v471, -inf
      %v709 = vrot.slane %v708, 4
      %v710 = vmax.f32 %v708, %v709
      %v711 = vrot.slane %v710, 2
      %v712 = vmax.f32 %v710, %v711
      %v713 = vrot.slane %v712, 1
      %v714 = vmax.f32 %v712, %v713
      %v715 = vsel %vm658, %v372, -inf
      %v716 = vrot.slane %v715, 4
      %v717 = vmax.f32 %v715, %v716
      %v718 = vrot.slane %v717, 2
      %v719 = vmax.f32 %v717, %v718
      %v720 = vrot.slane %v719, 1
      %v721 = vmax.f32 %v719, %v720
      %v722 = vsel %vm658, %v472, -inf
      %v723 = vrot.slane %v722, 4
      %v724 = vmax.f32 %v722, %v723
      %v725 = vrot.slane %v724, 2
      %v726 = vmax.f32 %v724, %v725
      %v727 = vrot.slane %v726, 1
      %v728 = vmax.f32 %v726, %v727
      %v729 = vsel %vm658, %v473, -inf
      %v730 = vrot.slane %v729, 4
      %v731 = vmax.f32 %v729, %v730
      %v732 = vrot.slane %v731, 2
      %v733 = vmax.f32 %v731, %v732
      %v734 = vrot.slane %v733, 1
      %v735 = vmax.f32 %v733, %v734
      %v736 = vsel %vm658, %v474, -inf
      %v737 = vrot.slane %v736, 4
      %v738 = vmax.f32 %v736, %v737
      %v739 = vrot.slane %v738, 2
      %v740 = vmax.f32 %v738, %v739
      %v741 = vrot.slane %v740, 1
      %v742 = vmax.f32 %v740, %v741
      %v743 = vsel %vm658, %v373, -inf
      %v744 = vrot.slane %v743, 4
      %v745 = vmax.f32 %v743, %v744
      %v746 = vrot.slane %v745, 2
      %v747 = vmax.f32 %v745, %v746
      %v748 = vrot.slane %v747, 1
      %v749 = vmax.f32 %v747, %v748
      %v750 = vsel %vm658, %v475, -inf
      %v751 = vrot.slane %v750, 4
      %v752 = vmax.f32 %v750, %v751
      %v753 = vrot.slane %v752, 2
      %v754 = vmax.f32 %v752, %v753
      %v755 = vrot.slane %v754, 1
      %v756 = vmax.f32 %v754, %v755
      %v757 = vsel %vm658, %v476, -inf
      %v758 = vrot.slane %v757, 4
      %v759 = vmax.f32 %v757, %v758
      %v760 = vrot.slane %v759, 2
      %v761 = vmax.f32 %v759, %v760
      %v762 = vrot.slane %v761, 1
      %v763 = vmax.f32 %v761, %v762
      %v764 = vsel %vm658, %v477, -inf
      %v765 = vrot.slane %v764, 4
      %v766 = vmax.f32 %v764, %v765
      %v767 = vrot.slane %v766, 2
      %v768 = vmax.f32 %v766, %v767
      %v769 = vrot.slane %v768, 1
      %v770 = vmax.f32 %v768, %v769
      %v771 = vsel %vm658, %v374, -inf
      %v772 = vrot.slane %v771, 4
      %v773 = vmax.f32 %v771, %v772
      %v774 = vrot.slane %v773, 2
      %v775 = vmax.f32 %v773, %v774
      %v776 = vrot.slane %v775, 1
      %v777 = vmax.f32 %v775, %v776
      %v778 = vsel %vm658, %v478, -inf
      %v779 = vrot.slane %v778, 4
      %v780 = vmax.f32 %v778, %v779
      %v781 = vrot.slane %v780, 2
      %v782 = vmax.f32 %v780, %v781
      %v783 = vrot.slane %v782, 1
      %v784 = vmax.f32 %v782, %v783
      %v785 = vsel %vm658, %v479, -inf
      %v786 = vrot.slane %v785, 4
      %v787 = vmax.f32 %v785, %v786
      %v788 = vrot.slane %v787, 2
      %v789 = vmax.f32 %v787, %v788
      %v790 = vrot.slane %v789, 1
      %v791 = vmax.f32 %v789, %v790
      %v792 = vsel %vm658, %v480, -inf
      %v793 = vrot.slane %v792, 4
      %v794 = vmax.f32 %v792, %v793
      %v795 = vrot.slane %v794, 2
      %v796 = vmax.f32 %v794, %v795
      %v797 = vrot.slane %v796, 1
      %v798 = vmax.f32 %v796, %v797
      %v799 = vsel %vm658, %v375, -inf
      %v800 = vrot.slane %v799, 4
      %v801 = vmax.f32 %v799, %v800
      %v802 = vrot.slane %v801, 2
      %v803 = vmax.f32 %v801, %v802
      %v804 = vrot.slane %v803, 1
      %v805 = vmax.f32 %v803, %v804
      %v806 = vsel %vm658, %v481, -inf
      %v807 = vrot.slane %v806, 4
      %v808 = vmax.f32 %v806, %v807
      %v809 = vrot.slane %v808, 2
      %v810 = vmax.f32 %v808, %v809
      %v811 = vrot.slane %v810, 1
      %v812 = vmax.f32 %v810, %v811
      %v813 = vsel %vm658, %v482, -inf
      %v814 = vrot.slane %v813, 4
      %v815 = vmax.f32 %v813, %v814
      %v816 = vrot.slane %v815, 2
      %v817 = vmax.f32 %v815, %v816
      %v818 = vrot.slane %v817, 1
      %v819 = vmax.f32 %v817, %v818
      %v820 = vsel %vm658, %v483, -inf
      %v821 = vrot.slane %v820, 4
      %v822 = vmax.f32 %v820, %v821
      %v823 = vrot.slane %v822, 2
      %v824 = vmax.f32 %v822, %v823
      %v825 = vrot.slane %v824, 1
      %v826 = vmax.f32 %v824, %v825
      %v827 = vsel %vm658, %v376, -inf
      %v828 = vrot.slane %v827, 4
      %v829 = vmax.f32 %v827, %v828
      %v830 = vrot.slane %v829, 2
      %v831 = vmax.f32 %v829, %v830
      %v832 = vrot.slane %v831, 1
      %v833 = vmax.f32 %v831, %v832
      %v834 = vsel %vm658, %v484, -inf
      %v835 = vrot.slane %v834, 4
      %v836 = vmax.f32 %v834, %v835
      %v837 = vrot.slane %v836, 2
      %v838 = vmax.f32 %v836, %v837
      %v839 = vrot.slane %v838, 1
      %v840 = vmax.f32 %v838, %v839
      %v841 = vsel %vm658, %v485, -inf
      %v842 = vrot.slane %v841, 4
      %v843 = vmax.f32 %v841, %v842
      %v844 = vrot.slane %v843, 2
      %v845 = vmax.f32 %v843, %v844
      %v846 = vrot.slane %v845, 1
      %v847 = vmax.f32 %v845, %v846
      %v848 = vsel %vm658, %v486, -inf
      %v849 = vrot.slane %v848, 4
      %v850 = vmax.f32 %v848, %v849
      %v851 = vrot.slane %v850, 2
      %v852 = vmax.f32 %v850, %v851
      %v853 = vrot.slane %v852, 1
      %v854 = vmax.f32 %v852, %v853
      %v855 = vsel %vm658, %v377, -inf
      %v856 = vrot.slane %v855, 4
      %v857 = vmax.f32 %v855, %v856
      %v858 = vrot.slane %v857, 2
      %v859 = vmax.f32 %v857, %v858
      %v860 = vrot.slane %v859, 1
      %v861 = vmax.f32 %v859, %v860
      %v862 = vsel %vm658, %v487, -inf
      %v863 = vrot.slane %v862, 4
      %v864 = vmax.f32 %v862, %v863
      %v865 = vrot.slane %v864, 2
      %v866 = vmax.f32 %v864, %v865
      %v867 = vrot.slane %v866, 1
      %v868 = vmax.f32 %v866, %v867
      %v869 = vsel %vm658, %v488, -inf
      %v870 = vrot.slane %v869, 4
      %v871 = vmax.f32 %v869, %v870
      %v872 = vrot.slane %v871, 2
      %v873 = vmax.f32 %v871, %v872
      %v874 = vrot.slane %v873, 1
      %v875 = vmax.f32 %v873, %v874
      %v876 = vsel %vm658, %v489, -inf
      %v877 = vrot.slane %v876, 4
      %v878 = vmax.f32 %v876, %v877
      %v879 = vrot.slane %v878, 2
      %v880 = vmax.f32 %v878, %v879
      %v881 = vrot.slane %v880, 1
      %v882 = vmax.f32 %v880, %v881
      %v883 = vsel %vm658, %v378, -inf
      %v884 = vrot.slane %v883, 4
      %v885 = vmax.f32 %v883, %v884
      %v886 = vrot.slane %v885, 2
      %v887 = vmax.f32 %v885, %v886
      %v888 = vrot.slane %v887, 1
      %v889 = vmax.f32 %v887, %v888
      %v890 = vsel %vm658, %v490, -inf
      %v891 = vrot.slane %v890, 4
      %v892 = vmax.f32 %v890, %v891
      %v893 = vrot.slane %v892, 2
      %v894 = vmax.f32 %v892, %v893
      %v895 = vrot.slane %v894, 1
      %v896 = vmax.f32 %v894, %v895
      %v897 = vsel %vm658, %v491, -inf
      %v898 = vrot.slane %v897, 4
      %v899 = vmax.f32 %v897, %v898
      %v900 = vrot.slane %v899, 2
      %v901 = vmax.f32 %v899, %v900
      %v902 = vrot.slane %v901, 1
      %v903 = vmax.f32 %v901, %v902
      %v904 = vsel %vm658, %v492, -inf
      %v905 = vrot.slane %v904, 4
      %v906 = vmax.f32 %v904, %v905
      %v907 = vrot.slane %v906, 2
      %v908 = vmax.f32 %v906, %v907
      %v909 = vrot.slane %v908, 1
      %v910 = vmax.f32 %v908, %v909
      %v911 = vsel %vm658, %v379, -inf
      %v912 = vrot.slane %v911, 4
      %v913 = vmax.f32 %v911, %v912
      %v914 = vrot.slane %v913, 2
      %v915 = vmax.f32 %v913, %v914
      %v916 = vrot.slane %v915, 1
      %v917 = vmax.f32 %v915, %v916
      %v918 = vsel %vm658, %v493, -inf
      %v919 = vrot.slane %v918, 4
      %v920 = vmax.f32 %v918, %v919
      %v921 = vrot.slane %v920, 2
      %v922 = vmax.f32 %v920, %v921
      %v923 = vrot.slane %v922, 1
      %v924 = vmax.f32 %v922, %v923
      %v925 = vsel %vm658, %v494, -inf
      %v926 = vrot.slane %v925, 4
      %v927 = vmax.f32 %v925, %v926
      %v928 = vrot.slane %v927, 2
      %v929 = vmax.f32 %v927, %v928
      %v930 = vrot.slane %v929, 1
      %v931 = vmax.f32 %v929, %v930
      %v932 = vsel %vm658, %v495, -inf
      %v933 = vrot.slane %v932, 4
      %v934 = vmax.f32 %v932, %v933
      %v935 = vrot.slane %v934, 2
      %v936 = vmax.f32 %v934, %v935
      %v937 = vrot.slane %v936, 1
      %v938 = vmax.f32 %v936, %v937
      %v939 = vsel %vm658, %v380, -inf
      %v940 = vrot.slane %v939, 4
      %v941 = vmax.f32 %v939, %v940
      %v942 = vrot.slane %v941, 2
      %v943 = vmax.f32 %v941, %v942
      %v944 = vrot.slane %v943, 1
      %v945 = vmax.f32 %v943, %v944
      %v946 = vsel %vm658, %v496, -inf
      %v947 = vrot.slane %v946, 4
      %v948 = vmax.f32 %v946, %v947
      %v949 = vrot.slane %v948, 2
      %v950 = vmax.f32 %v948, %v949
      %v951 = vrot.slane %v950, 1
      %v952 = vmax.f32 %v950, %v951
      %v953 = vsel %vm658, %v497, -inf
      %v954 = vrot.slane %v953, 4
      %v955 = vmax.f32 %v953, %v954
      %v956 = vrot.slane %v955, 2
      %v957 = vmax.f32 %v955, %v956
      %v958 = vrot.slane %v957, 1
      %v959 = vmax.f32 %v957, %v958
      %v960 = vsel %vm658, %v498, -inf
      %v961 = vrot.slane %v960, 4
      %v962 = vmax.f32 %v960, %v961
      %v963 = vrot.slane %v962, 2
      %v964 = vmax.f32 %v962, %v963
      %v965 = vrot.slane %v964, 1
      %v966 = vmax.f32 %v964, %v965
      %v967 = vsel %vm658, %v381, -inf
      %v968 = vrot.slane %v967, 4
      %v969 = vmax.f32 %v967, %v968
      %v970 = vrot.slane %v969, 2
      %v971 = vmax.f32 %v969, %v970
      %v972 = vrot.slane %v971, 1
      %v973 = vmax.f32 %v971, %v972
      %v974 = vsel %vm658, %v499, -inf
      %v975 = vrot.slane %v974, 4
      %v976 = vmax.f32 %v974, %v975
      %v977 = vrot.slane %v976, 2
      %v978 = vmax.f32 %v976, %v977
      %v979 = vrot.slane %v978, 1
      %v980 = vmax.f32 %v978, %v979
      %v981 = vsel %vm658, %v500, -inf
      %v982 = vrot.slane %v981, 4
      %v983 = vmax.f32 %v981, %v982
      %v984 = vrot.slane %v983, 2
      %v985 = vmax.f32 %v983, %v984
      %v986 = vrot.slane %v985, 1
      %v987 = vmax.f32 %v985, %v986
      %v988 = vsel %vm658, %v501, -inf
      %v989 = vrot.slane %v988, 4
      %v990 = vmax.f32 %v988, %v989
      %v991 = vrot.slane %v990, 2
      %v992 = vmax.f32 %v990, %v991
      %v993 = vrot.slane %v992, 1
      %v994 = vmax.f32 %v992, %v993
      %v995 = vsel %vm658, %v382, -inf
      %v996 = vrot.slane %v995, 4
      %v997 = vmax.f32 %v995, %v996
      %v998 = vrot.slane %v997, 2
      %v999 = vmax.f32 %v997, %v998
      %v1000 = vrot.slane %v999, 1
      %v1001 = vmax.f32 %v999, %v1000
      %v1002 = vsel %vm658, %v502, -inf
      %v1003 = vrot.slane %v1002, 4
      %v1004 = vmax.f32 %v1002, %v1003
      %v1005 = vrot.slane %v1004, 2
      %v1006 = vmax.f32 %v1004, %v1005
      %v1007 = vrot.slane %v1006, 1
      %v1008 = vmax.f32 %v1006, %v1007
      %v1009 = vsel %vm658, %v503, -inf
      %v1010 = vrot.slane %v1009, 4
      %v1011 = vmax.f32 %v1009, %v1010
      %v1012 = vrot.slane %v1011, 2
      %v1013 = vmax.f32 %v1011, %v1012
      %v1014 = vrot.slane %v1013, 1
      %v1015 = vmax.f32 %v1013, %v1014
      %v1016 = vsel %vm658, %v504, -inf
      %v1017 = vrot.slane %v1016, 4
      %v1018 = vmax.f32 %v1016, %v1017
      %v1019 = vrot.slane %v1018, 2
      %v1020 = vmax.f32 %v1018, %v1019
      %v1021 = vrot.slane %v1020, 1
      %v1022 = vmax.f32 %v1020, %v1021
      %v1023 = vsel %vm658, %v383, -inf
      %v1024 = vrot.slane %v1023, 4
      %v1025 = vmax.f32 %v1023, %v1024
      %v1026 = vrot.slane %v1025, 2
      %v1027 = vmax.f32 %v1025, %v1026
      %v1028 = vrot.slane %v1027, 1
      %v1029 = vmax.f32 %v1027, %v1028
      %v1030 = vsel %vm658, %v505, -inf
      %v1031 = vrot.slane %v1030, 4
      %v1032 = vmax.f32 %v1030, %v1031
      %v1033 = vrot.slane %v1032, 2
      %v1034 = vmax.f32 %v1032, %v1033
      %v1035 = vrot.slane %v1034, 1
      %v1036 = vmax.f32 %v1034, %v1035
      %v1037 = vsel %vm658, %v506, -inf
      %v1038 = vrot.slane %v1037, 4
      %v1039 = vmax.f32 %v1037, %v1038
      %v1040 = vrot.slane %v1039, 2
      %v1041 = vmax.f32 %v1039, %v1040
      %v1042 = vrot.slane %v1041, 1
      %v1043 = vmax.f32 %v1041, %v1042
      %v1044 = vsel %vm658, %v507, -inf
      %v1045 = vrot.slane %v1044, 4
      %v1046 = vmax.f32 %v1044, %v1045
      %v1047 = vrot.slane %v1046, 2
      %v1048 = vmax.f32 %v1046, %v1047
      %v1049 = vrot.slane %v1048, 1
      %v1050 = vmax.f32 %v1048, %v1049
      %v1051 = vsel %vm658, %v384, -inf
      %v1052 = vrot.slane %v1051, 4
      %v1053 = vmax.f32 %v1051, %v1052
      %v1054 = vrot.slane %v1053, 2
      %v1055 = vmax.f32 %v1053, %v1054
      %v1056 = vrot.slane %v1055, 1
      %v1057 = vmax.f32 %v1055, %v1056
      %v1058 = vsel %vm658, %v508, -inf
      %v1059 = vrot.slane %v1058, 4
      %v1060 = vmax.f32 %v1058, %v1059
      %v1061 = vrot.slane %v1060, 2
      %v1062 = vmax.f32 %v1060, %v1061
      %v1063 = vrot.slane %v1062, 1
      %v1064 = vmax.f32 %v1062, %v1063
      %v1065 = vsel %vm658, %v509, -inf
      %v1066 = vrot.slane %v1065, 4
      %v1067 = vmax.f32 %v1065, %v1066
      %v1068 = vrot.slane %v1067, 2
      %v1069 = vmax.f32 %v1067, %v1068
      %v1070 = vrot.slane %v1069, 1
      %v1071 = vmax.f32 %v1069, %v1070
      %v1072 = vsel %vm658, %v510, -inf
      %v1073 = vrot.slane %v1072, 4
      %v1074 = vmax.f32 %v1072, %v1073
      %v1075 = vrot.slane %v1074, 2
      %v1076 = vmax.f32 %v1074, %v1075
      %v1077 = vrot.slane %v1076, 1
      %v1078 = vmax.f32 %v1076, %v1077
      %v1079 = vsel %vm658, %v385, -inf
      %v1080 = vrot.slane %v1079, 4
      %v1081 = vmax.f32 %v1079, %v1080
      %v1082 = vrot.slane %v1081, 2
      %v1083 = vmax.f32 %v1081, %v1082
      %v1084 = vrot.slane %v1083, 1
      %v1085 = vmax.f32 %v1083, %v1084
      %v1086 = vsel %vm658, %v511, -inf
      %v1087 = vrot.slane %v1086, 4
      %v1088 = vmax.f32 %v1086, %v1087
      %v1089 = vrot.slane %v1088, 2
      %v1090 = vmax.f32 %v1088, %v1089
      %v1091 = vrot.slane %v1090, 1
      %v1092 = vmax.f32 %v1090, %v1091
      %v1093 = vsel %vm658, %v512, -inf
      %v1094 = vrot.slane %v1093, 4
      %v1095 = vmax.f32 %v1093, %v1094
      %v1096 = vrot.slane %v1095, 2
      %v1097 = vmax.f32 %v1095, %v1096
      %v1098 = vrot.slane %v1097, 1
      %v1099 = vmax.f32 %v1097, %v1098
      %v1100 = vsel %vm658, %v513, -inf
      %v1101 = vrot.slane %v1100, 4
      %v1102 = vmax.f32 %v1100, %v1101
      %v1103 = vrot.slane %v1102, 2
      %v1104 = vmax.f32 %v1102, %v1103
      %v1105 = vrot.slane %v1104, 1
      %v1106 = vmax.f32 %v1104, %v1105
      %v1107 = vsel %vm658, %v386, -inf
      %v1108 = vrot.slane %v1107, 4
      %v1109 = vmax.f32 %v1107, %v1108
      %v1110 = vrot.slane %v1109, 2
      %v1111 = vmax.f32 %v1109, %v1110
      %v1112 = vrot.slane %v1111, 1
      %v1113 = vmax.f32 %v1111, %v1112
      %v1114 = vsel %vm658, %v514, -inf
      %v1115 = vrot.slane %v1114, 4
      %v1116 = vmax.f32 %v1114, %v1115
      %v1117 = vrot.slane %v1116, 2
      %v1118 = vmax.f32 %v1116, %v1117
      %v1119 = vrot.slane %v1118, 1
      %v1120 = vmax.f32 %v1118, %v1119
      %v1121 = vsel %vm658, %v515, -inf
      %v1122 = vrot.slane %v1121, 4
      %v1123 = vmax.f32 %v1121, %v1122
      %v1124 = vrot.slane %v1123, 2
      %v1125 = vmax.f32 %v1123, %v1124
      %v1126 = vrot.slane %v1125, 1
      %v1127 = vmax.f32 %v1125, %v1126
      %v1128 = vsel %vm658, %v516, -inf
      %v1129 = vrot.slane %v1128, 4
      %v1130 = vmax.f32 %v1128, %v1129
      %v1131 = vrot.slane %v1130, 2
      %v1132 = vmax.f32 %v1130, %v1131
      %v1133 = vrot.slane %v1132, 1
      %v1134 = vmax.f32 %v1132, %v1133
      %v1135 = vsel %vm658, %v387, -inf
      %v1136 = vrot.slane %v1135, 4
      %v1137 = vmax.f32 %v1135, %v1136
      %v1138 = vrot.slane %v1137, 2
      %v1139 = vmax.f32 %v1137, %v1138
      %v1140 = vrot.slane %v1139, 1
      %v1141 = vmax.f32 %v1139, %v1140
      %v1142 = vsel %vm658, %v517, -inf
      %v1143 = vrot.slane %v1142, 4
      %v1144 = vmax.f32 %v1142, %v1143
      %v1145 = vrot.slane %v1144, 2
      %v1146 = vmax.f32 %v1144, %v1145
      %v1147 = vrot.slane %v1146, 1
      %v1148 = vmax.f32 %v1146, %v1147
      %v1149 = vsel %vm658, %v518, -inf
      %v1150 = vrot.slane %v1149, 4
      %v1151 = vmax.f32 %v1149, %v1150
      %v1152 = vrot.slane %v1151, 2
      %v1153 = vmax.f32 %v1151, %v1152
      %v1154 = vrot.slane %v1153, 1
      %v1155 = vmax.f32 %v1153, %v1154
      %v1156 = vsel %vm658, %v519, -inf
      %v1157 = vrot.slane %v1156, 4
      %v1158 = vmax.f32 %v1156, %v1157
      %v1159 = vrot.slane %v1158, 2
      %v1160 = vmax.f32 %v1158, %v1159
      %v1161 = vrot.slane %v1160, 1
      %v1162 = vmax.f32 %v1160, %v1161
      %v1163 = vsel %vm658, %v388, -inf
      %v1164 = vrot.slane %v1163, 4
      %v1165 = vmax.f32 %v1163, %v1164
      %v1166 = vrot.slane %v1165, 2
      %v1167 = vmax.f32 %v1165, %v1166
      %v1168 = vrot.slane %v1167, 1
      %v1169 = vmax.f32 %v1167, %v1168
      %v1170 = vsel %vm658, %v520, -inf
      %v1171 = vrot.slane %v1170, 4
      %v1172 = vmax.f32 %v1170, %v1171
      %v1173 = vrot.slane %v1172, 2
      %v1174 = vmax.f32 %v1172, %v1173
      %v1175 = vrot.slane %v1174, 1
      %v1176 = vmax.f32 %v1174, %v1175
      %v1177 = vsel %vm658, %v521, -inf
      %v1178 = vrot.slane %v1177, 4
      %v1179 = vmax.f32 %v1177, %v1178
      %v1180 = vrot.slane %v1179, 2
      %v1181 = vmax.f32 %v1179, %v1180
      %v1182 = vrot.slane %v1181, 1
      %v1183 = vmax.f32 %v1181, %v1182
      %v1184 = vsel %vm658, %v522, -inf
      %v1185 = vrot.slane %v1184, 4
      %v1186 = vmax.f32 %v1184, %v1185
      %v1187 = vrot.slane %v1186, 2
      %v1188 = vmax.f32 %v1186, %v1187
      %v1189 = vrot.slane %v1188, 1
      %v1190 = vmax.f32 %v1188, %v1189
      %v1191 = vsel %vm658, %v389, -inf
      %v1192 = vrot.slane %v1191, 4
      %v1193 = vmax.f32 %v1191, %v1192
      %v1194 = vrot.slane %v1193, 2
      %v1195 = vmax.f32 %v1193, %v1194
      %v1196 = vrot.slane %v1195, 1
      %v1197 = vmax.f32 %v1195, %v1196
      %v1198 = vsel %vm658, %v523, -inf
      %v1199 = vrot.slane %v1198, 4
      %v1200 = vmax.f32 %v1198, %v1199
      %v1201 = vrot.slane %v1200, 2
      %v1202 = vmax.f32 %v1200, %v1201
      %v1203 = vrot.slane %v1202, 1
      %v1204 = vmax.f32 %v1202, %v1203
      %v1205 = vsel %vm658, %v524, -inf
      %v1206 = vrot.slane %v1205, 4
      %v1207 = vmax.f32 %v1205, %v1206
      %v1208 = vrot.slane %v1207, 2
      %v1209 = vmax.f32 %v1207, %v1208
      %v1210 = vrot.slane %v1209, 1
      %v1211 = vmax.f32 %v1209, %v1210
      %v1212 = vsel %vm658, %v525, -inf
      %v1213 = vrot.slane %v1212, 4
      %v1214 = vmax.f32 %v1212, %v1213
      %v1215 = vrot.slane %v1214, 2
      %v1216 = vmax.f32 %v1214, %v1215
      %v1217 = vrot.slane %v1216, 1
      %v1218 = vmax.f32 %v1216, %v1217
      %v1219 = vsel %vm658, %v390, -inf
      %v1220 = vrot.slane %v1219, 4
      %v1221 = vmax.f32 %v1219, %v1220
      %v1222 = vrot.slane %v1221, 2
      %v1223 = vmax.f32 %v1221, %v1222
      %v1224 = vrot.slane %v1223, 1
      %v1225 = vmax.f32 %v1223, %v1224
      %v1226 = vsel %vm658, %v526, -inf
      %v1227 = vrot.slane %v1226, 4
      %v1228 = vmax.f32 %v1226, %v1227
      %v1229 = vrot.slane %v1228, 2
      %v1230 = vmax.f32 %v1228, %v1229
      %v1231 = vrot.slane %v1230, 1
      %v1232 = vmax.f32 %v1230, %v1231
      %v1233 = vsel %vm658, %v527, -inf
      %v1234 = vrot.slane %v1233, 4
      %v1235 = vmax.f32 %v1233, %v1234
      %v1236 = vrot.slane %v1235, 2
      %v1237 = vmax.f32 %v1235, %v1236
      %v1238 = vrot.slane %v1237, 1
      %v1239 = vmax.f32 %v1237, %v1238
      %v1240 = vsel %vm658, %v528, -inf
      %v1241 = vrot.slane %v1240, 4
      %v1242 = vmax.f32 %v1240, %v1241
      %v1243 = vrot.slane %v1242, 2
      %v1244 = vmax.f32 %v1242, %v1243
      %v1245 = vrot.slane %v1244, 1
      %v1246 = vmax.f32 %v1244, %v1245
      %v1247 = vsel %vm658, %v391, -inf
      %v1248 = vrot.slane %v1247, 4
      %v1249 = vmax.f32 %v1247, %v1248
      %v1250 = vrot.slane %v1249, 2
      %v1251 = vmax.f32 %v1249, %v1250
      %v1252 = vrot.slane %v1251, 1
      %v1253 = vmax.f32 %v1251, %v1252
      %v1254 = vsel %vm658, %v529, -inf
      %v1255 = vrot.slane %v1254, 4
      %v1256 = vmax.f32 %v1254, %v1255
      %v1257 = vrot.slane %v1256, 2
      %v1258 = vmax.f32 %v1256, %v1257
      %v1259 = vrot.slane %v1258, 1
      %v1260 = vmax.f32 %v1258, %v1259
      %v1261 = vsel %vm658, %v530, -inf
      %v1262 = vrot.slane %v1261, 4
      %v1263 = vmax.f32 %v1261, %v1262
      %v1264 = vrot.slane %v1263, 2
      %v1265 = vmax.f32 %v1263, %v1264
      %v1266 = vrot.slane %v1265, 1
      %v1267 = vmax.f32 %v1265, %v1266
      %v1268 = vsel %vm658, %v531, -inf
      %v1269 = vrot.slane %v1268, 4
      %v1270 = vmax.f32 %v1268, %v1269
      %v1271 = vrot.slane %v1270, 2
      %v1272 = vmax.f32 %v1270, %v1271
      %v1273 = vrot.slane %v1272, 1
      %v1274 = vmax.f32 %v1272, %v1273
      %v1275 = vsel %vm658, %v392, -inf
      %v1276 = vrot.slane %v1275, 4
      %v1277 = vmax.f32 %v1275, %v1276
      %v1278 = vrot.slane %v1277, 2
      %v1279 = vmax.f32 %v1277, %v1278
      %v1280 = vrot.slane %v1279, 1
      %v1281 = vmax.f32 %v1279, %v1280
      %v1282 = vsel %vm658, %v532, -inf
      %v1283 = vrot.slane %v1282, 4
      %v1284 = vmax.f32 %v1282, %v1283
      %v1285 = vrot.slane %v1284, 2
      %v1286 = vmax.f32 %v1284, %v1285
      %v1287 = vrot.slane %v1286, 1
      %v1288 = vmax.f32 %v1286, %v1287
      %v1289 = vsel %vm658, %v533, -inf
      %v1290 = vrot.slane %v1289, 4
      %v1291 = vmax.f32 %v1289, %v1290
      %v1292 = vrot.slane %v1291, 2
      %v1293 = vmax.f32 %v1291, %v1292
      %v1294 = vrot.slane %v1293, 1
      %v1295 = vmax.f32 %v1293, %v1294
      %v1296 = vsel %vm658, %v534, -inf
      %v1297 = vrot.slane %v1296, 4
      %v1298 = vmax.f32 %v1296, %v1297
      %v1299 = vrot.slane %v1298, 2
      %v1300 = vmax.f32 %v1298, %v1299
      %v1301 = vrot.slane %v1300, 1
      %v1302 = vmax.f32 %v1300, %v1301
      %v1303 = vsel %vm658, %v393, -inf
      %v1304 = vrot.slane %v1303, 4
      %v1305 = vmax.f32 %v1303, %v1304
      %v1306 = vrot.slane %v1305, 2
      %v1307 = vmax.f32 %v1305, %v1306
      %v1308 = vrot.slane %v1307, 1
      %v1309 = vmax.f32 %v1307, %v1308
      %v1310 = vsel %vm658, %v535, -inf
      %v1311 = vrot.slane %v1310, 4
      %v1312 = vmax.f32 %v1310, %v1311
      %v1313 = vrot.slane %v1312, 2
      %v1314 = vmax.f32 %v1312, %v1313
      %v1315 = vrot.slane %v1314, 1
      %v1316 = vmax.f32 %v1314, %v1315
      %v1317 = vsel %vm658, %v536, -inf
      %v1318 = vrot.slane %v1317, 4
      %v1319 = vmax.f32 %v1317, %v1318
      %v1320 = vrot.slane %v1319, 2
      %v1321 = vmax.f32 %v1319, %v1320
      %v1322 = vrot.slane %v1321, 1
      %v1323 = vmax.f32 %v1321, %v1322
      %v1324 = vsel %vm658, %v537, -inf
      %v1325 = vrot.slane %v1324, 4
      %v1326 = vmax.f32 %v1324, %v1325
      %v1327 = vrot.slane %v1326, 2
      %v1328 = vmax.f32 %v1326, %v1327
      %v1329 = vrot.slane %v1328, 1
      %v1330 = vmax.f32 %v1328, %v1329
      %v1331 = vsel %vm658, %v394, -inf
      %v1332 = vrot.slane %v1331, 4
      %v1333 = vmax.f32 %v1331, %v1332
      %v1334 = vrot.slane %v1333, 2
      %v1335 = vmax.f32 %v1333, %v1334
      %v1336 = vrot.slane %v1335, 1
      %v1337 = vmax.f32 %v1335, %v1336
      %v1338 = vsel %vm658, %v538, -inf
      %v1339 = vrot.slane %v1338, 4
      %v1340 = vmax.f32 %v1338, %v1339
      %v1341 = vrot.slane %v1340, 2
      %v1342 = vmax.f32 %v1340, %v1341
      %v1343 = vrot.slane %v1342, 1
      %v1344 = vmax.f32 %v1342, %v1343
      %v1345 = vsel %vm658, %v539, -inf
      %v1346 = vrot.slane %v1345, 4
      %v1347 = vmax.f32 %v1345, %v1346
      %v1348 = vrot.slane %v1347, 2
      %v1349 = vmax.f32 %v1347, %v1348
      %v1350 = vrot.slane %v1349, 1
      %v1351 = vmax.f32 %v1349, %v1350
      %v1352 = vsel %vm658, %v540, -inf
      %v1353 = vrot.slane %v1352, 4
      %v1354 = vmax.f32 %v1352, %v1353
      %v1355 = vrot.slane %v1354, 2
      %v1356 = vmax.f32 %v1354, %v1355
      %v1357 = vrot.slane %v1356, 1
      %v1358 = vmax.f32 %v1356, %v1357
      %v1359 = vsel %vm658, %v395, -inf
      %v1360 = vrot.slane %v1359, 4
      %v1361 = vmax.f32 %v1359, %v1360
      %v1362 = vrot.slane %v1361, 2
      %v1363 = vmax.f32 %v1361, %v1362
      %v1364 = vrot.slane %v1363, 1
      %v1365 = vmax.f32 %v1363, %v1364
      %v1366 = vsel %vm658, %v541, -inf
      %v1367 = vrot.slane %v1366, 4
      %v1368 = vmax.f32 %v1366, %v1367
      %v1369 = vrot.slane %v1368, 2
      %v1370 = vmax.f32 %v1368, %v1369
      %v1371 = vrot.slane %v1370, 1
      %v1372 = vmax.f32 %v1370, %v1371
      %v1373 = vsel %vm658, %v542, -inf
      %v1374 = vrot.slane %v1373, 4
      %v1375 = vmax.f32 %v1373, %v1374
      %v1376 = vrot.slane %v1375, 2
      %v1377 = vmax.f32 %v1375, %v1376
      %v1378 = vrot.slane %v1377, 1
      %v1379 = vmax.f32 %v1377, %v1378
      %v1380 = vsel %vm658, %v543, -inf
      %v1381 = vrot.slane %v1380, 4
      %v1382 = vmax.f32 %v1380, %v1381
      %v1383 = vrot.slane %v1382, 2
      %v1384 = vmax.f32 %v1382, %v1383
      %v1385 = vrot.slane %v1384, 1
      %v1386 = vmax.f32 %v1384, %v1385
      %v1387 = vsel %vm658, %v396, -inf
      %v1388 = vrot.slane %v1387, 4
      %v1389 = vmax.f32 %v1387, %v1388
      %v1390 = vrot.slane %v1389, 2
      %v1391 = vmax.f32 %v1389, %v1390
      %v1392 = vrot.slane %v1391, 1
      %v1393 = vmax.f32 %v1391, %v1392
      %v1394 = vsel %vm658, %v544, -inf
      %v1395 = vrot.slane %v1394, 4
      %v1396 = vmax.f32 %v1394, %v1395
      %v1397 = vrot.slane %v1396, 2
      %v1398 = vmax.f32 %v1396, %v1397
      %v1399 = vrot.slane %v1398, 1
      %v1400 = vmax.f32 %v1398, %v1399
      %v1401 = vsel %vm658, %v545, -inf
      %v1402 = vrot.slane %v1401, 4
      %v1403 = vmax.f32 %v1401, %v1402
      %v1404 = vrot.slane %v1403, 2
      %v1405 = vmax.f32 %v1403, %v1404
      %v1406 = vrot.slane %v1405, 1
      %v1407 = vmax.f32 %v1405, %v1406
      %v1408 = vsel %vm658, %v546, -inf
      %v1409 = vrot.slane %v1408, 4
      %v1410 = vmax.f32 %v1408, %v1409
      %v1411 = vrot.slane %v1410, 2
      %v1412 = vmax.f32 %v1410, %v1411
      %v1413 = vrot.slane %v1412, 1
      %v1414 = vmax.f32 %v1412, %v1413
      %v1415 = vsel %vm658, %v397, -inf
      %v1416 = vrot.slane %v1415, 4
      %v1417 = vmax.f32 %v1415, %v1416
      %v1418 = vrot.slane %v1417, 2
      %v1419 = vmax.f32 %v1417, %v1418
      %v1420 = vrot.slane %v1419, 1
      %v1421 = vmax.f32 %v1419, %v1420
      %v1422 = vsel %vm658, %v547, -inf
      %v1423 = vrot.slane %v1422, 4
      %v1424 = vmax.f32 %v1422, %v1423
      %v1425 = vrot.slane %v1424, 2
      %v1426 = vmax.f32 %v1424, %v1425
      %v1427 = vrot.slane %v1426, 1
      %v1428 = vmax.f32 %v1426, %v1427
      %v1429 = vsel %vm658, %v548, -inf
      %v1430 = vrot.slane %v1429, 4
      %v1431 = vmax.f32 %v1429, %v1430
      %v1432 = vrot.slane %v1431, 2
      %v1433 = vmax.f32 %v1431, %v1432
      %v1434 = vrot.slane %v1433, 1
      %v1435 = vmax.f32 %v1433, %v1434
      %v1436 = vsel %vm658, %v549, -inf
      %v1437 = vrot.slane %v1436, 4
      %v1438 = vmax.f32 %v1436, %v1437
      %v1439 = vrot.slane %v1438, 2
      %v1440 = vmax.f32 %v1438, %v1439
      %v1441 = vrot.slane %v1440, 1
      %v1442 = vmax.f32 %v1440, %v1441
      %v1443 = vsel %vm658, %v398, -inf
      %v1444 = vrot.slane %v1443, 4
      %v1445 = vmax.f32 %v1443, %v1444
      %v1446 = vrot.slane %v1445, 2
      %v1447 = vmax.f32 %v1445, %v1446
      %v1448 = vrot.slane %v1447, 1
      %v1449 = vmax.f32 %v1447, %v1448
      %v1450 = vsel %vm658, %v550, -inf
      %v1451 = vrot.slane %v1450, 4
      %v1452 = vmax.f32 %v1450, %v1451
      %v1453 = vrot.slane %v1452, 2
      %v1454 = vmax.f32 %v1452, %v1453
      %v1455 = vrot.slane %v1454, 1
      %v1456 = vmax.f32 %v1454, %v1455
      %v1457 = vsel %vm658, %v551, -inf
      %v1458 = vrot.slane %v1457, 4
      %v1459 = vmax.f32 %v1457, %v1458
      %v1460 = vrot.slane %v1459, 2
      %v1461 = vmax.f32 %v1459, %v1460
      %v1462 = vrot.slane %v1461, 1
      %v1463 = vmax.f32 %v1461, %v1462
      %v1464 = vsel %vm658, %v552, -inf
      %v1465 = vrot.slane %v1464, 4
      %v1466 = vmax.f32 %v1464, %v1465
      %v1467 = vrot.slane %v1466, 2
      %v1468 = vmax.f32 %v1466, %v1467
      %v1469 = vrot.slane %v1468, 1
      %v1470 = vmax.f32 %v1468, %v1469
      %v1471 = vsel %vm658, %v399, -inf
      %v1472 = vrot.slane %v1471, 4
      %v1473 = vmax.f32 %v1471, %v1472
      %v1474 = vrot.slane %v1473, 2
      %v1475 = vmax.f32 %v1473, %v1474
      %v1476 = vrot.slane %v1475, 1
      %v1477 = vmax.f32 %v1475, %v1476
      %v1478 = vsel %vm658, %v553, -inf
      %v1479 = vrot.slane %v1478, 4
      %v1480 = vmax.f32 %v1478, %v1479
      %v1481 = vrot.slane %v1480, 2
      %v1482 = vmax.f32 %v1480, %v1481
      %v1483 = vrot.slane %v1482, 1
      %v1484 = vmax.f32 %v1482, %v1483
      %v1485 = vsel %vm658, %v554, -inf
      %v1486 = vrot.slane %v1485, 4
      %v1487 = vmax.f32 %v1485, %v1486
      %v1488 = vrot.slane %v1487, 2
      %v1489 = vmax.f32 %v1487, %v1488
      %v1490 = vrot.slane %v1489, 1
      %v1491 = vmax.f32 %v1489, %v1490
      %v1492 = vsel %vm658, %v555, -inf
      %v1493 = vrot.slane %v1492, 4
      %v1494 = vmax.f32 %v1492, %v1493
      %v1495 = vrot.slane %v1494, 2
      %v1496 = vmax.f32 %v1494, %v1495
      %v1497 = vrot.slane %v1496, 1
      %v1498 = vmax.f32 %v1496, %v1497
      %v1499 = vsel %vm658, %v400, -inf
      %v1500 = vrot.slane %v1499, 4
      %v1501 = vmax.f32 %v1499, %v1500
      %v1502 = vrot.slane %v1501, 2
      %v1503 = vmax.f32 %v1501, %v1502
      %v1504 = vrot.slane %v1503, 1
      %v1505 = vmax.f32 %v1503, %v1504
      %v1506 = vsel %vm658, %v556, -inf
      %v1507 = vrot.slane %v1506, 4
      %v1508 = vmax.f32 %v1506, %v1507
      %v1509 = vrot.slane %v1508, 2
      %v1510 = vmax.f32 %v1508, %v1509
      %v1511 = vrot.slane %v1510, 1
      %v1512 = vmax.f32 %v1510, %v1511
      %v1513 = vsel %vm658, %v557, -inf
      %v1514 = vrot.slane %v1513, 4
      %v1515 = vmax.f32 %v1513, %v1514
      %v1516 = vrot.slane %v1515, 2
      %v1517 = vmax.f32 %v1515, %v1516
      %v1518 = vrot.slane %v1517, 1
      %v1519 = vmax.f32 %v1517, %v1518
      %v1520 = vsel %vm658, %v558, -inf
      %v1521 = vrot.slane %v1520, 4
      %v1522 = vmax.f32 %v1520, %v1521
      %v1523 = vrot.slane %v1522, 2
      %v1524 = vmax.f32 %v1522, %v1523
      %v1525 = vrot.slane %v1524, 1
      %v1526 = vmax.f32 %v1524, %v1525
      %v1527 = vsel %vm658, %v401, -inf
      %v1528 = vrot.slane %v1527, 4
      %v1529 = vmax.f32 %v1527, %v1528
      %v1530 = vrot.slane %v1529, 2
      %v1531 = vmax.f32 %v1529, %v1530
      %v1532 = vrot.slane %v1531, 1
      %v1533 = vmax.f32 %v1531, %v1532
      %v1534 = vsel %vm658, %v559, -inf
      %v1535 = vrot.slane %v1534, 4
      %v1536 = vmax.f32 %v1534, %v1535
      %v1537 = vrot.slane %v1536, 2
      %v1538 = vmax.f32 %v1536, %v1537
      %v1539 = vrot.slane %v1538, 1
      %v1540 = vmax.f32 %v1538, %v1539
      %v1541 = vsel %vm658, %v560, -inf
      %v1542 = vrot.slane %v1541, 4
      %v1543 = vmax.f32 %v1541, %v1542
      %v1544 = vrot.slane %v1543, 2
      %v1545 = vmax.f32 %v1543, %v1544
      %v1546 = vrot.slane %v1545, 1
      %v1547 = vmax.f32 %v1545, %v1546
      %v1548 = vsel %vm658, %v561, -inf
      %v1549 = vrot.slane %v1548, 4
      %v1550 = vmax.f32 %v1548, %v1549
      %v1551 = vrot.slane %v1550, 2
      %v1552 = vmax.f32 %v1550, %v1551
      %v1553 = vrot.slane %v1552, 1
      %v1554 = vmax.f32 %v1552, %v1553
      %v1555 = vmax.f32 %v665, %v721
      %v1556 = vmax.f32 %v672, %v728
      %v1557 = vmax.f32 %v679, %v735
      %v1558 = vmax.f32 %v686, %v742
      %v1559 = vmax.f32 %v693, %v749
      %v1560 = vmax.f32 %v700, %v756
      %v1561 = vmax.f32 %v707, %v763
      %v1562 = vmax.f32 %v714, %v770
      %v1563 = vmax.f32 %v777, %v833
      %v1564 = vmax.f32 %v784, %v840
      %v1565 = vmax.f32 %v791, %v847
      %v1566 = vmax.f32 %v798, %v854
      %v1567 = vmax.f32 %v805, %v861
      %v1568 = vmax.f32 %v812, %v868
      %v1569 = vmax.f32 %v819, %v875
      %v1570 = vmax.f32 %v826, %v882
      %v1571 = vmax.f32 %v889, %v945
      %v1572 = vmax.f32 %v896, %v952
      %v1573 = vmax.f32 %v903, %v959
      %v1574 = vmax.f32 %v910, %v966
      %v1575 = vmax.f32 %v917, %v973
      %v1576 = vmax.f32 %v924, %v980
      %v1577 = vmax.f32 %v931, %v987
      %v1578 = vmax.f32 %v938, %v994
      %v1579 = vmax.f32 %v1001, %v1057
      %v1580 = vmax.f32 %v1008, %v1064
      %v1581 = vmax.f32 %v1015, %v1071
      %v1582 = vmax.f32 %v1022, %v1078
      %v1583 = vmax.f32 %v1029, %v1085
      %v1584 = vmax.f32 %v1036, %v1092
      %v1585 = vmax.f32 %v1043, %v1099
      %v1586 = vmax.f32 %v1050, %v1106
      %v1587 = vmax.f32 %v1113, %v1169
      %v1588 = vmax.f32 %v1120, %v1176
      %v1589 = vmax.f32 %v1127, %v1183
      %v1590 = vmax.f32 %v1134, %v1190
      %v1591 = vmax.f32 %v1141, %v1197
      %v1592 = vmax.f32 %v1148, %v1204
      %v1593 = vmax.f32 %v1155, %v1211
      %v1594 = vmax.f32 %v1162, %v1218
      %v1595 = vmax.f32 %v1225, %v1281
      %v1596 = vmax.f32 %v1232, %v1288
      %v1597 = vmax.f32 %v1239, %v1295
      %v1598 = vmax.f32 %v1246, %v1302
      %v1599 = vmax.f32 %v1253, %v1309
      %v1600 = vmax.f32 %v1260, %v1316
      %v1601 = vmax.f32 %v1267, %v1323
      %v1602 = vmax.f32 %v1274, %v1330
      %v1603 = vmax.f32 %v1337, %v1393
      %v1604 = vmax.f32 %v1344, %v1400
      %v1605 = vmax.f32 %v1351, %v1407
      %v1606 = vmax.f32 %v1358, %v1414
      %v1607 = vmax.f32 %v1365, %v1421
      %v1608 = vmax.f32 %v1372, %v1428
      %v1609 = vmax.f32 %v1379, %v1435
      %v1610 = vmax.f32 %v1386, %v1442
      %v1611 = vmax.f32 %v1449, %v1505
      %v1612 = vmax.f32 %v1456, %v1512
      %v1613 = vmax.f32 %v1463, %v1519
      %v1614 = vmax.f32 %v1470, %v1526
      %v1615 = vmax.f32 %v1477, %v1533
      %v1616 = vmax.f32 %v1484, %v1540
      %v1617 = vmax.f32 %v1491, %v1547
      %v1618 = vmax.f32 %v1498, %v1554
      %vm1683 = vcmask 1041409
      %v1684 = vsel %vm1683, %v1556, %v1555
      %vm1685 = vcmask 1042434
      %v1686 = vsel %vm1685, %v1557, %v1684
      %vm1687 = vcmask 1043459
      %v1688 = vsel %vm1687, %v1558, %v1686
      %vm1689 = vcmask 1044484
      %v1690 = vsel %vm1689, %v1559, %v1688
      %vm1691 = vcmask 1045509
      %v1692 = vsel %vm1691, %v1560, %v1690
      %vm1693 = vcmask 1046534
      %v1694 = vsel %vm1693, %v1561, %v1692
      %vm1695 = vcmask 1047559
      %v1696 = vsel %vm1695, %v1562, %v1694
      %v1697 = vsel %vm1683, %v1564, %v1563
      %v1698 = vsel %vm1685, %v1565, %v1697
      %v1699 = vsel %vm1687, %v1566, %v1698
      %v1700 = vsel %vm1689, %v1567, %v1699
      %v1701 = vsel %vm1691, %v1568, %v1700
      %v1702 = vsel %vm1693, %v1569, %v1701
      %v1703 = vsel %vm1695, %v1570, %v1702
      %v1704 = vsel %vm1683, %v1572, %v1571
      %v1705 = vsel %vm1685, %v1573, %v1704
      %v1706 = vsel %vm1687, %v1574, %v1705
      %v1707 = vsel %vm1689, %v1575, %v1706
      %v1708 = vsel %vm1691, %v1576, %v1707
      %v1709 = vsel %vm1693, %v1577, %v1708
      %v1710 = vsel %vm1695, %v1578, %v1709
      %v1711 = vsel %vm1683, %v1580, %v1579
      %v1712 = vsel %vm1685, %v1581, %v1711
      %v1713 = vsel %vm1687, %v1582, %v1712
      %v1714 = vsel %vm1689, %v1583, %v1713
      %v1715 = vsel %vm1691, %v1584, %v1714
      %v1716 = vsel %vm1693, %v1585, %v1715
      %v1717 = vsel %vm1695, %v1586, %v1716
      %v1718 = vsel %vm1683, %v1588, %v1587
      %v1719 = vsel %vm1685, %v1589, %v1718
      %v1720 = vsel %vm1687, %v1590, %v1719
      %v1721 = vsel %vm1689, %v1591, %v1720
      %v1722 = vsel %vm1691, %v1592, %v1721
      %v1723 = vsel %vm1693, %v1593, %v1722
      %v1724 = vsel %vm1695, %v1594, %v1723
      %v1725 = vsel %vm1683, %v1596, %v1595
      %v1726 = vsel %vm1685, %v1597, %v1725
      %v1727 = vsel %vm1687, %v1598, %v1726
      %v1728 = vsel %vm1689, %v1599, %v1727
      %v1729 = vsel %vm1691, %v1600, %v1728
      %v1730 = vsel %vm1693, %v1601, %v1729
      %v1731 = vsel %vm1695, %v1602, %v1730
      %v1732 = vsel %vm1683, %v1604, %v1603
      %v1733 = vsel %vm1685, %v1605, %v1732
      %v1734 = vsel %vm1687, %v1606, %v1733
      %v1735 = vsel %vm1689, %v1607, %v1734
      %v1736 = vsel %vm1691, %v1608, %v1735
      %v1737 = vsel %vm1693, %v1609, %v1736
      %v1738 = vsel %vm1695, %v1610, %v1737
      %v1739 = vsel %vm1683, %v1612, %v1611
      %v1740 = vsel %vm1685, %v1613, %v1739
      %v1741 = vsel %vm1687, %v1614, %v1740
      %v1742 = vsel %vm1689, %v1615, %v1741
      %v1743 = vsel %vm1691, %v1616, %v1742
      %v1744 = vsel %vm1693, %v1617, %v1743
      %v1745 = vsel %vm1695, %v1618, %v1744
      %1754 = vst [vmem:[%s264] sm:$0xff] %v1696
      %1755 = vst [vmem:[%s264 + $0x8] sm:$0xff] %v1703
      %1756 = vst [vmem:[%s264 + $0x10] sm:$0xff] %v1710
      %1757 = vst [vmem:[%s264 + $0x18] sm:$0xff] %v1717
      %1758 = vst [vmem:[%s264 + $0x20] sm:$0xff] %v1724
      %1759 = vst [vmem:[%s264 + $0x28] sm:$0xff] %v1731
      %1760 = vst [vmem:[%s264 + $0x30] sm:$0xff] %v1738
      %1761 = vst [vmem:[%s264 + $0x38] sm:$0xff] %v1745
      %s1762 = smul.u32 16, %s21
      %p1763 = scmp.lt.s32.totalorder %s20, 1
      %s1764 = scalar_select %p1763, %s20, 1
      %p1765 = scmp.lt.s32.totalorder %s1762, 15
      %s1766 = scalar_select %p1765, %s1762, 15
      %s1767 = smul.addr %s1766, 2
      %s1768 = smul.addr %s1764, 32
      %s1769 = sadd.s32 %s1767, %s1768
      %s1770 = smul.addr %s1769, 8
      %s1771 = scalar_lea.vmem %s3, %s1770
      %s1772 = smul.u32 8, %s21
      %p1773 = scmp.lt.s32.totalorder %s20, 1
      %s1774 = scalar_select %p1773, %s20, 1
      %p1775 = scmp.lt.s32.totalorder %s1772, 7
      %s1776 = scalar_select %p1775, %s1772, 7
      %s1777 = smul.addr %s1774, 8
      %s1778 = sadd.s32 %s1776, %s1777
      %s1779 = smul.addr %s1778, 8
      %s1780 = scalar_lea.vmem %s4, %s1779
      // Predicated region
      $region33: #{down_block.7} parent=31 // pred_check
        %p1781 = pneg %p118
      $region34: #{down_block.7} parent=31 // pred_check_branch
        %1783 = sbr.rel (%p1781) target = $region36
      $region35: #{down_block.7} parent=31 // pred_region
        %s1784 = smul.u32 16, %s21
      $region36: #{down_block.7} parent=31 // pred_fallthru
        _
      // Predicated region
      $region37: #{down_block.7} parent=31 // pred_check
        %p1785 = pneg %p146
      $region38: #{down_block.7} parent=31 // pred_check_branch
        %1787 = sbr.rel (%p1785) target = $region40
      $region39: #{down_block.7} parent=31 // pred_region
        %s1788 = smul.u32 8, %s21
      $region40: #{down_block.7} parent=31 // pred_fallthru
        _
    $region32: #{down_block.7} parent=5 // pred_fallthru
      _
    %p1789 = scmp.le.s32.totalorder 2, %s11
    // Predicated region
    $region41: #{down_block.7} parent=5 // pred_check
      %p1790 = pneg %p1789
    $region42: #{down_block.7} parent=5 // pred_check_branch
      %1792 = sbr.rel (%p1790) target = $region44
    $region43: #{down_block.7} parent=5 // pred_region
      %s1793 = ssub.s32 %s11, 2
      // Predicated region
      $region45: #{down_block.7} parent=43 // pred_check
        %p1794 = pneg %p124
      $region46: #{down_block.7} parent=43 // pred_check_branch
        %1796 = sbr.rel (%p1794) target = $region48
      $region47: #{down_block.7} parent=43 // pred_region
        %s1797 = smul.u32 16, %s23
        %p1798 = scmp.lt.s32.totalorder %s22, 1
        %s1799 = scalar_select %p1798, %s22, 1
        %p1800 = scmp.lt.s32.totalorder %s1797, 15
        %s1801 = scalar_select %p1800, %s1797, 15
        %s1802 = smul.addr %s1801, 2
        %s1803 = smul.addr %s1799, 32
        %s1804 = sadd.s32 %s1802, %s1803
        %s1805 = smul.addr %s1804, 8
        %s1806 = scalar_lea.vmem %s3, %s1805
      $region48: #{down_block.7} parent=43 // pred_fallthru
        _
      // Predicated region
      $region49: #{down_block.7} parent=43 // pred_check
        %p1807 = pneg %p152
      $region50: #{down_block.7} parent=43 // pred_check_branch
        %1809 = sbr.rel (%p1807) target = $region52
      $region51: #{down_block.7} parent=43 // pred_region
        %s1810 = smul.u32 8, %s23
        %p1811 = scmp.lt.s32.totalorder %s22, 1
        %s1812 = scalar_select %p1811, %s22, 1
        %p1813 = scmp.lt.s32.totalorder %s1810, 7
        %s1814 = scalar_select %p1813, %s1810, 7
        %s1815 = smul.addr %s1812, 8
        %s1816 = sadd.s32 %s1814, %s1815
        %s1817 = smul.addr %s1816, 8
        %s1818 = scalar_lea.vmem %s4, %s1817
      $region52: #{down_block.7} parent=43 // pred_fallthru
        _
    $region44: #{down_block.7} parent=5 // pred_fallthru
      _
  $region6: #{down_block.7} parent=0 // loop_footer
    %s15 = sadd.s32 1, %s11
  $region7: #{down_block.7} parent=0 // loop_footer_branch
    %10 = sbr.rel target = $region3
  $region8: #{down_block.7} parent=0 // loop_exit
    _

// kernel: down_block.4
$region0: #{down_block.4}
  #allocation0 [shape = 'u32[]', space=smem, size = 0x4, offset = 0x4, fixed_abs, tag = 'smem constant byte address 0x4 - core index']
  #allocation1 [shape = 'u32[72,128]{1,0:T(1,128)}', space=vmem, size = 0x9000, scoped, tag = 'internal scratch']
  %s0 = inlined_call_operand.vmem [shape: bf16[2,18,18,128], index: 0, kind: input, shape index: {}]
  %s1 = inlined_call_operand.vmem [shape: bf16[9,128,128], index: 1, kind: input, shape index: {}]
  %s2 = inlined_call_operand.vmem [shape: f32[1,128], index: 2, kind: input, shape index: {}]
  %s3 = inlined_call_operand.vmem [shape: f32[2,16,16,128], index: 3, kind: output, shape index: {0}]
  %s4 = inlined_call_operand.vmem [shape: f32[2,1,2,128], index: 4, kind: output, shape index: {1}]
  %5 = xla_tuple %s3, %s4
  %s6 = sld [smem:[#allocation0]]
  $region53: #{down_block.4} parent=0
    _
  %s8 = ssub.s32 1, %s6
  %s9 = scalar_select 0, %s8, %s6
  loop: start=0, step=1, limit=4
  $region2: #{down_block.4} parent=0 // loop_pre_header
    _
  $region3: #{down_block.4} parent=0 // loop_header
    %s11 = sphi 0, %s15
    %p12 = scmp.ge.s32.totalorder %s11, 4
    %s18 = sphi 0, %s30
    %s19 = sphi 0, %s26
    %s20 = sphi 0, %s18
    %s21 = sphi 0, %s19
    %s22 = sphi 0, %s20
    %s23 = sphi 0, %s21
    %s33 = sphi 0, %s35
    %s36 = sphi 0, %s33
    %s37 = sphi 0, %s36
    %s53 = sphi 0, %s37
    %s57 = sphi 0, %s57
    %s59 = sphi 0, %s57
    %s60 = sphi 0, %s59
    %s74 = sphi 0, %s60
    %s78 = sphi 0, %s78
    %s80 = sphi 0, %s78
    %s81 = sphi 0, %s80
    %s95 = sphi 0, %s81
    %s103 = sphi 0, %s105
    %s106 = sphi 0, %s103
    %s107 = sphi 0, %s106
    %s123 = sphi 0, %s107
    %s131 = sphi 0, %s133
    %s134 = sphi 0, %s131
    %s135 = sphi 0, %s134
    %s151 = sphi 0, %s135
  $region4: #{down_block.4} parent=0 // loop_header_branch
    %14 = sbr.rel (%p12) target = $region8
  $region5: #{down_block.4} parent=0 // loop_body
    %s16 = ssub.s32 %s11, 1
    %s17 = ssub.s32 %s11, 2
    %s24 = sadd.s32 1, %s19
    %p25 = scmp.ge.s32.totalorder %s24, 1
    %s26 = scalar_select %p25, 0, %s24
    %s27 = sadd.s32 1, %s18
    %s28 = scalar_select %p25, %s27, %s18
    %p29 = scmp.ge.s32.totalorder %s28, 2
    %s30 = scalar_select %p29, 0, %s28
    %s31 = ssub.s32 %s18, %s30
    %p32 = scmp.eq.s32.totalorder %s31, 0
    %s34 = sadd.s32 %s33, 1
    %s35 = scalar_select %p32, %s33, %s34
    %p38 = pneg %p32
    %p39 = scmp.eq.s32.totalorder %s11, 1
    %p40 = por %p38, %p39
    %p41 = scmp.ne.s32.totalorder %s33, %s36
    %p42 = scmp.eq.s32.totalorder %s11, 0
    %p43 = por %p41, %p42
    %p44 = scmp.ne.s32.totalorder %s33, %s36
    %p45 = scmp.eq.s32.totalorder %s16, 1
    %p46 = por %p44, %p45
    %p47 = scmp.ne.s32.totalorder %s36, %s37
    %p48 = scmp.eq.s32.totalorder %s16, 0
    %p49 = por %p47, %p48
    %p50 = scmp.ne.s32.totalorder %s36, %s37
    %p51 = scmp.eq.s32.totalorder %s17, 1
    %p52 = por %p50, %p51
    %p54 = scmp.ne.s32.totalorder %s37, %s53
    %p55 = scmp.eq.s32.totalorder %s17, 0
    %p56 = por %p54, %p55
    %s58 = sadd.s32 %s57, 1
    %p61 = scmp.eq.s32.totalorder %s11, 1
    %p62 = scmp.ne.s32.totalorder %s57, %s59
    %p63 = scmp.eq.s32.totalorder %s11, 0
    %p64 = por %p62, %p63
    %p65 = scmp.ne.s32.totalorder %s57, %s59
    %p66 = scmp.eq.s32.totalorder %s16, 1
    %p67 = por %p65, %p66
    %p68 = scmp.ne.s32.totalorder %s59, %s60
    %p69 = scmp.eq.s32.totalorder %s16, 0
    %p70 = por %p68, %p69
    %p71 = scmp.ne.s32.totalorder %s59, %s60
    %p72 = scmp.eq.s32.totalorder %s17, 1
    %p73 = por %p71, %p72
    %p75 = scmp.ne.s32.totalorder %s60, %s74
    %p76 = scmp.eq.s32.totalorder %s17, 0
    %p77 = por %p75, %p76
    %s79 = sadd.s32 %s78, 1
    %p82 = scmp.eq.s32.totalorder %s11, 1
    %p83 = scmp.ne.s32.totalorder %s78, %s80
    %p84 = scmp.eq.s32.totalorder %s11, 0
    %p85 = por %p83, %p84
    %p86 = scmp.ne.s32.totalorder %s78, %s80
    %p87 = scmp.eq.s32.totalorder %s16, 1
    %p88 = por %p86, %p87
    %p89 = scmp.ne.s32.totalorder %s80, %s81
    %p90 = scmp.eq.s32.totalorder %s16, 0
    %p91 = por %p89, %p90
    %p92 = scmp.ne.s32.totalorder %s80, %s81
    %p93 = scmp.eq.s32.totalorder %s17, 1
    %p94 = por %p92, %p93
    %p96 = scmp.ne.s32.totalorder %s81, %s95
    %p97 = scmp.eq.s32.totalorder %s17, 0
    %p98 = por %p96, %p97
    %s99 = ssub.s32 %s18, %s30
    %s100 = ssub.s32 %s19, %s26
    %s101 = sor.u32 %s99, %s100
    %p102 = scmp.eq.s32.totalorder %s101, 0
    %s104 = sadd.s32 %s103, 1
    %s105 = scalar_select %p102, %s103, %s104
    %p108 = pneg %p102
    %p109 = scmp.eq.s32.totalorder %s11, 1
    %p110 = por %p108, %p109
    %p111 = scmp.ne.s32.totalorder %s103, %s106
    %p112 = scmp.eq.s32.totalorder %s11, 0
    %p113 = por %p111, %p112
    %p114 = scmp.ne.s32.totalorder %s103, %s106
    %p115 = scmp.eq.s32.totalorder %s16, 1
    %p116 = por %p114, %p115
    %p117 = scmp.ne.s32.totalorder %s106, %s107
    %p118 = scmp.eq.s32.totalorder %s16, 0
    %p119 = por %p117, %p118
    %p120 = scmp.ne.s32.totalorder %s106, %s107
    %p121 = scmp.eq.s32.totalorder %s17, 1
    %p122 = por %p120, %p121
    %p124 = scmp.ne.s32.totalorder %s107, %s123
    %p125 = scmp.eq.s32.totalorder %s17, 0
    %p126 = por %p124, %p125
    %s127 = ssub.s32 %s18, %s30
    %s128 = ssub.s32 %s19, %s26
    %s129 = sor.u32 %s127, %s128
    %p130 = scmp.eq.s32.totalorder %s129, 0
    %s132 = sadd.s32 %s131, 1
    %s133 = scalar_select %p130, %s131, %s132
    %p136 = pneg %p130
    %p137 = scmp.eq.s32.totalorder %s11, 1
    %p138 = por %p136, %p137
    %p139 = scmp.ne.s32.totalorder %s131, %s134
    %p140 = scmp.eq.s32.totalorder %s11, 0
    %p141 = por %p139, %p140
    %p142 = scmp.ne.s32.totalorder %s131, %s134
    %p143 = scmp.eq.s32.totalorder %s16, 1
    %p144 = por %p142, %p143
    %p145 = scmp.ne.s32.totalorder %s134, %s135
    %p146 = scmp.eq.s32.totalorder %s16, 0
    %p147 = por %p145, %p146
    %p148 = scmp.ne.s32.totalorder %s134, %s135
    %p149 = scmp.eq.s32.totalorder %s17, 1
    %p150 = por %p148, %p149
    %p152 = scmp.ne.s32.totalorder %s135, %s151
    %p153 = scmp.eq.s32.totalorder %s17, 0
    %p154 = por %p152, %p153
    %p155 = scmp.le.s32.totalorder 1, %s11
    %p156 = scmp.lt.s32.totalorder %s11, 3
    %p157 = pnand %p155, %p156
    %p158 = pneg %p157
    // Predicated region
    $region9: #{down_block.4} parent=5 // pred_check
      _
    $region10: #{down_block.4} parent=5 // pred_check_branch
      %160 = sbr.rel (%p157) target = $region12
    $region11: #{down_block.4} parent=5 // pred_region
      %s161 = ssub.s32 %s11, 1
      // Predicated region
      $region13: #{down_block.4} parent=11 // pred_check
        %p162 = pneg %p70
      $region14: #{down_block.4} parent=11 // pred_check_branch
        %164 = sbr.rel (%p162) target = $region16
      $region15: #{down_block.4} parent=11 // pred_region
        _
      $region16: #{down_block.4} parent=11 // pred_fallthru
        _
      // Predicated region
      $region17: #{down_block.4} parent=11 // pred_check
        %p165 = pneg %p91
      $region18: #{down_block.4} parent=11 // pred_check_branch
        %167 = sbr.rel (%p165) target = $region20
      $region19: #{down_block.4} parent=11 // pred_region
        _
      $region20: #{down_block.4} parent=11 // pred_fallthru
        _
    $region12: #{down_block.4} parent=5 // pred_fallthru
      _
    %p168 = scmp.lt.s32.totalorder %s11, 2
    // Predicated region
    $region21: #{down_block.4} parent=5 // pred_check
      %p169 = pneg %p168
    $region22: #{down_block.4} parent=5 // pred_check_branch
      %171 = sbr.rel (%p169) target = $region24
    $region23: #{down_block.4} parent=5 // pred_region
      // Predicated region
      $region25: #{down_block.4} parent=23 // pred_check
        %p172 = pneg %p43
      $region26: #{down_block.4} parent=23 // pred_check_branch
        %174 = sbr.rel (%p172) target = $region28
      $region27: #{down_block.4} parent=23 // pred_region
        %p175 = scmp.lt.s32.totalorder %s18, 1
        %s176 = scalar_select %p175, %s18, 1
        %s177 = smul.addr %s176, 54
        %s178 = smul.addr %s177, 4
        %s179 = scalar_lea.vmem %s0, %s178
      $region28: #{down_block.4} parent=23 // pred_fallthru
        _
    $region24: #{down_block.4} parent=5 // pred_fallthru
      _
    %p180 = scmp.le.s32.totalorder 1, %s11
    %p181 = scmp.lt.s32.totalorder %s11, 3
    %p182 = pnand %p180, %p181
    %p183 = pneg %p182
    // Predicated region
    $region29: #{down_block.4} parent=5 // pred_check
      _
    $region30: #{down_block.4} parent=5 // pred_check_branch
      %185 = sbr.rel (%p182) target = $region32
    $region31: #{down_block.4} parent=5 // pred_region
      %s186 = ssub.s32 %s11, 1
      %p187 = scmp.lt.s32.totalorder %s20, 1
      %s188 = scalar_select %p187, %s20, 1
      %s189 = smul.addr %s188, 54
      %s190 = smul.addr %s189, 4
      %s191 = scalar_lea.vmem %s0, %s190
      %p192 = pneg %p49
      %p193 = pneg %p46
      %p194 = pneg %p70
      %p195 = pneg %p67
      %p196 = pneg %p91
      %p197 = pneg %p88
      %p198 = pneg %p119
      %p199 = pneg %p116
      %s200 = smul.u32 16, %s21
      %p201 = scmp.lt.s32.totalorder %s20, 1
      %s202 = scalar_select %p201, %s20, 1
      %p203 = scmp.lt.s32.totalorder %s200, 15
      %s204 = scalar_select %p203, %s200, 15
      %s205 = smul.addr %s204, 2
      %s206 = smul.addr %s202, 32
      %s207 = sadd.s32 %s205, %s206
      %s208 = smul.addr %s207, 8
      %s209 = scalar_lea.vmem %s3, %s208
      %p210 = pneg %p147
      %p211 = pneg %p144
      %p212 = scmp.lt.s32.totalorder %s20, 1
      %s213 = scalar_select %p212, %s20, 1
      %p214 = scmp.lt.s32.totalorder %s21, 0
      %s215 = scalar_select %p214, %s21, 0
      %s216 = sadd.s32 %s215, %s213
      %s217 = smul.addr %s216, 2
      %s218 = scalar_lea.vmem %s4, %s217
      %p219 = scmp.lt.s32.totalorder %s20, 1
      %s220 = scalar_select %p219, %s20, 1
      %s221 = smul.addr %s220, 54
      %s222 = smul.addr %s221, 4
      %s223 = scalar_lea.vmem %s0, %s222
      %s224 = smul.u32 16, %s21
      %p225 = scmp.lt.s32.totalorder %s20, 1
      %s226 = scalar_select %p225, %s20, 1
      %p227 = scmp.lt.s32.totalorder %s224, 15
      %s228 = scalar_select %p227, %s224, 15
      %s229 = smul.addr %s228, 2
      %s230 = smul.addr %s226, 32
      %s231 = sadd.s32 %s229, %s230
      %s232 = smul.addr %s231, 8
      %s233 = scalar_lea.vmem %s3, %s232
      %s234 = smul.u32 16, %s21
      %p235 = scmp.lt.s32.totalorder %s20, 1
      %s236 = scalar_select %p235, %s20, 1
      %p237 = scmp.lt.s32.totalorder %s21, 0
      %s238 = scalar_select %p237, %s21, 0
      %s239 = sadd.s32 %s238, %s236
      %s240 = smul.addr %s239, 2
      %s241 = scalar_lea.vmem %s4, %s240
      %s242 = smul.u32 %s21, 16
      %s243 = smul.u32 %s242, 3
      %s244 = smul.addr %s243, 4
      %s245 = scalar_lea.vmem %s223, %s244
      %v246 = vld [vmem:[%s245] sm:$0xf]
      %v247 = vld [vmem:[%s245 + $0x4] sm:$0xf]
      %v248 = vld [vmem:[%s245 + $0x8] sm:$0x1]
      %v249 = vld [vmem:[%s245 + $0xc] sm:$0xf]
      %v250 = vld [vmem:[%s245 + $0x10] sm:$0xf]
      %v251 = vld [vmem:[%s245 + $0x14] sm:$0x1]
      %v252 = vld [vmem:[%s245 + $0x18] sm:$0xf]
      %v253 = vld [vmem:[%s245 + $0x1c] sm:$0xf]
      %v254 = vld [vmem:[%s245 + $0x20] sm:$0x1]
      %v255 = vld [vmem:[%s245 + $0x24] sm:$0xf]
      %v256 = vld [vmem:[%s245 + $0x28] sm:$0xf]
      %v257 = vld [vmem:[%s245 + $0x2c] sm:$0x1]
      %v258 = vld [vmem:[%s245 + $0x30] sm:$0xf]
      %v259 = vld [vmem:[%s245 + $0x34] sm:$0xf]
      %v260 = vld [vmem:[%s245 + $0x38] sm:$0x1]
      %v261 = vld [vmem:[%s245 + $0x3c] sm:$0xf]
      %v262 = vld [vmem:[%s245 + $0x40] sm:$0xf]
      %v263 = vld [vmem:[%s245 + $0x44] sm:$0x1]
      %v264 = vld [vmem:[%s245 + $0x48] sm:$0xf]
      %v265 = vld [vmem:[%s245 + $0x4c] sm:$0xf]
      %v266 = vld [vmem:[%s245 + $0x50] sm:$0x1]
      %v267 = vld [vmem:[%s245 + $0x54] sm:$0xf]
      %v268 = vld [vmem:[%s245 + $0x58] sm:$0xf]
      %v269 = vld [vmem:[%s245 + $0x5c] sm:$0x1]
      %v270 = vld [vmem:[%s245 + $0x60] sm:$0xf]
      %v271 = vld [vmem:[%s245 + $0x64] sm:$0xf]
      %v272 = vld [vmem:[%s245 + $0x68] sm:$0x1]
      %v273 = vld [vmem:[%s245 + $0x6c] sm:$0xf]
      %v274 = vld [vmem:[%s245 + $0x70] sm:$0xf]
      %v275 = vld [vmem:[%s245 + $0x74] sm:$0x1]
      %v276 = vld [vmem:[%s245 + $0x78] sm:$0xf]
      %v277 = vld [vmem:[%s245 + $0x7c] sm:$0xf]
      %v278 = vld [vmem:[%s245 + $0x80] sm:$0x1]
      %v279 = vld [vmem:[%s245 + $0x84] sm:$0xf]
      %v280 = vld [vmem:[%s245 + $0x88] sm:$0xf]
      %v281 = vld [vmem:[%s245 + $0x8c] sm:$0x1]
      %v282 = vld [vmem:[%s245 + $0x90] sm:$0xf]
      %v283 = vld [vmem:[%s245 + $0x94] sm:$0xf]
      %v284 = vld [vmem:[%s245 + $0x98] sm:$0x1]
      %v285 = vld [vmem:[%s245 + $0x9c] sm:$0xf]
      %v286 = vld [vmem:[%s245 + $0xa0] sm:$0xf]
      %v287 = vld [vmem:[%s245 + $0xa4] sm:$0x1]
      %v288 = vld [vmem:[%s245 + $0xa8] sm:$0xf]
      %v289 = vld [vmem:[%s245 + $0xac] sm:$0xf]
      %v290 = vld [vmem:[%s245 + $0xb0] sm:$0x1]
      %v291 = vld [vmem:[%s245 + $0xb4] sm:$0xf]
      %v292 = vld [vmem:[%s245 + $0xb8] sm:$0xf]
      %v293 = vld [vmem:[%s245 + $0xbc] sm:$0x1]
      %v294 = vld [vmem:[%s1] sm:$0xf]
      %v295 = vld [vmem:[%s1 + $0x4] sm:$0xf]
      %v296 = vld [vmem:[%s1 + $0x8] sm:$0xf]
      %v297 = vld [vmem:[%s1 + $0xc] sm:$0xf]
      %v298 = vld [vmem:[%s1 + $0x10] sm:$0xf]
      %v299 = vld [vmem:[%s1 + $0x14] sm:$0xf]
      %v300 = vld [vmem:[%s1 + $0x18] sm:$0xf]
      %v301 = vld [vmem:[%s1 + $0x1c] sm:$0xf]
      %v302 = vld [vmem:[%s1 + $0x20] sm:$0xf]
      %v303 = vld [vmem:[%s1 + $0x24] sm:$0xf]
      %v304 = vld [vmem:[%s1 + $0x28] sm:$0xf]
      %v305 = vld [vmem:[%s1 + $0x2c] sm:$0xf]
      %v306 = vld [vmem:[%s1 + $0x30] sm:$0xf]
      %v307 = vld [vmem:[%s1 + $0x34] sm:$0xf]
      %v308 = vld [vmem:[%s1 + $0x38] sm:$0xf]
      %v309 = vld [vmem:[%s1 + $0x3c] sm:$0xf]
      %vm310 = vsmask.f32 3328
      %vm311 = vsmask.f32 7440
      %vm312 = vmor %vm310, %vm311
      %v314 = vshrl.u32 %v246, 16
      %v316 = vrot.slane %v314, 4
      %v317 = vshll.u32 %v246, 16
      %v319 = vrot.slane %v317, 5
      %v320 = vor.u32 %v316, %v319
      %v321 = vrot.slane %v320, 4
      %v323 = vshll.u32 %v247, 16
      %v325 = vrot.slane %v323, 5
      %v326 = vsel %vm312, %v321, %v325
      %v327 = vshrl.u32 %v247, 16
      %v329 = vrot.slane %v327, 4
      %v330 = vor.u32 %v329, %v325
      %v331 = vrot.slane %v330, 4
      %v333 = vshll.u32 %v248, 16
      %v335 = vrot.slane %v333, 5
      %v336 = vsel %vm312, %v331, %v335
      %v338 = vshrl.u32 %v249, 16
      %v340 = vrot.slane %v338, 4
      %v341 = vshll.u32 %v249, 16
      %v343 = vrot.slane %v341, 5
      %v344 = vor.u32 %v340, %v343
      %v345 = vrot.slane %v344, 4
      %v347 = vshll.u32 %v250, 16
      %v349 = vrot.slane %v347, 5
      %v350 = vsel %vm312, %v345, %v349
      %v351 = vshrl.u32 %v250, 16
      %v353 = vrot.slane %v351, 4
      %v354 = vor.u32 %v353, %v349
      %v355 = vrot.slane %v354, 4
      %v357 = vshll.u32 %v251, 16
      %v359 = vrot.slane %v357, 5
      %v360 = vsel %vm312, %v355, %v359
      %v362 = vshrl.u32 %v252, 16
      %v364 = vrot.slane %v362, 4
      %v365 = vshll.u32 %v252, 16
      %v367 = vrot.slane %v365, 5
      %v368 = vor.u32 %v364, %v367
      %v369 = vrot.slane %v368, 4
      %v371 = vshll.u32 %v253, 16
      %v373 = vrot.slane %v371, 5
      %v374 = vsel %vm312, %v369, %v373
      %v375 = vshrl.u32 %v253, 16
      %v377 = vrot.slane %v375, 4
      %v378 = vor.u32 %v377, %v373
      %v379 = vrot.slane %v378, 4
      %v381 = vshll.u32 %v254, 16
      %v383 = vrot.slane %v381, 5
      %v384 = vsel %vm312, %v379, %v383
      %v386 = vshrl.u32 %v255, 16
      %v388 = vrot.slane %v386, 4
      %v389 = vshll.u32 %v255, 16
      %v391 = vrot.slane %v389, 5
      %v392 = vor.u32 %v388, %v391
      %v393 = vrot.slane %v392, 4
      %v395 = vshll.u32 %v256, 16
      %v397 = vrot.slane %v395, 5
      %v398 = vsel %vm312, %v393, %v397
      %v399 = vshrl.u32 %v256, 16
      %v401 = vrot.slane %v399, 4
      %v402 = vor.u32 %v401, %v397
      %v403 = vrot.slane %v402, 4
      %v405 = vshll.u32 %v257, 16
      %v407 = vrot.slane %v405, 5
      %v408 = vsel %vm312, %v403, %v407
      %v410 = vshrl.u32 %v258, 16
      %v412 = vrot.slane %v410, 4
      %v413 = vshll.u32 %v258, 16
      %v415 = vrot.slane %v413, 5
      %v416 = vor.u32 %v412, %v415
      %v417 = vrot.slane %v416, 4
      %v419 = vshll.u32 %v259, 16
      %v421 = vrot.slane %v419, 5
      %v422 = vsel %vm312, %v417, %v421
      %v423 = vshrl.u32 %v259, 16
      %v425 = vrot.slane %v423, 4
      %v426 = vor.u32 %v425, %v421
      %v427 = vrot.slane %v426, 4
      %v429 = vshll.u32 %v260, 16
      %v431 = vrot.slane %v429, 5
      %v432 = vsel %vm312, %v427, %v431
      %v434 = vshrl.u32 %v261, 16
      %v436 = vrot.slane %v434, 4
      %v437 = vshll.u32 %v261, 16
      %v439 = vrot.slane %v437, 5
      %v440 = vor.u32 %v436, %v439
      %v441 = vrot.slane %v440, 4
      %v443 = vshll.u32 %v262, 16
      %v445 = vrot.slane %v443, 5
      %v446 = vsel %vm312, %v441, %v445
      %v447 = vshrl.u32 %v262, 16
      %v449 = vrot.slane %v447, 4
      %v450 = vor.u32 %v449, %v445
      %v451 = vrot.slane %v450, 4
      %v453 = vshll.u32 %v263, 16
      %v455 = vrot.slane %v453, 5
      %v456 = vsel %vm312, %v451, %v455
      %v458 = vshrl.u32 %v264, 16
      %v460 = vrot.slane %v458, 4
      %v461 = vshll.u32 %v264, 16
      %v463 = vrot.slane %v461, 5
      %v464 = vor.u32 %v460, %v463
      %v465 = vrot.slane %v464, 4
      %v467 = vshll.u32 %v265, 16
      %v469 = vrot.slane %v467, 5
      %v470 = vsel %vm312, %v465, %v469
      %v471 = vshrl.u32 %v265, 16
      %v473 = vrot.slane %v471, 4
      %v474 = vor.u32 %v473, %v469
      %v475 = vrot.slane %v474, 4
      %v477 = vshll.u32 %v266, 16
      %v479 = vrot.slane %v477, 5
      %v480 = vsel %vm312, %v475, %v479
      %v482 = vshrl.u32 %v267, 16
      %v484 = vrot.slane %v482, 4
      %v485 = vshll.u32 %v267, 16
      %v487 = vrot.slane %v485, 5
      %v488 = vor.u32 %v484, %v487
      %v489 = vrot.slane %v488, 4
      %v491 = vshll.u32 %v268, 16
      %v493 = vrot.slane %v491, 5
      %v494 = vsel %vm312, %v489, %v493
      %v495 = vshrl.u32 %v268, 16
      %v497 = vrot.slane %v495, 4
      %v498 = vor.u32 %v497, %v493
      %v499 = vrot.slane %v498, 4
      %v501 = vshll.u32 %v269, 16
      %v503 = vrot.slane %v501, 5
      %v504 = vsel %vm312, %v499, %v503
      %v506 = vshrl.u32 %v270, 16
      %v508 = vrot.slane %v506, 4
      %v509 = vshll.u32 %v270, 16
      %v511 = vrot.slane %v509, 5
      %v512 = vor.u32 %v508, %v511
      %v513 = vrot.slane %v512, 4
      %v515 = vshll.u32 %v271, 16
      %v517 = vrot.slane %v515, 5
      %v518 = vsel %vm312, %v513, %v517
      %v519 = vshrl.u32 %v271, 16
      %v521 = vrot.slane %v519, 4
      %v522 = vor.u32 %v521, %v517
      %v523 = vrot.slane %v522, 4
      %v525 = vshll.u32 %v272, 16
      %v527 = vrot.slane %v525, 5
      %v528 = vsel %vm312, %v523, %v527
      %v530 = vshrl.u32 %v273, 16
      %v532 = vrot.slane %v530, 4
      %v533 = vshll.u32 %v273, 16
      %v535 = vrot.slane %v533, 5
      %v536 = vor.u32 %v532, %v535
      %v537 = vrot.slane %v536, 4
      %v539 = vshll.u32 %v274, 16
      %v541 = vrot.slane %v539, 5
      %v542 = vsel %vm312, %v537, %v541
      %v543 = vshrl.u32 %v274, 16
      %v545 = vrot.slane %v543, 4
      %v546 = vor.u32 %v545, %v541
      %v547 = vrot.slane %v546, 4
      %v549 = vshll.u32 %v275, 16
      %v551 = vrot.slane %v549, 5
      %v552 = vsel %vm312, %v547, %v551
      %v554 = vshrl.u32 %v276, 16
      %v556 = vrot.slane %v554, 4
      %v557 = vshll.u32 %v276, 16
      %v559 = vrot.slane %v557, 5
      %v560 = vor.u32 %v556, %v559
      %v561 = vrot.slane %v560, 4
      %v563 = vshll.u32 %v277, 16
      %v565 = vrot.slane %v563, 5
      %v566 = vsel %vm312, %v561, %v565
      %v567 = vshrl.u32 %v277, 16
      %v569 = vrot.slane %v567, 4
      %v570 = vor.u32 %v569, %v565
      %v571 = vrot.slane %v570, 4
      %v573 = vshll.u32 %v278, 16
      %v575 = vrot.slane %v573, 5
      %v576 = vsel %vm312, %v571, %v575
      %v578 = vshrl.u32 %v279, 16
      %v580 = vrot.slane %v578, 4
      %v581 = vshll.u32 %v279, 16
      %v583 = vrot.slane %v581, 5
      %v584 = vor.u32 %v580, %v583
      %v585 = vrot.slane %v584, 4
      %v587 = vshll.u32 %v280, 16
      %v589 = vrot.slane %v587, 5
      %v590 = vsel %vm312, %v585, %v589
      %v591 = vshrl.u32 %v280, 16
      %v593 = vrot.slane %v591, 4
      %v594 = vor.u32 %v593, %v589
      %v595 = vrot.slane %v594, 4
      %v597 = vshll.u32 %v281, 16
      %v599 = vrot.slane %v597, 5
      %v600 = vsel %vm312, %v595, %v599
      %v602 = vshrl.u32 %v282, 16
      %v604 = vrot.slane %v602, 4
      %v605 = vshll.u32 %v282, 16
      %v607 = vrot.slane %v605, 5
      %v608 = vor.u32 %v604, %v607
      %v609 = vrot.slane %v608, 4
      %v611 = vshll.u32 %v283, 16
      %v613 = vrot.slane %v611, 5
      %v614 = vsel %vm312, %v609, %v613
      %v615 = vshrl.u32 %v283, 16
      %v617 = vrot.slane %v615, 4
      %v618 = vor.u32 %v617, %v613
      %v619 = vrot.slane %v618, 4
      %v621 = vshll.u32 %v284, 16
      %v623 = vrot.slane %v621, 5
      %v624 = vsel %vm312, %v619, %v623
      %v626 = vshrl.u32 %v285, 16
      %v628 = vrot.slane %v626, 4
      %v629 = vshll.u32 %v285, 16
      %v631 = vrot.slane %v629, 5
      %v632 = vor.u32 %v628, %v631
      %v633 = vrot.slane %v632, 4
      %v635 = vshll.u32 %v286, 16
      %v637 = vrot.slane %v635, 5
      %v638 = vsel %vm312, %v633, %v637
      %v639 = vshrl.u32 %v286, 16
      %v641 = vrot.slane %v639, 4
      %v642 = vor.u32 %v641, %v637
      %v643 = vrot.slane %v642, 4
      %v645 = vshll.u32 %v287, 16
      %v647 = vrot.slane %v645, 5
      %v648 = vsel %vm312, %v643, %v647
      %v650 = vshrl.u32 %v288, 16
      %v652 = vrot.slane %v650, 4
      %v653 = vshll.u32 %v288, 16
      %v655 = vrot.slane %v653, 5
      %v656 = vor.u32 %v652, %v655
      %v657 = vrot.slane %v656, 4
      %v659 = vshll.u32 %v289, 16
      %v661 = vrot.slane %v659, 5
      %v662 = vsel %vm312, %v657, %v661
      %v663 = vshrl.u32 %v289, 16
      %v665 = vrot.slane %v663, 4
      %v666 = vor.u32 %v665, %v661
      %v667 = vrot.slane %v666, 4
      %v669 = vshll.u32 %v290, 16
      %v671 = vrot.slane %v669, 5
      %v672 = vsel %vm312, %v667, %v671
      %v674 = vshrl.u32 %v291, 16
      %v676 = vrot.slane %v674, 4
      %v677 = vshll.u32 %v291, 16
      %v679 = vrot.slane %v677, 5
      %v680 = vor.u32 %v676, %v679
      %v681 = vrot.slane %v680, 4
      %v683 = vshll.u32 %v292, 16
      %v685 = vrot.slane %v683, 5
      %v686 = vsel %vm312, %v681, %v685
      %v687 = vshrl.u32 %v292, 16
      %v689 = vrot.slane %v687, 4
      %v690 = vor.u32 %v689, %v685
      %v691 = vrot.slane %v690, 4
      %v693 = vshll.u32 %v293, 16
      %v695 = vrot.slane %v693, 5
      %v696 = vsel %vm312, %v691, %v695
      %s697 = scalar_lea.vmem %s1, 64
      %v698 = vld [vmem:[%s697] sm:$0xf]
      %v699 = vld [vmem:[%s697 + $0x4] sm:$0xf]
      %v700 = vld [vmem:[%s697 + $0x8] sm:$0xf]
      %v701 = vld [vmem:[%s697 + $0xc] sm:$0xf]
      %v702 = vld [vmem:[%s697 + $0x10] sm:$0xf]
      %v703 = vld [vmem:[%s697 + $0x14] sm:$0xf]
      %v704 = vld [vmem:[%s697 + $0x18] sm:$0xf]
      %v705 = vld [vmem:[%s697 + $0x1c] sm:$0xf]
      %v706 = vld [vmem:[%s697 + $0x20] sm:$0xf]
      %v707 = vld [vmem:[%s697 + $0x24] sm:$0xf]
      %v708 = vld [vmem:[%s697 + $0x28] sm:$0xf]
      %v709 = vld [vmem:[%s697 + $0x2c] sm:$0xf]
      %v710 = vld [vmem:[%s697 + $0x30] sm:$0xf]
      %v711 = vld [vmem:[%s697 + $0x34] sm:$0xf]
      %v712 = vld [vmem:[%s697 + $0x38] sm:$0xf]
      %v713 = vld [vmem:[%s697 + $0x3c] sm:$0xf]
      %v714 = vunpack.c.l.b16 %v326
      %v715 = vunpack.c.l.b16 %v336
      %v716 = vunpack.c.l.b16 %v350
      %v717 = vunpack.c.l.b16 %v360
      %v718 = vunpack.c.l.b16 %v374
      %v719 = vunpack.c.l.b16 %v384
      %v720 = vunpack.c.l.b16 %v398
      %v721 = vunpack.c.l.b16 %v408
      %v722 = vunpack.c.l.b16 %v422
      %v723 = vunpack.c.l.b16 %v432
      %v724 = vunpack.c.l.b16 %v446
      %v725 = vunpack.c.l.b16 %v456
      %v726 = vunpack.c.l.b16 %v470
      %v727 = vunpack.c.l.b16 %v480
      %v728 = vunpack.c.l.b16 %v494
      %v729 = vunpack.c.l.b16 %v504
      %v730 = vunpack.c.l.b16 %v518
      %v731 = vunpack.c.l.b16 %v528
      %v732 = vunpack.c.l.b16 %v542
      %v733 = vunpack.c.l.b16 %v552
      %v734 = vunpack.c.l.b16 %v566
      %v735 = vunpack.c.l.b16 %v576
      %v736 = vunpack.c.l.b16 %v590
      %v737 = vunpack.c.l.b16 %v600
      %v738 = vunpack.c.l.b16 %v614
      %v739 = vunpack.c.l.b16 %v624
      %v740 = vunpack.c.l.b16 %v638
      %v741 = vunpack.c.l.b16 %v648
      %v742 = vunpack.c.l.b16 %v662
      %v743 = vunpack.c.l.b16 %v672
      %v744 = vunpack.c.l.b16 %v686
      %v745 = vunpack.c.l.b16 %v696
      %v746 = vpack.c.b16 %v715, %v714
      %v747 = vpack.c.b16 %v717, %v716
      %v748 = vpack.c.b16 %v719, %v718
      %v749 = vpack.c.b16 %v721, %v720
      %v750 = vpack.c.b16 %v723, %v722
      %v751 = vpack.c.b16 %v725, %v724
      %v752 = vpack.c.b16 %v727, %v726
      %v753 = vpack.c.b16 %v729, %v728
      %v754 = vpack.c.b16 %v731, %v730
      %v755 = vpack.c.b16 %v733, %v732
      %v756 = vpack.c.b16 %v735, %v734
      %v757 = vpack.c.b16 %v737, %v736
      %v758 = vpack.c.b16 %v739, %v738
      %v759 = vpack.c.b16 %v741, %v740
      %v760 = vpack.c.b16 %v743, %v742
      %v761 = vpack.c.b16 %v745, %v744
      %v794 = vunpack.c.l.b16 %v698
      %v795 = vunpack.c.l.b16 %v699
      %v796 = vunpack.c.l.b16 %v700
      %v797 = vunpack.c.l.b16 %v701
      %v798 = vunpack.c.l.b16 %v702
      %v799 = vunpack.c.l.b16 %v703
      %v800 = vunpack.c.l.b16 %v704
      %v801 = vunpack.c.l.b16 %v705
      %v802 = vunpack.c.l.b16 %v706
      %v803 = vunpack.c.l.b16 %v707
      %v804 = vunpack.c.l.b16 %v708
      %v805 = vunpack.c.l.b16 %v709
      %v806 = vunpack.c.l.b16 %v710
      %v807 = vunpack.c.l.b16 %v711
      %v808 = vunpack.c.l.b16 %v712
      %v809 = vunpack.c.l.b16 %v713
      %v810 = vpack.c.b16 %v795, %v794
      %v811 = vpack.c.b16 %v797, %v796
      %v812 = vpack.c.b16 %v799, %v798
      %v813 = vpack.c.b16 %v801, %v800
      %v814 = vpack.c.b16 %v803, %v802
      %v815 = vpack.c.b16 %v805, %v804
      %v816 = vpack.c.b16 %v807, %v806
      %v817 = vpack.c.b16 %v809, %v808
      %826 = vmatpush.bf16.msra.mxu0 %v817
      %827 = vmatpush.bf16.msra.mxu0 %v816
      %828 = vmatpush.bf16.msra.mxu0 %v815
      %829 = vmatpush.bf16.msra.mxu0 %v814
      %830 = vmatpush.bf16.msra.mxu0 %v813
      %831 = vmatpush.bf16.msra.mxu0 %v812
      %832 = vmatpush.bf16.msra.mxu0 %v811
      %833 = vmatpush.bf16.msra.mxu0 %v810
      %834 = vmatmul.bf16.gmra.mxu0 %v746
      %v835 = vpop.f32.mrf.mxu0
      %v836 = vadd.f32 0.0, %v835
      %v837 = vpop.f32.mrf.mxu0
      %v838 = vadd.f32 0.0, %v837
      %839 = vmatmul.bf16.gmra.mxu0 %v747
      %v840 = vpop.f32.mrf.mxu0
      %v841 = vadd.f32 0.0, %v840
      %v842 = vpop.f32.mrf.mxu0
      %v843 = vadd.f32 0.0, %v842
      %844 = vmatmul.bf16.gmra.mxu0 %v748
      %v845 = vpop.f32.mrf.mxu0
      %v846 = vadd.f32 0.0, %v845
      %v847 = vpop.f32.mrf.mxu0
      %v848 = vadd.f32 0.0, %v847
      %849 = vmatmul.bf16.gmra.mxu0 %v749
      %v850 = vpop.f32.mrf.mxu0
      %v851 = vadd.f32 0.0, %v850
      %v852 = vpop.f32.mrf.mxu0
      %v853 = vadd.f32 0.0, %v852
      %854 = vmatmul.bf16.gmra.mxu0 %v750
      %v855 = vpop.f32.mrf.mxu0
      %v856 = vadd.f32 0.0, %v855
      %v857 = vpop.f32.mrf.mxu0
      %v858 = vadd.f32 0.0, %v857
      %859 = vmatmul.bf16.gmra.mxu0 %v751
      %v860 = vpop.f32.mrf.mxu0
      %v861 = vadd.f32 0.0, %v860
      %v862 = vpop.f32.mrf.mxu0
      %v863 = vadd.f32 0.0, %v862
      %864 = vmatmul.bf16.gmra.mxu0 %v752
      %v865 = vpop.f32.mrf.mxu0
      %v866 = vadd.f32 0.0, %v865
      %v867 = vpop.f32.mrf.mxu0
      %v868 = vadd.f32 0.0, %v867
      %869 = vmatmul.bf16.gmra.mxu0 %v753
      %v870 = vpop.f32.mrf.mxu0
      %v871 = vadd.f32 0.0, %v870
      %v872 = vpop.f32.mrf.mxu0
      %v873 = vadd.f32 0.0, %v872
      %874 = vmatmul.bf16.gmra.mxu0 %v754
      %v875 = vpop.f32.mrf.mxu0
      %v876 = vadd.f32 0.0, %v875
      %v877 = vpop.f32.mrf.mxu0
      %v878 = vadd.f32 0.0, %v877
      %879 = vmatmul.bf16.gmra.mxu0 %v755
      %v880 = vpop.f32.mrf.mxu0
      %v881 = vadd.f32 0.0, %v880
      %v882 = vpop.f32.mrf.mxu0
      %v883 = vadd.f32 0.0, %v882
      %884 = vmatmul.bf16.gmra.mxu0 %v756
      %v885 = vpop.f32.mrf.mxu0
      %v886 = vadd.f32 0.0, %v885
      %v887 = vpop.f32.mrf.mxu0
      %v888 = vadd.f32 0.0, %v887
      %889 = vmatmul.bf16.gmra.mxu0 %v757
      %v890 = vpop.f32.mrf.mxu0
      %v891 = vadd.f32 0.0, %v890
      %v892 = vpop.f32.mrf.mxu0
      %v893 = vadd.f32 0.0, %v892
      %894 = vmatmul.bf16.gmra.mxu0 %v758
      %v895 = vpop.f32.mrf.mxu0
      %v896 = vadd.f32 0.0, %v895
      %v897 = vpop.f32.mrf.mxu0
      %v898 = vadd.f32 0.0, %v897
      %899 = vmatmul.bf16.gmra.mxu0 %v759
      %v900 = vpop.f32.mrf.mxu0
      %v901 = vadd.f32 0.0, %v900
      %v902 = vpop.f32.mrf.mxu0
      %v903 = vadd.f32 0.0, %v902
      %904 = vmatmul.bf16.gmra.mxu0 %v760
      %v905 = vpop.f32.mrf.mxu0
      %v906 = vadd.f32 0.0, %v905
      %v907 = vpop.f32.mrf.mxu0
      %v908 = vadd.f32 0.0, %v907
      %909 = vmatmul.bf16.gmra.mxu0 %v761
      %v910 = vpop.f32.mrf.mxu0
      %v911 = vadd.f32 0.0, %v910
      %v912 = vpop.f32.mrf.mxu0
      %v913 = vadd.f32 0.0, %v912
      %914 = vdwg.mxu0
      %v947 = vunpack.c.l.b16 %v246
      %v948 = vunpack.c.l.b16 %v247
      %v949 = vunpack.c.l.b16 %v249
      %v950 = vunpack.c.l.b16 %v250
      %v951 = vunpack.c.l.b16 %v252
      %v952 = vunpack.c.l.b16 %v253
      %v953 = vunpack.c.l.b16 %v255
      %v954 = vunpack.c.l.b16 %v256
      %v955 = vunpack.c.l.b16 %v258
      %v956 = vunpack.c.l.b16 %v259
      %v957 = vunpack.c.l.b16 %v261
      %v958 = vunpack.c.l.b16 %v262
      %v959 = vunpack.c.l.b16 %v264
      %v960 = vunpack.c.l.b16 %v265
      %v961 = vunpack.c.l.b16 %v267
      %v962 = vunpack.c.l.b16 %v268
      %v963 = vunpack.c.l.b16 %v270
      %v964 = vunpack.c.l.b16 %v271
      %v965 = vunpack.c.l.b16 %v273
      %v966 = vunpack.c.l.b16 %v274
      %v967 = vunpack.c.l.b16 %v276
      %v968 = vunpack.c.l.b16 %v277
      %v969 = vunpack.c.l.b16 %v279
      %v970 = vunpack.c.l.b16 %v280
      %v971 = vunpack.c.l.b16 %v282
      %v972 = vunpack.c.l.b16 %v283
      %v973 = vunpack.c.l.b16 %v285
      %v974 = vunpack.c.l.b16 %v286
      %v975 = vunpack.c.l.b16 %v288
      %v976 = vunpack.c.l.b16 %v289
      %v977 = vunpack.c.l.b16 %v291
      %v978 = vunpack.c.l.b16 %v292
      %v979 = vpack.c.b16 %v948, %v947
      %v980 = vpack.c.b16 %v950, %v949
      %v981 = vpack.c.b16 %v952, %v951
      %v982 = vpack.c.b16 %v954, %v953
      %v983 = vpack.c.b16 %v956, %v955
      %v984 = vpack.c.b16 %v958, %v957
      %v985 = vpack.c.b16 %v960, %v959
      %v986 = vpack.c.b16 %v962, %v961
      %v987 = vpack.c.b16 %v964, %v963
      %v988 = vpack.c.b16 %v966, %v965
      %v989 = vpack.c.b16 %v968, %v967
      %v990 = vpack.c.b16 %v970, %v969
      %v991 = vpack.c.b16 %v972, %v971
      %v992 = vpack.c.b16 %v974, %v973
      %v993 = vpack.c.b16 %v976, %v975
      %v994 = vpack.c.b16 %v978, %v977
      %v1027 = vunpack.c.l.b16 %v294
      %v1028 = vunpack.c.l.b16 %v295
      %v1029 = vunpack.c.l.b16 %v296
      %v1030 = vunpack.c.l.b16 %v297
      %v1031 = vunpack.c.l.b16 %v298
      %v1032 = vunpack.c.l.b16 %v299
      %v1033 = vunpack.c.l.b16 %v300
      %v1034 = vunpack.c.l.b16 %v301
      %v1035 = vunpack.c.l.b16 %v302
      %v1036 = vunpack.c.l.b16 %v303
      %v1037 = vunpack.c.l.b16 %v304
      %v1038 = vunpack.c.l.b16 %v305
      %v1039 = vunpack.c.l.b16 %v306
      %v1040 = vunpack.c.l.b16 %v307
      %v1041 = vunpack.c.l.b16 %v308
      %v1042 = vunpack.c.l.b16 %v309
      %v1043 = vpack.c.b16 %v1028, %v1027
      %v1044 = vpack.c.b16 %v1030, %v1029
      %v1045 = vpack.c.b16 %v1032, %v1031
      %v1046 = vpack.c.b16 %v1034, %v1033
      %v1047 = vpack.c.b16 %v1036, %v1035
      %v1048 = vpack.c.b16 %v1038, %v1037
      %v1049 = vpack.c.b16 %v1040, %v1039
      %v1050 = vpack.c.b16 %v1042, %v1041
      %1059 = vmatpush.bf16.msra.mxu0 %v1050
      %1060 = vmatpush.bf16.msra.mxu0 %v1049
      %1061 = vmatpush.bf16.msra.mxu0 %v1048
      %1062 = vmatpush.bf16.msra.mxu0 %v1047
      %1063 = vmatpush.bf16.msra.mxu0 %v1046
      %1064 = vmatpush.bf16.msra.mxu0 %v1045
      %1065 = vmatpush.bf16.msra.mxu0 %v1044
      %1066 = vmatpush.bf16.msra.mxu0 %v1043
      %1067 = vmatmul.bf16.gmra.mxu0 %v979
      %v1068 = vpop.f32.mrf.mxu0
      %v1069 = vadd.f32 %v836, %v1068
      %v1070 = vpop.f32.mrf.mxu0
      %v1071 = vadd.f32 %v838, %v1070
      %1072 = vmatmul.bf16.gmra.mxu0 %v980
      %v1073 = vpop.f32.mrf.mxu0
      %v1074 = vadd.f32 %v841, %v1073
      %v1075 = vpop.f32.mrf.mxu0
      %v1076 = vadd.f32 %v843, %v1075
      %1077 = vmatmul.bf16.gmra.mxu0 %v981
      %v1078 = vpop.f32.mrf.mxu0
      %v1079 = vadd.f32 %v846, %v1078
      %v1080 = vpop.f32.mrf.mxu0
      %v1081 = vadd.f32 %v848, %v1080
      %1082 = vmatmul.bf16.gmra.mxu0 %v982
      %v1083 = vpop.f32.mrf.mxu0
      %v1084 = vadd.f32 %v851, %v1083
      %v1085 = vpop.f32.mrf.mxu0
      %v1086 = vadd.f32 %v853, %v1085
      %1087 = vmatmul.bf16.gmra.mxu0 %v983
      %v1088 = vpop.f32.mrf.mxu0
      %v1089 = vadd.f32 %v856, %v1088
      %v1090 = vpop.f32.mrf.mxu0
      %v1091 = vadd.f32 %v858, %v1090
      %1092 = vmatmul.bf16.gmra.mxu0 %v984
      %v1093 = vpop.f32.mrf.mxu0
      %v1094 = vadd.f32 %v861, %v1093
      %v1095 = vpop.f32.mrf.mxu0
      %v1096 = vadd.f32 %v863, %v1095
      %1097 = vmatmul.bf16.gmra.mxu0 %v985
      %v1098 = vpop.f32.mrf.mxu0
      %v1099 = vadd.f32 %v866, %v1098
      %v1100 = vpop.f32.mrf.mxu0
      %v1101 = vadd.f32 %v868, %v1100
      %1102 = vmatmul.bf16.gmra.mxu0 %v986
      %v1103 = vpop.f32.mrf.mxu0
      %v1104 = vadd.f32 %v871, %v1103
      %v1105 = vpop.f32.mrf.mxu0
      %v1106 = vadd.f32 %v873, %v1105
      %1107 = vmatmul.bf16.gmra.mxu0 %v987
      %v1108 = vpop.f32.mrf.mxu0
      %v1109 = vadd.f32 %v876, %v1108
      %v1110 = vpop.f32.mrf.mxu0
      %v1111 = vadd.f32 %v878, %v1110
      %1112 = vmatmul.bf16.gmra.mxu0 %v988
      %v1113 = vpop.f32.mrf.mxu0
      %v1114 = vadd.f32 %v881, %v1113
      %v1115 = vpop.f32.mrf.mxu0
      %v1116 = vadd.f32 %v883, %v1115
      %1117 = vmatmul.bf16.gmra.mxu0 %v989
      %v1118 = vpop.f32.mrf.mxu0
      %v1119 = vadd.f32 %v886, %v1118
      %v1120 = vpop.f32.mrf.mxu0
      %v1121 = vadd.f32 %v888, %v1120
      %1122 = vmatmul.bf16.gmra.mxu0 %v990
      %v1123 = vpop.f32.mrf.mxu0
      %v1124 = vadd.f32 %v891, %v1123
      %v1125 = vpop.f32.mrf.mxu0
      %v1126 = vadd.f32 %v893, %v1125
      %1127 = vmatmul.bf16.gmra.mxu0 %v991
      %v1128 = vpop.f32.mrf.mxu0
      %v1129 = vadd.f32 %v896, %v1128
      %v1130 = vpop.f32.mrf.mxu0
      %v1131 = vadd.f32 %v898, %v1130
      %1132 = vmatmul.bf16.gmra.mxu0 %v992
      %v1133 = vpop.f32.mrf.mxu0
      %v1134 = vadd.f32 %v901, %v1133
      %v1135 = vpop.f32.mrf.mxu0
      %v1136 = vadd.f32 %v903, %v1135
      %1137 = vmatmul.bf16.gmra.mxu0 %v993
      %v1138 = vpop.f32.mrf.mxu0
      %v1139 = vadd.f32 %v906, %v1138
      %v1140 = vpop.f32.mrf.mxu0
      %v1141 = vadd.f32 %v908, %v1140
      %1142 = vmatmul.bf16.gmra.mxu0 %v994
      %v1143 = vpop.f32.mrf.mxu0
      %v1144 = vadd.f32 %v911, %v1143
      %v1145 = vpop.f32.mrf.mxu0
      %v1146 = vadd.f32 %v913, %v1145
      %1147 = vdwg.mxu0
      %vm1164 = vcmask 1042432
      %vm1165 = vcmask 1046532
      %vm1166 = vmor %vm1164, %vm1165
      %v1167 = vrot.slane %v246, 5
      %v1168 = vrot.slane %v1167, 4
      %v1169 = vrot.slane %v247, 5
      %v1170 = vsel %vm1166, %v1168, %v1169
      %v1171 = vrot.slane %v1169, 4
      %v1172 = vrot.slane %v248, 5
      %v1173 = vsel %vm1166, %v1171, %v1172
      %v1174 = vrot.slane %v249, 5
      %v1175 = vrot.slane %v1174, 4
      %v1176 = vrot.slane %v250, 5
      %v1177 = vsel %vm1166, %v1175, %v1176
      %v1178 = vrot.slane %v1176, 4
      %v1179 = vrot.slane %v251, 5
      %v1180 = vsel %vm1166, %v1178, %v1179
      %v1181 = vrot.slane %v252, 5
      %v1182 = vrot.slane %v1181, 4
      %v1183 = vrot.slane %v253, 5
      %v1184 = vsel %vm1166, %v1182, %v1183
      %v1185 = vrot.slane %v1183, 4
      %v1186 = vrot.slane %v254, 5
      %v1187 = vsel %vm1166, %v1185, %v1186
      %v1188 = vrot.slane %v255, 5
      %v1189 = vrot.slane %v1188, 4
      %v1190 = vrot.slane %v256, 5
      %v1191 = vsel %vm1166, %v1189, %v1190
      %v1192 = vrot.slane %v1190, 4
      %v1193 = vrot.slane %v257, 5
      %v1194 = vsel %vm1166, %v1192, %v1193
      %v1195 = vrot.slane %v258, 5
      %v1196 = vrot.slane %v1195, 4
      %v1197 = vrot.slane %v259, 5
      %v1198 = vsel %vm1166, %v1196, %v1197
      %v1199 = vrot.slane %v1197, 4
      %v1200 = vrot.slane %v260, 5
      %v1201 = vsel %vm1166, %v1199, %v1200
      %v1202 = vrot.slane %v261, 5
      %v1203 = vrot.slane %v1202, 4
      %v1204 = vrot.slane %v262, 5
      %v1205 = vsel %vm1166, %v1203, %v1204
      %v1206 = vrot.slane %v1204, 4
      %v1207 = vrot.slane %v263, 5
      %v1208 = vsel %vm1166, %v1206, %v1207
      %v1209 = vrot.slane %v264, 5
      %v1210 = vrot.slane %v1209, 4
      %v1211 = vrot.slane %v265, 5
      %v1212 = vsel %vm1166, %v1210, %v1211
      %v1213 = vrot.slane %v1211, 4
      %v1214 = vrot.slane %v266, 5
      %v1215 = vsel %vm1166, %v1213, %v1214
      %v1216 = vrot.slane %v267, 5
      %v1217 = vrot.slane %v1216, 4
      %v1218 = vrot.slane %v268, 5
      %v1219 = vsel %vm1166, %v1217, %v1218
      %v1220 = vrot.slane %v1218, 4
      %v1221 = vrot.slane %v269, 5
      %v1222 = vsel %vm1166, %v1220, %v1221
      %v1223 = vrot.slane %v270, 5
      %v1224 = vrot.slane %v1223, 4
      %v1225 = vrot.slane %v271, 5
      %v1226 = vsel %vm1166, %v1224, %v1225
      %v1227 = vrot.slane %v1225, 4
      %v1228 = vrot.slane %v272, 5
      %v1229 = vsel %vm1166, %v1227, %v1228
      %v1230 = vrot.slane %v273, 5
      %v1231 = vrot.slane %v1230, 4
      %v1232 = vrot.slane %v274, 5
      %v1233 = vsel %vm1166, %v1231, %v1232
      %v1234 = vrot.slane %v1232, 4
      %v1235 = vrot.slane %v275, 5
      %v1236 = vsel %vm1166, %v1234, %v1235
      %v1237 = vrot.slane %v276, 5
      %v1238 = vrot.slane %v1237, 4
      %v1239 = vrot.slane %v277, 5
      %v1240 = vsel %vm1166, %v1238, %v1239
      %v1241 = vrot.slane %v1239, 4
      %v1242 = vrot.slane %v278, 5
      %v1243 = vsel %vm1166, %v1241, %v1242
      %v1244 = vrot.slane %v279, 5
      %v1245 = vrot.slane %v1244, 4
      %v1246 = vrot.slane %v280, 5
      %v1247 = vsel %vm1166, %v1245, %v1246
      %v1248 = vrot.slane %v1246, 4
      %v1249 = vrot.slane %v281, 5
      %v1250 = vsel %vm1166, %v1248, %v1249
      %v1251 = vrot.slane %v282, 5
      %v1252 = vrot.slane %v1251, 4
      %v1253 = vrot.slane %v283, 5
      %v1254 = vsel %vm1166, %v1252, %v1253
      %v1255 = vrot.slane %v1253, 4
      %v1256 = vrot.slane %v284, 5
      %v1257 = vsel %vm1166, %v1255, %v1256
      %v1258 = vrot.slane %v285, 5
      %v1259 = vrot.slane %v1258, 4
      %v1260 = vrot.slane %v286, 5
      %v1261 = vsel %vm1166, %v1259, %v1260
      %v1262 = vrot.slane %v1260, 4
      %v1263 = vrot.slane %v287, 5
      %v1264 = vsel %vm1166, %v1262, %v1263
      %v1265 = vrot.slane %v288, 5
      %v1266 = vrot.slane %v1265, 4
      %v1267 = vrot.slane %v289, 5
      %v1268 = vsel %vm1166, %v1266, %v1267
      %v1269 = vrot.slane %v1267, 4
      %v1270 = vrot.slane %v290, 5
      %v1271 = vsel %vm1166, %v1269, %v1270
      %v1272 = vrot.slane %v291, 5
      %v1273 = vrot.slane %v1272, 4
      %v1274 = vrot.slane %v292, 5
      %v1275 = vsel %vm1166, %v1273, %v1274
      %v1276 = vrot.slane %v1274, 4
      %v1277 = vrot.slane %v293, 5
      %v1278 = vsel %vm1166, %v1276, %v1277
      %s1279 = scalar_lea.vmem %s1, 128
      %v1280 = vld [vmem:[%s1279] sm:$0xf]
      %v1281 = vld [vmem:[%s1279 + $0x4] sm:$0xf]
      %v1282 = vld [vmem:[%s1279 + $0x8] sm:$0xf]
      %v1283 = vld [vmem:[%s1279 + $0xc] sm:$0xf]
      %v1284 = vld [vmem:[%s1279 + $0x10] sm:$0xf]
      %v1285 = vld [vmem:[%s1279 + $0x14] sm:$0xf]
      %v1286 = vld [vmem:[%s1279 + $0x18] sm:$0xf]
      %v1287 = vld [vmem:[%s1279 + $0x1c] sm:$0xf]
      %v1288 = vld [vmem:[%s1279 + $0x20] sm:$0xf]
      %v1289 = vld [vmem:[%s1279 + $0x24] sm:$0xf]
      %v1290 = vld [vmem:[%s1279 + $0x28] sm:$0xf]
      %v1291 = vld [vmem:[%s1279 + $0x2c] sm:$0xf]
      %v1292 = vld [vmem:[%s1279 + $0x30] sm:$0xf]
      %v1293 = vld [vmem:[%s1279 + $0x34] sm:$0xf]
      %v1294 = vld [vmem:[%s1279 + $0x38] sm:$0xf]
      %v1295 = vld [vmem:[%s1279 + $0x3c] sm:$0xf]
      %v1296 = vunpack.c.l.b16 %v1170
      %v1297 = vunpack.c.l.b16 %v1173
      %v1298 = vunpack.c.l.b16 %v1177
      %v1299 = vunpack.c.l.b16 %v1180
      %v1300 = vunpack.c.l.b16 %v1184
      %v1301 = vunpack.c.l.b16 %v1187
      %v1302 = vunpack.c.l.b16 %v1191
      %v1303 = vunpack.c.l.b16 %v1194
      %v1304 = vunpack.c.l.b16 %v1198
      %v1305 = vunpack.c.l.b16 %v1201
      %v1306 = vunpack.c.l.b16 %v1205
      %v1307 = vunpack.c.l.b16 %v1208
      %v1308 = vunpack.c.l.b16 %v1212
      %v1309 = vunpack.c.l.b16 %v1215
      %v1310 = vunpack.c.l.b16 %v1219
      %v1311 = vunpack.c.l.b16 %v1222
      %v1312 = vunpack.c.l.b16 %v1226
      %v1313 = vunpack.c.l.b16 %v1229
      %v1314 = vunpack.c.l.b16 %v1233
      %v1315 = vunpack.c.l.b16 %v1236
      %v1316 = vunpack.c.l.b16 %v1240
      %v1317 = vunpack.c.l.b16 %v1243
      %v1318 = vunpack.c.l.b16 %v1247
      %v1319 = vunpack.c.l.b16 %v1250
      %v1320 = vunpack.c.l.b16 %v1254
      %v1321 = vunpack.c.l.b16 %v1257
      %v1322 = vunpack.c.l.b16 %v1261
      %v1323 = vunpack.c.l.b16 %v1264
      %v1324 = vunpack.c.l.b16 %v1268
      %v1325 = vunpack.c.l.b16 %v1271
      %v1326 = vunpack.c.l.b16 %v1275
      %v1327 = vunpack.c.l.b16 %v1278
      %v1328 = vpack.c.b16 %v1297, %v1296
      %v1329 = vpack.c.b16 %v1299, %v1298
      %v1330 = vpack.c.b16 %v1301, %v1300
      %v1331 = vpack.c.b16 %v1303, %v1302
      %v1332 = vpack.c.b16 %v1305, %v1304
      %v1333 = vpack.c.b16 %v1307, %v1306
      %v1334 = vpack.c.b16 %v1309, %v1308
      %v1335 = vpack.c.b16 %v1311, %v1310
      %v1336 = vpack.c.b16 %v1313, %v1312
      %v1337 = vpack.c.b16 %v1315, %v1314
      %v1338 = vpack.c.b16 %v1317, %v1316
      %v1339 = vpack.c.b16 %v1319, %v1318
      %v1340 = vpack.c.b16 %v1321, %v1320
      %v1341 = vpack.c.b16 %v1323, %v1322
      %v1342 = vpack.c.b16 %v1325, %v1324
      %v1343 = vpack.c.b16 %v1327, %v1326
      %v1376 = vunpack.c.l.b16 %v1280
      %v1377 = vunpack.c.l.b16 %v1281
      %v1378 = vunpack.c.l.b16 %v1282
      %v1379 = vunpack.c.l.b16 %v1283
      %v1380 = vunpack.c.l.b16 %v1284
      %v1381 = vunpack.c.l.b16 %v1285
      %v1382 = vunpack.c.l.b16 %v1286
      %v1383 = vunpack.c.l.b16 %v1287
      %v1384 = vunpack.c.l.b16 %v1288
      %v1385 = vunpack.c.l.b16 %v1289
      %v1386 = vunpack.c.l.b16 %v1290
      %v1387 = vunpack.c.l.b16 %v1291
      %v1388 = vunpack.c.l.b16 %v1292
      %v1389 = vunpack.c.l.b16 %v1293
      %v1390 = vunpack.c.l.b16 %v1294
      %v1391 = vunpack.c.l.b16 %v1295
      %v1392 = vpack.c.b16 %v1377, %v1376
      %v1393 = vpack.c.b16 %v1379, %v1378
      %v1394 = vpack.c.b16 %v1381, %v1380
      %v1395 = vpack.c.b16 %v1383, %v1382
      %v1396 = vpack.c.b16 %v1385, %v1384
      %v1397 = vpack.c.b16 %v1387, %v1386
      %v1398 = vpack.c.b16 %v1389, %v1388
      %v1399 = vpack.c.b16 %v1391, %v1390
      %1408 = vmatpush.bf16.msra.mxu0 %v1399
      %1409 = vmatpush.bf16.msra.mxu0 %v1398
      %1410 = vmatpush.bf16.msra.mxu0 %v1397
      %1411 = vmatpush.bf16.msra.mxu0 %v1396
      %1412 = vmatpush.bf16.msra.mxu0 %v1395
      %1413 = vmatpush.bf16.msra.mxu0 %v1394
      %1414 = vmatpush.bf16.msra.mxu0 %v1393
      %1415 = vmatpush.bf16.msra.mxu0 %v1392
      %1416 = vmatmul.bf16.gmra.mxu0 %v1328
      %v1417 = vpop.f32.mrf.mxu0
      %v1418 = vadd.f32 0.0, %v1417
      %v1419 = vpop.f32.mrf.mxu0
      %v1420 = vadd.f32 0.0, %v1419
      %1421 = vmatmul.bf16.gmra.mxu0 %v1329
      %v1422 = vpop.f32.mrf.mxu0
      %v1423 = vadd.f32 0.0, %v1422
      %v1424 = vpop.f32.mrf.mxu0
      %v1425 = vadd.f32 0.0, %v1424
      %1426 = vmatmul.bf16.gmra.mxu0 %v1330
      %v1427 = vpop.f32.mrf.mxu0
      %v1428 = vadd.f32 0.0, %v1427
      %v1429 = vpop.f32.mrf.mxu0
      %v1430 = vadd.f32 0.0, %v1429
      %1431 = vmatmul.bf16.gmra.mxu0 %v1331
      %v1432 = vpop.f32.mrf.mxu0
      %v1433 = vadd.f32 0.0, %v1432
      %v1434 = vpop.f32.mrf.mxu0
      %v1435 = vadd.f32 0.0, %v1434
      %1436 = vmatmul.bf16.gmra.mxu0 %v1332
      %v1437 = vpop.f32.mrf.mxu0
      %v1438 = vadd.f32 0.0, %v1437
      %v1439 = vpop.f32.mrf.mxu0
      %v1440 = vadd.f32 0.0, %v1439
      %1441 = vmatmul.bf16.gmra.mxu0 %v1333
      %v1442 = vpop.f32.mrf.mxu0
      %v1443 = vadd.f32 0.0, %v1442
      %v1444 = vpop.f32.mrf.mxu0
      %v1445 = vadd.f32 0.0, %v1444
      %1446 = vmatmul.bf16.gmra.mxu0 %v1334
      %v1447 = vpop.f32.mrf.mxu0
      %v1448 = vadd.f32 0.0, %v1447
      %v1449 = vpop.f32.mrf.mxu0
      %v1450 = vadd.f32 0.0, %v1449
      %1451 = vmatmul.bf16.gmra.mxu0 %v1335
      %v1452 = vpop.f32.mrf.mxu0
      %v1453 = vadd.f32 0.0, %v1452
      %v1454 = vpop.f32.mrf.mxu0
      %v1455 = vadd.f32 0.0, %v1454
      %1456 = vmatmul.bf16.gmra.mxu0 %v1336
      %v1457 = vpop.f32.mrf.mxu0
      %v1458 = vadd.f32 0.0, %v1457
      %v1459 = vpop.f32.mrf.mxu0
      %v1460 = vadd.f32 0.0, %v1459
      %1461 = vmatmul.bf16.gmra.mxu0 %v1337
      %v1462 = vpop.f32.mrf.mxu0
      %v1463 = vadd.f32 0.0, %v1462
      %v1464 = vpop.f32.mrf.mxu0
      %v1465 = vadd.f32 0.0, %v1464
      %1466 = vmatmul.bf16.gmra.mxu0 %v1338
      %v1467 = vpop.f32.mrf.mxu0
      %v1468 = vadd.f32 0.0, %v1467
      %v1469 = vpop.f32.mrf.mxu0
      %v1470 = vadd.f32 0.0, %v1469
      %1471 = vmatmul.bf16.gmra.mxu0 %v1339
      %v1472 = vpop.f32.mrf.mxu0
      %v1473 = vadd.f32 0.0, %v1472
      %v1474 = vpop.f32.mrf.mxu0
      %v1475 = vadd.f32 0.0, %v1474
      %1476 = vmatmul.bf16.gmra.mxu0 %v1340
      %v1477 = vpop.f32.mrf.mxu0
      %v1478 = vadd.f32 0.0, %v1477
      %v1479 = vpop.f32.mrf.mxu0
      %v1480 = vadd.f32 0.0, %v1479
      %1481 = vmatmul.bf16.gmra.mxu0 %v1341
      %v1482 = vpop.f32.mrf.mxu0
      %v1483 = vadd.f32 0.0, %v1482
      %v1484 = vpop.f32.mrf.mxu0
      %v1485 = vadd.f32 0.0, %v1484
      %1486 = vmatmul.bf16.gmra.mxu0 %v1342
      %v1487 = vpop.f32.mrf.mxu0
      %v1488 = vadd.f32 0.0, %v1487
      %v1489 = vpop.f32.mrf.mxu0
      %v1490 = vadd.f32 0.0, %v1489
      %1491 = vmatmul.bf16.gmra.mxu0 %v1343
      %v1492 = vpop.f32.mrf.mxu0
      %v1493 = vadd.f32 0.0, %v1492
      %v1494 = vpop.f32.mrf.mxu0
      %v1495 = vadd.f32 0.0, %v1494
      %1496 = vdwg.mxu0
      %v1497 = vadd.f32 %v1069, %v1418
      %v1498 = vadd.f32 %v1071, %v1420
      %v1499 = vadd.f32 %v1074, %v1423
      %v1500 = vadd.f32 %v1076, %v1425
      %v1501 = vadd.f32 %v1079, %v1428
      %v1502 = vadd.f32 %v1081, %v1430
      %v1503 = vadd.f32 %v1084, %v1433
      %v1504 = vadd.f32 %v1086, %v1435
      %v1505 = vadd.f32 %v1089, %v1438
      %v1506 = vadd.f32 %v1091, %v1440
      %v1507 = vadd.f32 %v1094, %v1443
      %v1508 = vadd.f32 %v1096, %v1445
      %v1509 = vadd.f32 %v1099, %v1448
      %v1510 = vadd.f32 %v1101, %v1450
      %v1511 = vadd.f32 %v1104, %v1453
      %v1512 = vadd.f32 %v1106, %v1455
      %v1513 = vadd.f32 %v1109, %v1458
      %v1514 = vadd.f32 %v1111, %v1460
      %v1515 = vadd.f32 %v1114, %v1463
      %v1516 = vadd.f32 %v1116, %v1465
      %v1517 = vadd.f32 %v1119, %v1468
      %v1518 = vadd.f32 %v1121, %v1470
      %v1519 = vadd.f32 %v1124, %v1473
      %v1520 = vadd.f32 %v1126, %v1475
      %v1521 = vadd.f32 %v1129, %v1478
      %v1522 = vadd.f32 %v1131, %v1480
      %v1523 = vadd.f32 %v1134, %v1483
      %v1524 = vadd.f32 %v1136, %v1485
      %v1525 = vadd.f32 %v1139, %v1488
      %v1526 = vadd.f32 %v1141, %v1490
      %v1527 = vadd.f32 %v1144, %v1493
      %v1528 = vadd.f32 %v1146, %v1495
      %s1529 = sadd.s32 %s242, 1
      %s1530 = smul.u32 %s1529, 3
      %s1531 = smul.addr %s1530, 4
      %s1532 = scalar_lea.vmem %s223, %s1531
      %v1533 = vld [vmem:[%s1532] sm:$0xf]
      %v1534 = vld [vmem:[%s1532 + $0x4] sm:$0xf]
      %v1535 = vld [vmem:[%s1532 + $0x8] sm:$0x1]
      %v1536 = vld [vmem:[%s1532 + $0xc] sm:$0xf]
      %v1537 = vld [vmem:[%s1532 + $0x10] sm:$0xf]
      %v1538 = vld [vmem:[%s1532 + $0x14] sm:$0x1]
      %v1539 = vld [vmem:[%s1532 + $0x18] sm:$0xf]
      %v1540 = vld [vmem:[%s1532 + $0x1c] sm:$0xf]
      %v1541 = vld [vmem:[%s1532 + $0x20] sm:$0x1]
      %v1542 = vld [vmem:[%s1532 + $0x24] sm:$0xf]
      %v1543 = vld [vmem:[%s1532 + $0x28] sm:$0xf]
      %v1544 = vld [vmem:[%s1532 + $0x2c] sm:$0x1]
      %v1545 = vld [vmem:[%s1532 + $0x30] sm:$0xf]
      %v1546 = vld [vmem:[%s1532 + $0x34] sm:$0xf]
      %v1547 = vld [vmem:[%s1532 + $0x38] sm:$0x1]
      %v1548 = vld [vmem:[%s1532 + $0x3c] sm:$0xf]
      %v1549 = vld [vmem:[%s1532 + $0x40] sm:$0xf]
      %v1550 = vld [vmem:[%s1532 + $0x44] sm:$0x1]
      %v1551 = vld [vmem:[%s1532 + $0x48] sm:$0xf]
      %v1552 = vld [vmem:[%s1532 + $0x4c] sm:$0xf]
      %v1553 = vld [vmem:[%s1532 + $0x50] sm:$0x1]
      %v1554 = vld [vmem:[%s1532 + $0x54] sm:$0xf]
      %v1555 = vld [vmem:[%s1532 + $0x58] sm:$0xf]
      %v1556 = vld [vmem:[%s1532 + $0x5c] sm:$0x1]
      %v1557 = vld [vmem:[%s1532 + $0x60] sm:$0xf]
      %v1558 = vld [vmem:[%s1532 + $0x64] sm:$0xf]
      %v1559 = vld [vmem:[%s1532 + $0x68] sm:$0x1]
      %v1560 = vld [vmem:[%s1532 + $0x6c] sm:$0xf]
      %v1561 = vld [vmem:[%s1532 + $0x70] sm:$0xf]
      %v1562 = vld [vmem:[%s1532 + $0x74] sm:$0x1]
      %v1563 = vld [vmem:[%s1532 + $0x78] sm:$0xf]
      %v1564 = vld [vmem:[%s1532 + $0x7c] sm:$0xf]
      %v1565 = vld [vmem:[%s1532 + $0x80] sm:$0x1]
      %v1566 = vld [vmem:[%s1532 + $0x84] sm:$0xf]
      %v1567 = vld [vmem:[%s1532 + $0x88] sm:$0xf]
      %v1568 = vld [vmem:[%s1532 + $0x8c] sm:$0x1]
      %v1569 = vld [vmem:[%s1532 + $0x90] sm:$0xf]
      %v1570 = vld [vmem:[%s1532 + $0x94] sm:$0xf]
      %v1571 = vld [vmem:[%s1532 + $0x98] sm:$0x1]
      %v1572 = vld [vmem:[%s1532 + $0x9c] sm:$0xf]
      %v1573 = vld [vmem:[%s1532 + $0xa0] sm:$0xf]
      %v1574 = vld [vmem:[%s1532 + $0xa4] sm:$0x1]
      %v1575 = vld [vmem:[%s1532 + $0xa8] sm:$0xf]
      %v1576 = vld [vmem:[%s1532 + $0xac] sm:$0xf]
      %v1577 = vld [vmem:[%s1532 + $0xb0] sm:$0x1]
      %v1578 = vld [vmem:[%s1532 + $0xb4] sm:$0xf]
      %v1579 = vld [vmem:[%s1532 + $0xb8] sm:$0xf]
      %v1580 = vld [vmem:[%s1532 + $0xbc] sm:$0x1]
      %s1581 = scalar_lea.vmem %s1, 192
      %v1582 = vld [vmem:[%s1581] sm:$0xf]
      %v1583 = vld [vmem:[%s1581 + $0x4] sm:$0xf]
      %v1584 = vld [vmem:[%s1581 + $0x8] sm:$0xf]
      %v1585 = vld [vmem:[%s1581 + $0xc] sm:$0xf]
      %v1586 = vld [vmem:[%s1581 + $0x10] sm:$0xf]
      %v1587 = vld [vmem:[%s1581 + $0x14] sm:$0xf]
      %v1588 = vld [vmem:[%s1581 + $0x18] sm:$0xf]
      %v1589 = vld [vmem:[%s1581 + $0x1c] sm:$0xf]
      %v1590 = vld [vmem:[%s1581 + $0x20] sm:$0xf]
      %v1591 = vld [vmem:[%s1581 + $0x24] sm:$0xf]
      %v1592 = vld [vmem:[%s1581 + $0x28] sm:$0xf]
      %v1593 = vld [vmem:[%s1581 + $0x2c] sm:$0xf]
      %v1594 = vld [vmem:[%s1581 + $0x30] sm:$0xf]
      %v1595 = vld [vmem:[%s1581 + $0x34] sm:$0xf]
      %v1596 = vld [vmem:[%s1581 + $0x38] sm:$0xf]
      %v1597 = vld [vmem:[%s1581 + $0x3c] sm:$0xf]
      %v1630 = vunpack.c.l.b16 %v1533
      %v1631 = vunpack.c.l.b16 %v1534
      %v1632 = vunpack.c.l.b16 %v1536
      %v1633 = vunpack.c.l.b16 %v1537
      %v1634 = vunpack.c.l.b16 %v1539
      %v1635 = vunpack.c.l.b16 %v1540
      %v1636 = vunpack.c.l.b16 %v1542
      %v1637 = vunpack.c.l.b16 %v1543
      %v1638 = vunpack.c.l.b16 %v1545
      %v1639 = vunpack.c.l.b16 %v1546
      %v1640 = vunpack.c.l.b16 %v1548
      %v1641 = vunpack.c.l.b16 %v1549
      %v1642 = vunpack.c.l.b16 %v1551
      %v1643 = vunpack.c.l.b16 %v1552
      %v1644 = vunpack.c.l.b16 %v1554
      %v1645 = vunpack.c.l.b16 %v1555
      %v1646 = vunpack.c.l.b16 %v1557
      %v1647 = vunpack.c.l.b16 %v1558
      %v1648 = vunpack.c.l.b16 %v1560
      %v1649 = vunpack.c.l.b16 %v1561
      %v1650 = vunpack.c.l.b16 %v1563
      %v1651 = vunpack.c.l.b16 %v1564
      %v1652 = vunpack.c.l.b16 %v1566
      %v1653 = vunpack.c.l.b16 %v1567
      %v1654 = vunpack.c.l.b16 %v1569
      %v1655 = vunpack.c.l.b16 %v1570
      %v1656 = vunpack.c.l.b16 %v1572
      %v1657 = vunpack.c.l.b16 %v1573
      %v1658 = vunpack.c.l.b16 %v1575
      %v1659 = vunpack.c.l.b16 %v1576
      %v1660 = vunpack.c.l.b16 %v1578
      %v1661 = vunpack.c.l.b16 %v1579
      %v1662 = vpack.c.b16 %v1631, %v1630
      %v1663 = vpack.c.b16 %v1633, %v1632
      %v1664 = vpack.c.b16 %v1635, %v1634
      %v1665 = vpack.c.b16 %v1637, %v1636
      %v1666 = vpack.c.b16 %v1639, %v1638
      %v1667 = vpack.c.b16 %v1641, %v1640
      %v1668 = vpack.c.b16 %v1643, %v1642
      %v1669 = vpack.c.b16 %v1645, %v1644
      %v1670 = vpack.c.b16 %v1647, %v1646
      %v1671 = vpack.c.b16 %v1649, %v1648
      %v1672 = vpack.c.b16 %v1651, %v1650
      %v1673 = vpack.c.b16 %v1653, %v1652
      %v1674 = vpack.c.b16 %v1655, %v1654
      %v1675 = vpack.c.b16 %v1657, %v1656
      %v1676 = vpack.c.b16 %v1659, %v1658
      %v1677 = vpack.c.b16 %v1661, %v1660
      %v1710 = vunpack.c.l.b16 %v1582
      %v1711 = vunpack.c.l.b16 %v1583
      %v1712 = vunpack.c.l.b16 %v1584
      %v1713 = vunpack.c.l.b16 %v1585
      %v1714 = vunpack.c.l.b16 %v1586
      %v1715 = vunpack.c.l.b16 %v1587
      %v1716 = vunpack.c.l.b16 %v1588
      %v1717 = vunpack.c.l.b16 %v1589
      %v1718 = vunpack.c.l.b16 %v1590
      %v1719 = vunpack.c.l.b16 %v1591
      %v1720 = vunpack.c.l.b16 %v1592
      %v1721 = vunpack.c.l.b16 %v1593
      %v1722 = vunpack.c.l.b16 %v1594
      %v1723 = vunpack.c.l.b16 %v1595
      %v1724 = vunpack.c.l.b16 %v1596
      %v1725 = vunpack.c.l.b16 %v1597
      %v1726 = vpack.c.b16 %v1711, %v1710
      %v1727 = vpack.c.b16 %v1713, %v1712
      %v1728 = vpack.c.b16 %v1715, %v1714
      %v1729 = vpack.c.b16 %v1717, %v1716
      %v1730 = vpack.c.b16 %v1719, %v1718
      %v1731 = vpack.c.b16 %v1721, %v1720
      %v1732 = vpack.c.b16 %v1723, %v1722
      %v1733 = vpack.c.b16 %v1725, %v1724
      %1742 = vmatpush.bf16.msra.mxu0 %v1733
      %1743 = vmatpush.bf16.msra.mxu0 %v1732
      %1744 = vmatpush.bf16.msra.mxu0 %v1731
      %1745 = vmatpush.bf16.msra.mxu0 %v1730
      %1746 = vmatpush.bf16.msra.mxu0 %v1729
      %1747 = vmatpush.bf16.msra.mxu0 %v1728
      %1748 = vmatpush.bf16.msra.mxu0 %v1727
      %1749 = vmatpush.bf16.msra.mxu0 %v1726
      %1750 = vmatmul.bf16.gmra.mxu0 %v1662
      %v1751 = vpop.f32.mrf.mxu0
      %v1752 = vadd.f32 0.0, %v1751
      %v1753 = vpop.f32.mrf.mxu0
      %v1754 = vadd.f32 0.0, %v1753
      %1755 = vmatmul.bf16.gmra.mxu0 %v1663
      %v1756 = vpop.f32.mrf.mxu0
      %v1757 = vadd.f32 0.0, %v1756
      %v1758 = vpop.f32.mrf.mxu0
      %v1759 = vadd.f32 0.0, %v1758
      %1760 = vmatmul.bf16.gmra.mxu0 %v1664
      %v1761 = vpop.f32.mrf.mxu0
      %v1762 = vadd.f32 0.0, %v1761
      %v1763 = vpop.f32.mrf.mxu0
      %v1764 = vadd.f32 0.0, %v1763
      %1765 = vmatmul.bf16.gmra.mxu0 %v1665
      %v1766 = vpop.f32.mrf.mxu0
      %v1767 = vadd.f32 0.0, %v1766
      %v1768 = vpop.f32.mrf.mxu0
      %v1769 = vadd.f32 0.0, %v1768
      %1770 = vmatmul.bf16.gmra.mxu0 %v1666
      %v1771 = vpop.f32.mrf.mxu0
      %v1772 = vadd.f32 0.0, %v1771
      %v1773 = vpop.f32.mrf.mxu0
      %v1774 = vadd.f32 0.0, %v1773
      %1775 = vmatmul.bf16.gmra.mxu0 %v1667
      %v1776 = vpop.f32.mrf.mxu0
      %v1777 = vadd.f32 0.0, %v1776
      %v1778 = vpop.f32.mrf.mxu0
      %v1779 = vadd.f32 0.0, %v1778
      %1780 = vmatmul.bf16.gmra.mxu0 %v1668
      %v1781 = vpop.f32.mrf.mxu0
      %v1782 = vadd.f32 0.0, %v1781
      %v1783 = vpop.f32.mrf.mxu0
      %v1784 = vadd.f32 0.0, %v1783
      %1785 = vmatmul.bf16.gmra.mxu0 %v1669
      %v1786 = vpop.f32.mrf.mxu0
      %v1787 = vadd.f32 0.0, %v1786
      %v1788 = vpop.f32.mrf.mxu0
      %v1789 = vadd.f32 0.0, %v1788
      %1790 = vmatmul.bf16.gmra.mxu0 %v1670
      %v1791 = vpop.f32.mrf.mxu0
      %v1792 = vadd.f32 0.0, %v1791
      %v1793 = vpop.f32.mrf.mxu0
      %v1794 = vadd.f32 0.0, %v1793
      %1795 = vmatmul.bf16.gmra.mxu0 %v1671
      %v1796 = vpop.f32.mrf.mxu0
      %v1797 = vadd.f32 0.0, %v1796
      %v1798 = vpop.f32.mrf.mxu0
      %v1799 = vadd.f32 0.0, %v1798
      %1800 = vmatmul.bf16.gmra.mxu0 %v1672
      %v1801 = vpop.f32.mrf.mxu0
      %v1802 = vadd.f32 0.0, %v1801
      %v1803 = vpop.f32.mrf.mxu0
      %v1804 = vadd.f32 0.0, %v1803
      %1805 = vmatmul.bf16.gmra.mxu0 %v1673
      %v1806 = vpop.f32.mrf.mxu0
      %v1807 = vadd.f32 0.0, %v1806
      %v1808 = vpop.f32.mrf.mxu0
      %v1809 = vadd.f32 0.0, %v1808
      %1810 = vmatmul.bf16.gmra.mxu0 %v1674
      %v1811 = vpop.f32.mrf.mxu0
      %v1812 = vadd.f32 0.0, %v1811
      %v1813 = vpop.f32.mrf.mxu0
      %v1814 = vadd.f32 0.0, %v1813
      %1815 = vmatmul.bf16.gmra.mxu0 %v1675
      %v1816 = vpop.f32.mrf.mxu0
      %v1817 = vadd.f32 0.0, %v1816
      %v1818 = vpop.f32.mrf.mxu0
      %v1819 = vadd.f32 0.0, %v1818
      %1820 = vmatmul.bf16.gmra.mxu0 %v1676
      %v1821 = vpop.f32.mrf.mxu0
      %v1822 = vadd.f32 0.0, %v1821
      %v1823 = vpop.f32.mrf.mxu0
      %v1824 = vadd.f32 0.0, %v1823
      %1825 = vmatmul.bf16.gmra.mxu0 %v1677
      %v1826 = vpop.f32.mrf.mxu0
      %v1827 = vadd.f32 0.0, %v1826
      %v1828 = vpop.f32.mrf.mxu0
      %v1829 = vadd.f32 0.0, %v1828
      %1830 = vdwg.mxu0
      %v1831 = vadd.f32 %v1497, %v1752
      %v1832 = vadd.f32 %v1498, %v1754
      %v1833 = vadd.f32 %v1499, %v1757
      %v1834 = vadd.f32 %v1500, %v1759
      %v1835 = vadd.f32 %v1501, %v1762
      %v1836 = vadd.f32 %v1502, %v1764
      %v1837 = vadd.f32 %v1503, %v1767
      %v1838 = vadd.f32 %v1504, %v1769
      %v1839 = vadd.f32 %v1505, %v1772
      %v1840 = vadd.f32 %v1506, %v1774
      %v1841 = vadd.f32 %v1507, %v1777
      %v1842 = vadd.f32 %v1508, %v1779
      %v1843 = vadd.f32 %v1509, %v1782
      %v1844 = vadd.f32 %v1510, %v1784
      %v1845 = vadd.f32 %v1511, %v1787
      %v1846 = vadd.f32 %v1512, %v1789
      %v1847 = vadd.f32 %v1513, %v1792
      %v1848 = vadd.f32 %v1514, %v1794
      %v1849 = vadd.f32 %v1515, %v1797
      %v1850 = vadd.f32 %v1516, %v1799
      %v1851 = vadd.f32 %v1517, %v1802
      %v1852 = vadd.f32 %v1518, %v1804
      %v1853 = vadd.f32 %v1519, %v1807
      %v1854 = vadd.f32 %v1520, %v1809
      %v1855 = vadd.f32 %v1521, %v1812
      %v1856 = vadd.f32 %v1522, %v1814
      %v1857 = vadd.f32 %v1523, %v1817
      %v1858 = vadd.f32 %v1524, %v1819
      %v1859 = vadd.f32 %v1525, %v1822
      %v1860 = vadd.f32 %v1526, %v1824
      %v1861 = vadd.f32 %v1527, %v1827
      %v1862 = vadd.f32 %v1528, %v1829
      %v1864 = vshrl.u32 %v1533, 16
      %v1866 = vrot.slane %v1864, 4
      %v1867 = vshll.u32 %v1533, 16
      %v1869 = vrot.slane %v1867, 5
      %v1870 = vor.u32 %v1866, %v1869
      %v1871 = vrot.slane %v1870, 4
      %v1873 = vshll.u32 %v1534, 16
      %v1875 = vrot.slane %v1873, 5
      %v1876 = vsel %vm312, %v1871, %v1875
      %v1877 = vshrl.u32 %v1534, 16
      %v1879 = vrot.slane %v1877, 4
      %v1880 = vor.u32 %v1879, %v1875
      %v1881 = vrot.slane %v1880, 4
      %v1883 = vshll.u32 %v1535, 16
      %v1885 = vrot.slane %v1883, 5
      %v1886 = vsel %vm312, %v1881, %v1885
      %v1888 = vshrl.u32 %v1536, 16
      %v1890 = vrot.slane %v1888, 4
      %v1891 = vshll.u32 %v1536, 16
      %v1893 = vrot.slane %v1891, 5
      %v1894 = vor.u32 %v1890, %v1893
      %v1895 = vrot.slane %v1894, 4
      %v1897 = vshll.u32 %v1537, 16
      %v1899 = vrot.slane %v1897, 5
      %v1900 = vsel %vm312, %v1895, %v1899
      %v1901 = vshrl.u32 %v1537, 16
      %v1903 = vrot.slane %v1901, 4
      %v1904 = vor.u32 %v1903, %v1899
      %v1905 = vrot.slane %v1904, 4
      %v1907 = vshll.u32 %v1538, 16
      %v1909 = vrot.slane %v1907, 5
      %v1910 = vsel %vm312, %v1905, %v1909
      %v1912 = vshrl.u32 %v1539, 16
      %v1914 = vrot.slane %v1912, 4
      %v1915 = vshll.u32 %v1539, 16
      %v1917 = vrot.slane %v1915, 5
      %v1918 = vor.u32 %v1914, %v1917
      %v1919 = vrot.slane %v1918, 4
      %v1921 = vshll.u32 %v1540, 16
      %v1923 = vrot.slane %v1921, 5
      %v1924 = vsel %vm312, %v1919, %v1923
      %v1925 = vshrl.u32 %v1540, 16
      %v1927 = vrot.slane %v1925, 4
      %v1928 = vor.u32 %v1927, %v1923
      %v1929 = vrot.slane %v1928, 4
      %v1931 = vshll.u32 %v1541, 16
      %v1933 = vrot.slane %v1931, 5
      %v1934 = vsel %vm312, %v1929, %v1933
      %v1936 = vshrl.u32 %v1542, 16
      %v1938 = vrot.slane %v1936, 4
      %v1939 = vshll.u32 %v1542, 16
      %v1941 = vrot.slane %v1939, 5
      %v1942 = vor.u32 %v1938, %v1941
      %v1943 = vrot.slane %v1942, 4
      %v1945 = vshll.u32 %v1543, 16
      %v1947 = vrot.slane %v1945, 5
      %v1948 = vsel %vm312, %v1943, %v1947
      %v1949 = vshrl.u32 %v1543, 16
      %v1951 = vrot.slane %v1949, 4
      %v1952 = vor.u32 %v1951, %v1947
      %v1953 = vrot.slane %v1952, 4
      %v1955 = vshll.u32 %v1544, 16
      %v1957 = vrot.slane %v1955, 5
      %v1958 = vsel %vm312, %v1953, %v1957
      %v1960 = vshrl.u32 %v1545, 16
      %v1962 = vrot.slane %v1960, 4
      %v1963 = vshll.u32 %v1545, 16
      %v1965 = vrot.slane %v1963, 5
      %v1966 = vor.u32 %v1962, %v1965
      %v1967 = vrot.slane %v1966, 4
      %v1969 = vshll.u32 %v1546, 16
      %v1971 = vrot.slane %v1969, 5
      %v1972 = vsel %vm312, %v1967, %v1971
      %v1973 = vshrl.u32 %v1546, 16
      %v1975 = vrot.slane %v1973, 4
      %v1976 = vor.u32 %v1975, %v1971
      %v1977 = vrot.slane %v1976, 4
      %v1979 = vshll.u32 %v1547, 16
      %v1981 = vrot.slane %v1979, 5
      %v1982 = vsel %vm312, %v1977, %v1981
      %v1984 = vshrl.u32 %v1548, 16
      %v1986 = vrot.slane %v1984, 4
      %v1987 = vshll.u32 %v1548, 16
      %v1989 = vrot.slane %v1987, 5
      %v1990 = vor.u32 %v1986, %v1989
      %v1991 = vrot.slane %v1990, 4
      %v1993 = vshll.u32 %v1549, 16
      %v1995 = vrot.slane %v1993, 5
      %v1996 = vsel %vm312, %v1991, %v1995
      %v1997 = vshrl.u32 %v1549, 16
      %v1999 = vrot.slane %v1997, 4
      %v2000 = vor.u32 %v1999, %v1995
      %v2001 = vrot.slane %v2000, 4
      %v2003 = vshll.u32 %v1550, 16
      %v2005 = vrot.slane %v2003, 5
      %v2006 = vsel %vm312, %v2001, %v2005
      %v2008 = vshrl.u32 %v1551, 16
      %v2010 = vrot.slane %v2008, 4
      %v2011 = vshll.u32 %v1551, 16
      %v2013 = vrot.slane %v2011, 5
      %v2014 = vor.u32 %v2010, %v2013
      %v2015 = vrot.slane %v2014, 4
      %v2017 = vshll.u32 %v1552, 16
      %v2019 = vrot.slane %v2017, 5
      %v2020 = vsel %vm312, %v2015, %v2019
      %v2021 = vshrl.u32 %v1552, 16
      %v2023 = vrot.slane %v2021, 4
      %v2024 = vor.u32 %v2023, %v2019
      %v2025 = vrot.slane %v2024, 4
      %v2027 = vshll.u32 %v1553, 16
      %v2029 = vrot.slane %v2027, 5
      %v2030 = vsel %vm312, %v2025, %v2029
      %v2032 = vshrl.u32 %v1554, 16
      %v2034 = vrot.slane %v2032, 4
      %v2035 = vshll.u32 %v1554, 16
      %v2037 = vrot.slane %v2035, 5
      %v2038 = vor.u32 %v2034, %v2037
      %v2039 = vrot.slane %v2038, 4
      %v2041 = vshll.u32 %v1555, 16
      %v2043 = vrot.slane %v2041, 5
      %v2044 = vsel %vm312, %v2039, %v2043
      %v2045 = vshrl.u32 %v1555, 16
      %v2047 = vrot.slane %v2045, 4
      %v2048 = vor.u32 %v2047, %v2043
      %v2049 = vrot.slane %v2048, 4
      %v2051 = vshll.u32 %v1556, 16
      %v2053 = vrot.slane %v2051, 5
      %v2054 = vsel %vm312, %v2049, %v2053
      %v2056 = vshrl.u32 %v1557, 16
      %v2058 = vrot.slane %v2056, 4
      %v2059 = vshll.u32 %v1557, 16
      %v2061 = vrot.slane %v2059, 5
      %v2062 = vor.u32 %v2058, %v2061
      %v2063 = vrot.slane %v2062, 4
      %v2065 = vshll.u32 %v1558, 16
      %v2067 = vrot.slane %v2065, 5
      %v2068 = vsel %vm312, %v2063, %v2067
      %v2069 = vshrl.u32 %v1558, 16
      %v2071 = vrot.slane %v2069, 4
      %v2072 = vor.u32 %v2071, %v2067
      %v2073 = vrot.slane %v2072, 4
      %v2075 = vshll.u32 %v1559, 16
      %v2077 = vrot.slane %v2075, 5
      %v2078 = vsel %vm312, %v2073, %v2077
      %v2080 = vshrl.u32 %v1560, 16
      %v2082 = vrot.slane %v2080, 4
      %v2083 = vshll.u32 %v1560, 16
      %v2085 = vrot.slane %v2083, 5
      %v2086 = vor.u32 %v2082, %v2085
      %v2087 = vrot.slane %v2086, 4
      %v2089 = vshll.u32 %v1561, 16
      %v2091 = vrot.slane %v2089, 5
      %v2092 = vsel %vm312, %v2087, %v2091
      %v2093 = vshrl.u32 %v1561, 16
      %v2095 = vrot.slane %v2093, 4
      %v2096 = vor.u32 %v2095, %v2091
      %v2097 = vrot.slane %v2096, 4
      %v2099 = vshll.u32 %v1562, 16
      %v2101 = vrot.slane %v2099, 5
      %v2102 = vsel %vm312, %v2097, %v2101
      %v2104 = vshrl.u32 %v1563, 16
      %v2106 = vrot.slane %v2104, 4
      %v2107 = vshll.u32 %v1563, 16
      %v2109 = vrot.slane %v2107, 5
      %v2110 = vor.u32 %v2106, %v2109
      %v2111 = vrot.slane %v2110, 4
      %v2113 = vshll.u32 %v1564, 16
      %v2115 = vrot.slane %v2113, 5
      %v2116 = vsel %vm312, %v2111, %v2115
      %v2117 = vshrl.u32 %v1564, 16
      %v2119 = vrot.slane %v2117, 4
      %v2120 = vor.u32 %v2119, %v2115
      %v2121 = vrot.slane %v2120, 4
      %v2123 = vshll.u32 %v1565, 16
      %v2125 = vrot.slane %v2123, 5
      %v2126 = vsel %vm312, %v2121, %v2125
      %v2128 = vshrl.u32 %v1566, 16
      %v2130 = vrot.slane %v2128, 4
      %v2131 = vshll.u32 %v1566, 16
      %v2133 = vrot.slane %v2131, 5
      %v2134 = vor.u32 %v2130, %v2133
      %v2135 = vrot.slane %v2134, 4
      %v2137 = vshll.u32 %v1567, 16
      %v2139 = vrot.slane %v2137, 5
      %v2140 = vsel %vm312, %v2135, %v2139
      %v2141 = vshrl.u32 %v1567, 16
      %v2143 = vrot.slane %v2141, 4
      %v2144 = vor.u32 %v2143, %v2139
      %v2145 = vrot.slane %v2144, 4
      %v2147 = vshll.u32 %v1568, 16
      %v2149 = vrot.slane %v2147, 5
      %v2150 = vsel %vm312, %v2145, %v2149
      %v2152 = vshrl.u32 %v1569, 16
      %v2154 = vrot.slane %v2152, 4
      %v2155 = vshll.u32 %v1569, 16
      %v2157 = vrot.slane %v2155, 5
      %v2158 = vor.u32 %v2154, %v2157
      %v2159 = vrot.slane %v2158, 4
      %v2161 = vshll.u32 %v1570, 16
      %v2163 = vrot.slane %v2161, 5
      %v2164 = vsel %vm312, %v2159, %v2163
      %v2165 = vshrl.u32 %v1570, 16
      %v2167 = vrot.slane %v2165, 4
      %v2168 = vor.u32 %v2167, %v2163
      %v2169 = vrot.slane %v2168, 4
      %v2171 = vshll.u32 %v1571, 16
      %v2173 = vrot.slane %v2171, 5
      %v2174 = vsel %vm312, %v2169, %v2173
      %v2176 = vshrl.u32 %v1572, 16
      %v2178 = vrot.slane %v2176, 4
      %v2179 = vshll.u32 %v1572, 16
      %v2181 = vrot.slane %v2179, 5
      %v2182 = vor.u32 %v2178, %v2181
      %v2183 = vrot.slane %v2182, 4
      %v2185 = vshll.u32 %v1573, 16
      %v2187 = vrot.slane %v2185, 5
      %v2188 = vsel %vm312, %v2183, %v2187
      %v2189 = vshrl.u32 %v1573, 16
      %v2191 = vrot.slane %v2189, 4
      %v2192 = vor.u32 %v2191, %v2187
      %v2193 = vrot.slane %v2192, 4
      %v2195 = vshll.u32 %v1574, 16
      %v2197 = vrot.slane %v2195, 5
      %v2198 = vsel %vm312, %v2193, %v2197
      %v2200 = vshrl.u32 %v1575, 16
      %v2202 = vrot.slane %v2200, 4
      %v2203 = vshll.u32 %v1575, 16
      %v2205 = vrot.slane %v2203, 5
      %v2206 = vor.u32 %v2202, %v2205
      %v2207 = vrot.slane %v2206, 4
      %v2209 = vshll.u32 %v1576, 16
      %v2211 = vrot.slane %v2209, 5
      %v2212 = vsel %vm312, %v2207, %v2211
      %v2213 = vshrl.u32 %v1576, 16
      %v2215 = vrot.slane %v2213, 4
      %v2216 = vor.u32 %v2215, %v2211
      %v2217 = vrot.slane %v2216, 4
      %v2219 = vshll.u32 %v1577, 16
      %v2221 = vrot.slane %v2219, 5
      %v2222 = vsel %vm312, %v2217, %v2221
      %v2224 = vshrl.u32 %v1578, 16
      %v2226 = vrot.slane %v2224, 4
      %v2227 = vshll.u32 %v1578, 16
      %v2229 = vrot.slane %v2227, 5
      %v2230 = vor.u32 %v2226, %v2229
      %v2231 = vrot.slane %v2230, 4
      %v2233 = vshll.u32 %v1579, 16
      %v2235 = vrot.slane %v2233, 5
      %v2236 = vsel %vm312, %v2231, %v2235
      %v2237 = vshrl.u32 %v1579, 16
      %v2239 = vrot.slane %v2237, 4
      %v2240 = vor.u32 %v2239, %v2235
      %v2241 = vrot.slane %v2240, 4
      %v2243 = vshll.u32 %v1580, 16
      %v2245 = vrot.slane %v2243, 5
      %v2246 = vsel %vm312, %v2241, %v2245
      %s2247 = scalar_lea.vmem %s1, 256
      %v2248 = vld [vmem:[%s2247] sm:$0xf]
      %v2249 = vld [vmem:[%s2247 + $0x4] sm:$0xf]
      %v2250 = vld [vmem:[%s2247 + $0x8] sm:$0xf]
      %v2251 = vld [vmem:[%s2247 + $0xc] sm:$0xf]
      %v2252 = vld [vmem:[%s2247 + $0x10] sm:$0xf]
      %v2253 = vld [vmem:[%s2247 + $0x14] sm:$0xf]
      %v2254 = vld [vmem:[%s2247 + $0x18] sm:$0xf]
      %v2255 = vld [vmem:[%s2247 + $0x1c] sm:$0xf]
      %v2256 = vld [vmem:[%s2247 + $0x20] sm:$0xf]
      %v2257 = vld [vmem:[%s2247 + $0x24] sm:$0xf]
      %v2258 = vld [vmem:[%s2247 + $0x28] sm:$0xf]
      %v2259 = vld [vmem:[%s2247 + $0x2c] sm:$0xf]
      %v2260 = vld [vmem:[%s2247 + $0x30] sm:$0xf]
      %v2261 = vld [vmem:[%s2247 + $0x34] sm:$0xf]
      %v2262 = vld [vmem:[%s2247 + $0x38] sm:$0xf]
      %v2263 = vld [vmem:[%s2247 + $0x3c] sm:$0xf]
      %v2264 = vunpack.c.l.b16 %v1876
      %v2265 = vunpack.c.l.b16 %v1886
      %v2266 = vunpack.c.l.b16 %v1900
      %v2267 = vunpack.c.l.b16 %v1910
      %v2268 = vunpack.c.l.b16 %v1924
      %v2269 = vunpack.c.l.b16 %v1934
      %v2270 = vunpack.c.l.b16 %v1948
      %v2271 = vunpack.c.l.b16 %v1958
      %v2272 = vunpack.c.l.b16 %v1972
      %v2273 = vunpack.c.l.b16 %v1982
      %v2274 = vunpack.c.l.b16 %v1996
      %v2275 = vunpack.c.l.b16 %v2006
      %v2276 = vunpack.c.l.b16 %v2020
      %v2277 = vunpack.c.l.b16 %v2030
      %v2278 = vunpack.c.l.b16 %v2044
      %v2279 = vunpack.c.l.b16 %v2054
      %v2280 = vunpack.c.l.b16 %v2068
      %v2281 = vunpack.c.l.b16 %v2078
      %v2282 = vunpack.c.l.b16 %v2092
      %v2283 = vunpack.c.l.b16 %v2102
      %v2284 = vunpack.c.l.b16 %v2116
      %v2285 = vunpack.c.l.b16 %v2126
      %v2286 = vunpack.c.l.b16 %v2140
      %v2287 = vunpack.c.l.b16 %v2150
      %v2288 = vunpack.c.l.b16 %v2164
      %v2289 = vunpack.c.l.b16 %v2174
      %v2290 = vunpack.c.l.b16 %v2188
      %v2291 = vunpack.c.l.b16 %v2198
      %v2292 = vunpack.c.l.b16 %v2212
      %v2293 = vunpack.c.l.b16 %v2222
      %v2294 = vunpack.c.l.b16 %v2236
      %v2295 = vunpack.c.l.b16 %v2246
      %v2296 = vpack.c.b16 %v2265, %v2264
      %v2297 = vpack.c.b16 %v2267, %v2266
      %v2298 = vpack.c.b16 %v2269, %v2268
      %v2299 = vpack.c.b16 %v2271, %v2270
      %v2300 = vpack.c.b16 %v2273, %v2272
      %v2301 = vpack.c.b16 %v2275, %v2274
      %v2302 = vpack.c.b16 %v2277, %v2276
      %v2303 = vpack.c.b16 %v2279, %v2278
      %v2304 = vpack.c.b16 %v2281, %v2280
      %v2305 = vpack.c.b16 %v2283, %v2282
      %v2306 = vpack.c.b16 %v2285, %v2284
      %v2307 = vpack.c.b16 %v2287, %v2286
      %v2308 = vpack.c.b16 %v2289, %v2288
      %v2309 = vpack.c.b16 %v2291, %v2290
      %v2310 = vpack.c.b16 %v2293, %v2292
      %v2311 = vpack.c.b16 %v2295, %v2294
      %v2344 = vunpack.c.l.b16 %v2248
      %v2345 = vunpack.c.l.b16 %v2249
      %v2346 = vunpack.c.l.b16 %v2250
      %v2347 = vunpack.c.l.b16 %v2251
      %v2348 = vunpack.c.l.b16 %v2252
      %v2349 = vunpack.c.l.b16 %v2253
      %v2350 = vunpack.c.l.b16 %v2254
      %v2351 = vunpack.c.l.b16 %v2255
      %v2352 = vunpack.c.l.b16 %v2256
      %v2353 = vunpack.c.l.b16 %v2257
      %v2354 = vunpack.c.l.b16 %v2258
      %v2355 = vunpack.c.l.b16 %v2259
      %v2356 = vunpack.c.l.b16 %v2260
      %v2357 = vunpack.c.l.b16 %v2261
      %v2358 = vunpack.c.l.b16 %v2262
      %v2359 = vunpack.c.l.b16 %v2263
      %v2360 = vpack.c.b16 %v2345, %v2344
      %v2361 = vpack.c.b16 %v2347, %v2346
      %v2362 = vpack.c.b16 %v2349, %v2348
      %v2363 = vpack.c.b16 %v2351, %v2350
      %v2364 = vpack.c.b16 %v2353, %v2352
      %v2365 = vpack.c.b16 %v2355, %v2354
      %v2366 = vpack.c.b16 %v2357, %v2356
      %v2367 = vpack.c.b16 %v2359, %v2358
      %2376 = vmatpush.bf16.msra.mxu0 %v2367
      %2377 = vmatpush.bf16.msra.mxu0 %v2366
      %2378 = vmatpush.bf16.msra.mxu0 %v2365
      %2379 = vmatpush.bf16.msra.mxu0 %v2364
      %2380 = vmatpush.bf16.msra.mxu0 %v2363
      %2381 = vmatpush.bf16.msra.mxu0 %v2362
      %2382 = vmatpush.bf16.msra.mxu0 %v2361
      %2383 = vmatpush.bf16.msra.mxu0 %v2360
      %2384 = vmatmul.bf16.gmra.mxu0 %v2296
      %v2385 = vpop.f32.mrf.mxu0
      %v2386 = vadd.f32 0.0, %v2385
      %v2387 = vpop.f32.mrf.mxu0
      %v2388 = vadd.f32 0.0, %v2387
      %2389 = vmatmul.bf16.gmra.mxu0 %v2297
      %v2390 = vpop.f32.mrf.mxu0
      %v2391 = vadd.f32 0.0, %v2390
      %v2392 = vpop.f32.mrf.mxu0
      %v2393 = vadd.f32 0.0, %v2392
      %2394 = vmatmul.bf16.gmra.mxu0 %v2298
      %v2395 = vpop.f32.mrf.mxu0
      %v2396 = vadd.f32 0.0, %v2395
      %v2397 = vpop.f32.mrf.mxu0
      %v2398 = vadd.f32 0.0, %v2397
      %2399 = vmatmul.bf16.gmra.mxu0 %v2299
      %v2400 = vpop.f32.mrf.mxu0
      %v2401 = vadd.f32 0.0, %v2400
      %v2402 = vpop.f32.mrf.mxu0
      %v2403 = vadd.f32 0.0, %v2402
      %2404 = vmatmul.bf16.gmra.mxu0 %v2300
      %v2405 = vpop.f32.mrf.mxu0
      %v2406 = vadd.f32 0.0, %v2405
      %v2407 = vpop.f32.mrf.mxu0
      %v2408 = vadd.f32 0.0, %v2407
      %2409 = vmatmul.bf16.gmra.mxu0 %v2301
      %v2410 = vpop.f32.mrf.mxu0
      %v2411 = vadd.f32 0.0, %v2410
      %v2412 = vpop.f32.mrf.mxu0
      %v2413 = vadd.f32 0.0, %v2412
      %2414 = vmatmul.bf16.gmra.mxu0 %v2302
      %v2415 = vpop.f32.mrf.mxu0
      %v2416 = vadd.f32 0.0, %v2415
      %v2417 = vpop.f32.mrf.mxu0
      %v2418 = vadd.f32 0.0, %v2417
      %2419 = vmatmul.bf16.gmra.mxu0 %v2303
      %v2420 = vpop.f32.mrf.mxu0
      %v2421 = vadd.f32 0.0, %v2420
      %v2422 = vpop.f32.mrf.mxu0
      %v2423 = vadd.f32 0.0, %v2422
      %2424 = vmatmul.bf16.gmra.mxu0 %v2304
      %v2425 = vpop.f32.mrf.mxu0
      %v2426 = vadd.f32 0.0, %v2425
      %v2427 = vpop.f32.mrf.mxu0
      %v2428 = vadd.f32 0.0, %v2427
      %2429 = vmatmul.bf16.gmra.mxu0 %v2305
      %v2430 = vpop.f32.mrf.mxu0
      %v2431 = vadd.f32 0.0, %v2430
      %v2432 = vpop.f32.mrf.mxu0
      %v2433 = vadd.f32 0.0, %v2432
      %2434 = vmatmul.bf16.gmra.mxu0 %v2306
      %v2435 = vpop.f32.mrf.mxu0
      %v2436 = vadd.f32 0.0, %v2435
      %v2437 = vpop.f32.mrf.mxu0
      %v2438 = vadd.f32 0.0, %v2437
      %2439 = vmatmul.bf16.gmra.mxu0 %v2307
      %v2440 = vpop.f32.mrf.mxu0
      %v2441 = vadd.f32 0.0, %v2440
      %v2442 = vpop.f32.mrf.mxu0
      %v2443 = vadd.f32 0.0, %v2442
      %2444 = vmatmul.bf16.gmra.mxu0 %v2308
      %v2445 = vpop.f32.mrf.mxu0
      %v2446 = vadd.f32 0.0, %v2445
      %v2447 = vpop.f32.mrf.mxu0
      %v2448 = vadd.f32 0.0, %v2447
      %2449 = vmatmul.bf16.gmra.mxu0 %v2309
      %v2450 = vpop.f32.mrf.mxu0
      %v2451 = vadd.f32 0.0, %v2450
      %v2452 = vpop.f32.mrf.mxu0
      %v2453 = vadd.f32 0.0, %v2452
      %2454 = vmatmul.bf16.gmra.mxu0 %v2310
      %v2455 = vpop.f32.mrf.mxu0
      %v2456 = vadd.f32 0.0, %v2455
      %v2457 = vpop.f32.mrf.mxu0
      %v2458 = vadd.f32 0.0, %v2457
      %2459 = vmatmul.bf16.gmra.mxu0 %v2311
      %v2460 = vpop.f32.mrf.mxu0
      %v2461 = vadd.f32 0.0, %v2460
      %v2462 = vpop.f32.mrf.mxu0
      %v2463 = vadd.f32 0.0, %v2462
      %2464 = vdwg.mxu0
      %v2465 = vadd.f32 %v1831, %v2386
      %v2466 = vadd.f32 %v1832, %v2388
      %v2467 = vadd.f32 %v1833, %v2391
      %v2468 = vadd.f32 %v1834, %v2393
      %v2469 = vadd.f32 %v1835, %v2396
      %v2470 = vadd.f32 %v1836, %v2398
      %v2471 = vadd.f32 %v1837, %v2401
      %v2472 = vadd.f32 %v1838, %v2403
      %v2473 = vadd.f32 %v1839, %v2406
      %v2474 = vadd.f32 %v1840, %v2408
      %v2475 = vadd.f32 %v1841, %v2411
      %v2476 = vadd.f32 %v1842, %v2413
      %v2477 = vadd.f32 %v1843, %v2416
      %v2478 = vadd.f32 %v1844, %v2418
      %v2479 = vadd.f32 %v1845, %v2421
      %v2480 = vadd.f32 %v1846, %v2423
      %v2481 = vadd.f32 %v1847, %v2426
      %v2482 = vadd.f32 %v1848, %v2428
      %v2483 = vadd.f32 %v1849, %v2431
      %v2484 = vadd.f32 %v1850, %v2433
      %v2485 = vadd.f32 %v1851, %v2436
      %v2486 = vadd.f32 %v1852, %v2438
      %v2487 = vadd.f32 %v1853, %v2441
      %v2488 = vadd.f32 %v1854, %v2443
      %v2489 = vadd.f32 %v1855, %v2446
      %v2490 = vadd.f32 %v1856, %v2448
      %v2491 = vadd.f32 %v1857, %v2451
      %v2492 = vadd.f32 %v1858, %v2453
      %v2493 = vadd.f32 %v1859, %v2456
      %v2494 = vadd.f32 %v1860, %v2458
      %v2495 = vadd.f32 %v1861, %v2461
      %v2496 = vadd.f32 %v1862, %v2463
      %v2513 = vrot.slane %v1533, 5
      %v2514 = vrot.slane %v2513, 4
      %v2515 = vrot.slane %v1534, 5
      %v2516 = vsel %vm1166, %v2514, %v2515
      %v2517 = vrot.slane %v2515, 4
      %v2518 = vrot.slane %v1535, 5
      %v2519 = vsel %vm1166, %v2517, %v2518
      %v2520 = vrot.slane %v1536, 5
      %v2521 = vrot.slane %v2520, 4
      %v2522 = vrot.slane %v1537, 5
      %v2523 = vsel %vm1166, %v2521, %v2522
      %v2524 = vrot.slane %v2522, 4
      %v2525 = vrot.slane %v1538, 5
      %v2526 = vsel %vm1166, %v2524, %v2525
      %v2527 = vrot.slane %v1539, 5
      %v2528 = vrot.slane %v2527, 4
      %v2529 = vrot.slane %v1540, 5
      %v2530 = vsel %vm1166, %v2528, %v2529
      %v2531 = vrot.slane %v2529, 4
      %v2532 = vrot.slane %v1541, 5
      %v2533 = vsel %vm1166, %v2531, %v2532
      %v2534 = vrot.slane %v1542, 5
      %v2535 = vrot.slane %v2534, 4
      %v2536 = vrot.slane %v1543, 5
      %v2537 = vsel %vm1166, %v2535, %v2536
      %v2538 = vrot.slane %v2536, 4
      %v2539 = vrot.slane %v1544, 5
      %v2540 = vsel %vm1166, %v2538, %v2539
      %v2541 = vrot.slane %v1545, 5
      %v2542 = vrot.slane %v2541, 4
      %v2543 = vrot.slane %v1546, 5
      %v2544 = vsel %vm1166, %v2542, %v2543
      %v2545 = vrot.slane %v2543, 4
      %v2546 = vrot.slane %v1547, 5
      %v2547 = vsel %vm1166, %v2545, %v2546
      %v2548 = vrot.slane %v1548, 5
      %v2549 = vrot.slane %v2548, 4
      %v2550 = vrot.slane %v1549, 5
      %v2551 = vsel %vm1166, %v2549, %v2550
      %v2552 = vrot.slane %v2550, 4
      %v2553 = vrot.slane %v1550, 5
      %v2554 = vsel %vm1166, %v2552, %v2553
      %v2555 = vrot.slane %v1551, 5
      %v2556 = vrot.slane %v2555, 4
      %v2557 = vrot.slane %v1552, 5
      %v2558 = vsel %vm1166, %v2556, %v2557
      %v2559 = vrot.slane %v2557, 4
      %v2560 = vrot.slane %v1553, 5
      %v2561 = vsel %vm1166, %v2559, %v2560
      %v2562 = vrot.slane %v1554, 5
      %v2563 = vrot.slane %v2562, 4
      %v2564 = vrot.slane %v1555, 5
      %v2565 = vsel %vm1166, %v2563, %v2564
      %v2566 = vrot.slane %v2564, 4
      %v2567 = vrot.slane %v1556, 5
      %v2568 = vsel %vm1166, %v2566, %v2567
      %v2569 = vrot.slane %v1557, 5
      %v2570 = vrot.slane %v2569, 4
      %v2571 = vrot.slane %v1558, 5
      %v2572 = vsel %vm1166, %v2570, %v2571
      %v2573 = vrot.slane %v2571, 4
      %v2574 = vrot.slane %v1559, 5
      %v2575 = vsel %vm1166, %v2573, %v2574
      %v2576 = vrot.slane %v1560, 5
      %v2577 = vrot.slane %v2576, 4
      %v2578 = vrot.slane %v1561, 5
      %v2579 = vsel %vm1166, %v2577, %v2578
      %v2580 = vrot.slane %v2578, 4
      %v2581 = vrot.slane %v1562, 5
      %v2582 = vsel %vm1166, %v2580, %v2581
      %v2583 = vrot.slane %v1563, 5
      %v2584 = vrot.slane %v2583, 4
      %v2585 = vrot.slane %v1564, 5
      %v2586 = vsel %vm1166, %v2584, %v2585
      %v2587 = vrot.slane %v2585, 4
      %v2588 = vrot.slane %v1565, 5
      %v2589 = vsel %vm1166, %v2587, %v2588
      %v2590 = vrot.slane %v1566, 5
      %v2591 = vrot.slane %v2590, 4
      %v2592 = vrot.slane %v1567, 5
      %v2593 = vsel %vm1166, %v2591, %v2592
      %v2594 = vrot.slane %v2592, 4
      %v2595 = vrot.slane %v1568, 5
      %v2596 = vsel %vm1166, %v2594, %v2595
      %v2597 = vrot.slane %v1569, 5
      %v2598 = vrot.slane %v2597, 4
      %v2599 = vrot.slane %v1570, 5
      %v2600 = vsel %vm1166, %v2598, %v2599
      %v2601 = vrot.slane %v2599, 4
      %v2602 = vrot.slane %v1571, 5
      %v2603 = vsel %vm1166, %v2601, %v2602
      %v2604 = vrot.slane %v1572, 5
      %v2605 = vrot.slane %v2604, 4
      %v2606 = vrot.slane %v1573, 5
      %v2607 = vsel %vm1166, %v2605, %v2606
      %v2608 = vrot.slane %v2606, 4
      %v2609 = vrot.slane %v1574, 5
      %v2610 = vsel %vm1166, %v2608, %v2609
      %v2611 = vrot.slane %v1575, 5
      %v2612 = vrot.slane %v2611, 4
      %v2613 = vrot.slane %v1576, 5
      %v2614 = vsel %vm1166, %v2612, %v2613
      %v2615 = vrot.slane %v2613, 4
      %v2616 = vrot.slane %v1577, 5
      %v2617 = vsel %vm1166, %v2615, %v2616
      %v2618 = vrot.slane %v1578, 5
      %v2619 = vrot.slane %v2618, 4
      %v2620 = vrot.slane %v1579, 5
      %v2621 = vsel %vm1166, %v2619, %v2620
      %v2622 = vrot.slane %v2620, 4
      %v2623 = vrot.slane %v1580, 5
      %v2624 = vsel %vm1166, %v2622, %v2623
      %s2625 = scalar_lea.vmem %s1, 320
      %v2626 = vld [vmem:[%s2625] sm:$0xf]
      %v2627 = vld [vmem:[%s2625 + $0x4] sm:$0xf]
      %v2628 = vld [vmem:[%s2625 + $0x8] sm:$0xf]
      %v2629 = vld [vmem:[%s2625 + $0xc] sm:$0xf]
      %v2630 = vld [vmem:[%s2625 + $0x10] sm:$0xf]
      %v2631 = vld [vmem:[%s2625 + $0x14] sm:$0xf]
      %v2632 = vld [vmem:[%s2625 + $0x18] sm:$0xf]
      %v2633 = vld [vmem:[%s2625 + $0x1c] sm:$0xf]
      %v2634 = vld [vmem:[%s2625 + $0x20] sm:$0xf]
      %v2635 = vld [vmem:[%s2625 + $0x24] sm:$0xf]
      %v2636 = vld [vmem:[%s2625 + $0x28] sm:$0xf]
      %v2637 = vld [vmem:[%s2625 + $0x2c] sm:$0xf]
      %v2638 = vld [vmem:[%s2625 + $0x30] sm:$0xf]
      %v2639 = vld [vmem:[%s2625 + $0x34] sm:$0xf]
      %v2640 = vld [vmem:[%s2625 + $0x38] sm:$0xf]
      %v2641 = vld [vmem:[%s2625 + $0x3c] sm:$0xf]
      %v2642 = vunpack.c.l.b16 %v2516
      %v2643 = vunpack.c.l.b16 %v2519
      %v2644 = vunpack.c.l.b16 %v2523
      %v2645 = vunpack.c.l.b16 %v2526
      %v2646 = vunpack.c.l.b16 %v2530
      %v2647 = vunpack.c.l.b16 %v2533
      %v2648 = vunpack.c.l.b16 %v2537
      %v2649 = vunpack.c.l.b16 %v2540
      %v2650 = vunpack.c.l.b16 %v2544
      %v2651 = vunpack.c.l.b16 %v2547
      %v2652 = vunpack.c.l.b16 %v2551
      %v2653 = vunpack.c.l.b16 %v2554
      %v2654 = vunpack.c.l.b16 %v2558
      %v2655 = vunpack.c.l.b16 %v2561
      %v2656 = vunpack.c.l.b16 %v2565
      %v2657 = vunpack.c.l.b16 %v2568
      %v2658 = vunpack.c.l.b16 %v2572
      %v2659 = vunpack.c.l.b16 %v2575
      %v2660 = vunpack.c.l.b16 %v2579
      %v2661 = vunpack.c.l.b16 %v2582
      %v2662 = vunpack.c.l.b16 %v2586
      %v2663 = vunpack.c.l.b16 %v2589
      %v2664 = vunpack.c.l.b16 %v2593
      %v2665 = vunpack.c.l.b16 %v2596
      %v2666 = vunpack.c.l.b16 %v2600
      %v2667 = vunpack.c.l.b16 %v2603
      %v2668 = vunpack.c.l.b16 %v2607
      %v2669 = vunpack.c.l.b16 %v2610
      %v2670 = vunpack.c.l.b16 %v2614
      %v2671 = vunpack.c.l.b16 %v2617
      %v2672 = vunpack.c.l.b16 %v2621
      %v2673 = vunpack.c.l.b16 %v2624
      %v2674 = vpack.c.b16 %v2643, %v2642
      %v2675 = vpack.c.b16 %v2645, %v2644
      %v2676 = vpack.c.b16 %v2647, %v2646
      %v2677 = vpack.c.b16 %v2649, %v2648
      %v2678 = vpack.c.b16 %v2651, %v2650
      %v2679 = vpack.c.b16 %v2653, %v2652
      %v2680 = vpack.c.b16 %v2655, %v2654
      %v2681 = vpack.c.b16 %v2657, %v2656
      %v2682 = vpack.c.b16 %v2659, %v2658
      %v2683 = vpack.c.b16 %v2661, %v2660
      %v2684 = vpack.c.b16 %v2663, %v2662
      %v2685 = vpack.c.b16 %v2665, %v2664
      %v2686 = vpack.c.b16 %v2667, %v2666
      %v2687 = vpack.c.b16 %v2669, %v2668
      %v2688 = vpack.c.b16 %v2671, %v2670
      %v2689 = vpack.c.b16 %v2673, %v2672
      %v2722 = vunpack.c.l.b16 %v2626
      %v2723 = vunpack.c.l.b16 %v2627
      %v2724 = vunpack.c.l.b16 %v2628
      %v2725 = vunpack.c.l.b16 %v2629
      %v2726 = vunpack.c.l.b16 %v2630
      %v2727 = vunpack.c.l.b16 %v2631
      %v2728 = vunpack.c.l.b16 %v2632
      %v2729 = vunpack.c.l.b16 %v2633
      %v2730 = vunpack.c.l.b16 %v2634
      %v2731 = vunpack.c.l.b16 %v2635
      %v2732 = vunpack.c.l.b16 %v2636
      %v2733 = vunpack.c.l.b16 %v2637
      %v2734 = vunpack.c.l.b16 %v2638
      %v2735 = vunpack.c.l.b16 %v2639
      %v2736 = vunpack.c.l.b16 %v2640
      %v2737 = vunpack.c.l.b16 %v2641
      %v2738 = vpack.c.b16 %v2723, %v2722
      %v2739 = vpack.c.b16 %v2725, %v2724
      %v2740 = vpack.c.b16 %v2727, %v2726
      %v2741 = vpack.c.b16 %v2729, %v2728
      %v2742 = vpack.c.b16 %v2731, %v2730
      %v2743 = vpack.c.b16 %v2733, %v2732
      %v2744 = vpack.c.b16 %v2735, %v2734
      %v2745 = vpack.c.b16 %v2737, %v2736
      %2754 = vmatpush.bf16.msra.mxu0 %v2745
      %2755 = vmatpush.bf16.msra.mxu0 %v2744
      %2756 = vmatpush.bf16.msra.mxu0 %v2743
      %2757 = vmatpush.bf16.msra.mxu0 %v2742
      %2758 = vmatpush.bf16.msra.mxu0 %v2741
      %2759 = vmatpush.bf16.msra.mxu0 %v2740
      %2760 = vmatpush.bf16.msra.mxu0 %v2739
      %2761 = vmatpush.bf16.msra.mxu0 %v2738
      %2762 = vmatmul.bf16.gmra.mxu0 %v2674
      %v2763 = vpop.f32.mrf.mxu0
      %v2764 = vadd.f32 0.0, %v2763
      %v2765 = vpop.f32.mrf.mxu0
      %v2766 = vadd.f32 0.0, %v2765
      %2767 = vmatmul.bf16.gmra.mxu0 %v2675
      %v2768 = vpop.f32.mrf.mxu0
      %v2769 = vadd.f32 0.0, %v2768
      %v2770 = vpop.f32.mrf.mxu0
      %v2771 = vadd.f32 0.0, %v2770
      %2772 = vmatmul.bf16.gmra.mxu0 %v2676
      %v2773 = vpop.f32.mrf.mxu0
      %v2774 = vadd.f32 0.0, %v2773
      %v2775 = vpop.f32.mrf.mxu0
      %v2776 = vadd.f32 0.0, %v2775
      %2777 = vmatmul.bf16.gmra.mxu0 %v2677
      %v2778 = vpop.f32.mrf.mxu0
      %v2779 = vadd.f32 0.0, %v2778
      %v2780 = vpop.f32.mrf.mxu0
      %v2781 = vadd.f32 0.0, %v2780
      %2782 = vmatmul.bf16.gmra.mxu0 %v2678
      %v2783 = vpop.f32.mrf.mxu0
      %v2784 = vadd.f32 0.0, %v2783
      %v2785 = vpop.f32.mrf.mxu0
      %v2786 = vadd.f32 0.0, %v2785
      %2787 = vmatmul.bf16.gmra.mxu0 %v2679
      %v2788 = vpop.f32.mrf.mxu0
      %v2789 = vadd.f32 0.0, %v2788
      %v2790 = vpop.f32.mrf.mxu0
      %v2791 = vadd.f32 0.0, %v2790
      %2792 = vmatmul.bf16.gmra.mxu0 %v2680
      %v2793 = vpop.f32.mrf.mxu0
      %v2794 = vadd.f32 0.0, %v2793
      %v2795 = vpop.f32.mrf.mxu0
      %v2796 = vadd.f32 0.0, %v2795
      %2797 = vmatmul.bf16.gmra.mxu0 %v2681
      %v2798 = vpop.f32.mrf.mxu0
      %v2799 = vadd.f32 0.0, %v2798
      %v2800 = vpop.f32.mrf.mxu0
      %v2801 = vadd.f32 0.0, %v2800
      %2802 = vmatmul.bf16.gmra.mxu0 %v2682
      %v2803 = vpop.f32.mrf.mxu0
      %v2804 = vadd.f32 0.0, %v2803
      %v2805 = vpop.f32.mrf.mxu0
      %v2806 = vadd.f32 0.0, %v2805
      %2807 = vmatmul.bf16.gmra.mxu0 %v2683
      %v2808 = vpop.f32.mrf.mxu0
      %v2809 = vadd.f32 0.0, %v2808
      %v2810 = vpop.f32.mrf.mxu0
      %v2811 = vadd.f32 0.0, %v2810
      %2812 = vmatmul.bf16.gmra.mxu0 %v2684
      %v2813 = vpop.f32.mrf.mxu0
      %v2814 = vadd.f32 0.0, %v2813
      %v2815 = vpop.f32.mrf.mxu0
      %v2816 = vadd.f32 0.0, %v2815
      %2817 = vmatmul.bf16.gmra.mxu0 %v2685
      %v2818 = vpop.f32.mrf.mxu0
      %v2819 = vadd.f32 0.0, %v2818
      %v2820 = vpop.f32.mrf.mxu0
      %v2821 = vadd.f32 0.0, %v2820
      %2822 = vmatmul.bf16.gmra.mxu0 %v2686
      %v2823 = vpop.f32.mrf.mxu0
      %v2824 = vadd.f32 0.0, %v2823
      %v2825 = vpop.f32.mrf.mxu0
      %v2826 = vadd.f32 0.0, %v2825
      %2827 = vmatmul.bf16.gmra.mxu0 %v2687
      %v2828 = vpop.f32.mrf.mxu0
      %v2829 = vadd.f32 0.0, %v2828
      %v2830 = vpop.f32.mrf.mxu0
      %v2831 = vadd.f32 0.0, %v2830
      %2832 = vmatmul.bf16.gmra.mxu0 %v2688
      %v2833 = vpop.f32.mrf.mxu0
      %v2834 = vadd.f32 0.0, %v2833
      %v2835 = vpop.f32.mrf.mxu0
      %v2836 = vadd.f32 0.0, %v2835
      %2837 = vmatmul.bf16.gmra.mxu0 %v2689
      %v2838 = vpop.f32.mrf.mxu0
      %v2839 = vadd.f32 0.0, %v2838
      %v2840 = vpop.f32.mrf.mxu0
      %v2841 = vadd.f32 0.0, %v2840
      %2842 = vdwg.mxu0
      %v2843 = vadd.f32 %v2465, %v2764
      %v2844 = vadd.f32 %v2466, %v2766
      %v2845 = vadd.f32 %v2467, %v2769
      %v2846 = vadd.f32 %v2468, %v2771
      %v2847 = vadd.f32 %v2469, %v2774
      %v2848 = vadd.f32 %v2470, %v2776
      %v2849 = vadd.f32 %v2471, %v2779
      %v2850 = vadd.f32 %v2472, %v2781
      %v2851 = vadd.f32 %v2473, %v2784
      %v2852 = vadd.f32 %v2474, %v2786
      %v2853 = vadd.f32 %v2475, %v2789
      %v2854 = vadd.f32 %v2476, %v2791
      %v2855 = vadd.f32 %v2477, %v2794
      %v2856 = vadd.f32 %v2478, %v2796
      %v2857 = vadd.f32 %v2479, %v2799
      %v2858 = vadd.f32 %v2480, %v2801
      %v2859 = vadd.f32 %v2481, %v2804
      %v2860 = vadd.f32 %v2482, %v2806
      %v2861 = vadd.f32 %v2483, %v2809
      %v2862 = vadd.f32 %v2484, %v2811
      %v2863 = vadd.f32 %v2485, %v2814
      %v2864 = vadd.f32 %v2486, %v2816
      %v2865 = vadd.f32 %v2487, %v2819
      %v2866 = vadd.f32 %v2488, %v2821
      %v2867 = vadd.f32 %v2489, %v2824
      %v2868 = vadd.f32 %v2490, %v2826
      %v2869 = vadd.f32 %v2491, %v2829
      %v2870 = vadd.f32 %v2492, %v2831
      %v2871 = vadd.f32 %v2493, %v2834
      %v2872 = vadd.f32 %v2494, %v2836
      %v2873 = vadd.f32 %v2495, %v2839
      %v2874 = vadd.f32 %v2496, %v2841
      %s2875 = sadd.s32 %s242, 2
      %s2876 = smul.u32 %s2875, 3
      %s2877 = smul.addr %s2876, 4
      %s2878 = scalar_lea.vmem %s223, %s2877
      %v2879 = vld [vmem:[%s2878] sm:$0xf]
      %v2880 = vld [vmem:[%s2878 + $0x4] sm:$0xf]
      %v2881 = vld [vmem:[%s2878 + $0x8] sm:$0x1]
      %v2882 = vld [vmem:[%s2878 + $0xc] sm:$0xf]
      %v2883 = vld [vmem:[%s2878 + $0x10] sm:$0xf]
      %v2884 = vld [vmem:[%s2878 + $0x14] sm:$0x1]
      %v2885 = vld [vmem:[%s2878 + $0x18] sm:$0xf]
      %v2886 = vld [vmem:[%s2878 + $0x1c] sm:$0xf]
      %v2887 = vld [vmem:[%s2878 + $0x20] sm:$0x1]
      %v2888 = vld [vmem:[%s2878 + $0x24] sm:$0xf]
      %v2889 = vld [vmem:[%s2878 + $0x28] sm:$0xf]
      %v2890 = vld [vmem:[%s2878 + $0x2c] sm:$0x1]
      %v2891 = vld [vmem:[%s2878 + $0x30] sm:$0xf]
      %v2892 = vld [vmem:[%s2878 + $0x34] sm:$0xf]
      %v2893 = vld [vmem:[%s2878 + $0x38] sm:$0x1]
      %v2894 = vld [vmem:[%s2878 + $0x3c] sm:$0xf]
      %v2895 = vld [vmem:[%s2878 + $0x40] sm:$0xf]
      %v2896 = vld [vmem:[%s2878 + $0x44] sm:$0x1]
      %v2897 = vld [vmem:[%s2878 + $0x48] sm:$0xf]
      %v2898 = vld [vmem:[%s2878 + $0x4c] sm:$0xf]
      %v2899 = vld [vmem:[%s2878 + $0x50] sm:$0x1]
      %v2900 = vld [vmem:[%s2878 + $0x54] sm:$0xf]
      %v2901 = vld [vmem:[%s2878 + $0x58] sm:$0xf]
      %v2902 = vld [vmem:[%s2878 + $0x5c] sm:$0x1]
      %v2903 = vld [vmem:[%s2878 + $0x60] sm:$0xf]
      %v2904 = vld [vmem:[%s2878 + $0x64] sm:$0xf]
      %v2905 = vld [vmem:[%s2878 + $0x68] sm:$0x1]
      %v2906 = vld [vmem:[%s2878 + $0x6c] sm:$0xf]
      %v2907 = vld [vmem:[%s2878 + $0x70] sm:$0xf]
      %v2908 = vld [vmem:[%s2878 + $0x74] sm:$0x1]
      %v2909 = vld [vmem:[%s2878 + $0x78] sm:$0xf]
      %v2910 = vld [vmem:[%s2878 + $0x7c] sm:$0xf]
      %v2911 = vld [vmem:[%s2878 + $0x80] sm:$0x1]
      %v2912 = vld [vmem:[%s2878 + $0x84] sm:$0xf]
      %v2913 = vld [vmem:[%s2878 + $0x88] sm:$0xf]
      %v2914 = vld [vmem:[%s2878 + $0x8c] sm:$0x1]
      %v2915 = vld [vmem:[%s2878 + $0x90] sm:$0xf]
      %v2916 = vld [vmem:[%s2878 + $0x94] sm:$0xf]
      %v2917 = vld [vmem:[%s2878 + $0x98] sm:$0x1]
      %v2918 = vld [vmem:[%s2878 + $0x9c] sm:$0xf]
      %v2919 = vld [vmem:[%s2878 + $0xa0] sm:$0xf]
      %v2920 = vld [vmem:[%s2878 + $0xa4] sm:$0x1]
      %v2921 = vld [vmem:[%s2878 + $0xa8] sm:$0xf]
      %v2922 = vld [vmem:[%s2878 + $0xac] sm:$0xf]
      %v2923 = vld [vmem:[%s2878 + $0xb0] sm:$0x1]
      %v2924 = vld [vmem:[%s2878 + $0xb4] sm:$0xf]
      %v2925 = vld [vmem:[%s2878 + $0xb8] sm:$0xf]
      %v2926 = vld [vmem:[%s2878 + $0xbc] sm:$0x1]
      %s2927 = scalar_lea.vmem %s1, 384
      %v2928 = vld [vmem:[%s2927] sm:$0xf]
      %v2929 = vld [vmem:[%s2927 + $0x4] sm:$0xf]
      %v2930 = vld [vmem:[%s2927 + $0x8] sm:$0xf]
      %v2931 = vld [vmem:[%s2927 + $0xc] sm:$0xf]
      %v2932 = vld [vmem:[%s2927 + $0x10] sm:$0xf]
      %v2933 = vld [vmem:[%s2927 + $0x14] sm:$0xf]
      %v2934 = vld [vmem:[%s2927 + $0x18] sm:$0xf]
      %v2935 = vld [vmem:[%s2927 + $0x1c] sm:$0xf]
      %v2936 = vld [vmem:[%s2927 + $0x20] sm:$0xf]
      %v2937 = vld [vmem:[%s2927 + $0x24] sm:$0xf]
      %v2938 = vld [vmem:[%s2927 + $0x28] sm:$0xf]
      %v2939 = vld [vmem:[%s2927 + $0x2c] sm:$0xf]
      %v2940 = vld [vmem:[%s2927 + $0x30] sm:$0xf]
      %v2941 = vld [vmem:[%s2927 + $0x34] sm:$0xf]
      %v2942 = vld [vmem:[%s2927 + $0x38] sm:$0xf]
      %v2943 = vld [vmem:[%s2927 + $0x3c] sm:$0xf]
      %v2976 = vunpack.c.l.b16 %v2879
      %v2977 = vunpack.c.l.b16 %v2880
      %v2978 = vunpack.c.l.b16 %v2882
      %v2979 = vunpack.c.l.b16 %v2883
      %v2980 = vunpack.c.l.b16 %v2885
      %v2981 = vunpack.c.l.b16 %v2886
      %v2982 = vunpack.c.l.b16 %v2888
      %v2983 = vunpack.c.l.b16 %v2889
      %v2984 = vunpack.c.l.b16 %v2891
      %v2985 = vunpack.c.l.b16 %v2892
      %v2986 = vunpack.c.l.b16 %v2894
      %v2987 = vunpack.c.l.b16 %v2895
      %v2988 = vunpack.c.l.b16 %v2897
      %v2989 = vunpack.c.l.b16 %v2898
      %v2990 = vunpack.c.l.b16 %v2900
      %v2991 = vunpack.c.l.b16 %v2901
      %v2992 = vunpack.c.l.b16 %v2903
      %v2993 = vunpack.c.l.b16 %v2904
      %v2994 = vunpack.c.l.b16 %v2906
      %v2995 = vunpack.c.l.b16 %v2907
      %v2996 = vunpack.c.l.b16 %v2909
      %v2997 = vunpack.c.l.b16 %v2910
      %v2998 = vunpack.c.l.b16 %v2912
      %v2999 = vunpack.c.l.b16 %v2913
      %v3000 = vunpack.c.l.b16 %v2915
      %v3001 = vunpack.c.l.b16 %v2916
      %v3002 = vunpack.c.l.b16 %v2918
      %v3003 = vunpack.c.l.b16 %v2919
      %v3004 = vunpack.c.l.b16 %v2921
      %v3005 = vunpack.c.l.b16 %v2922
      %v3006 = vunpack.c.l.b16 %v2924
      %v3007 = vunpack.c.l.b16 %v2925
      %v3008 = vpack.c.b16 %v2977, %v2976
      %v3009 = vpack.c.b16 %v2979, %v2978
      %v3010 = vpack.c.b16 %v2981, %v2980
      %v3011 = vpack.c.b16 %v2983, %v2982
      %v3012 = vpack.c.b16 %v2985, %v2984
      %v3013 = vpack.c.b16 %v2987, %v2986
      %v3014 = vpack.c.b16 %v2989, %v2988
      %v3015 = vpack.c.b16 %v2991, %v2990
      %v3016 = vpack.c.b16 %v2993, %v2992
      %v3017 = vpack.c.b16 %v2995, %v2994
      %v3018 = vpack.c.b16 %v2997, %v2996
      %v3019 = vpack.c.b16 %v2999, %v2998
      %v3020 = vpack.c.b16 %v3001, %v3000
      %v3021 = vpack.c.b16 %v3003, %v3002
      %v3022 = vpack.c.b16 %v3005, %v3004
      %v3023 = vpack.c.b16 %v3007, %v3006
      %v3056 = vunpack.c.l.b16 %v2928
      %v3057 = vunpack.c.l.b16 %v2929
      %v3058 = vunpack.c.l.b16 %v2930
      %v3059 = vunpack.c.l.b16 %v2931
      %v3060 = vunpack.c.l.b16 %v2932
      %v3061 = vunpack.c.l.b16 %v2933
      %v3062 = vunpack.c.l.b16 %v2934
      %v3063 = vunpack.c.l.b16 %v2935
      %v3064 = vunpack.c.l.b16 %v2936
      %v3065 = vunpack.c.l.b16 %v2937
      %v3066 = vunpack.c.l.b16 %v2938
      %v3067 = vunpack.c.l.b16 %v2939
      %v3068 = vunpack.c.l.b16 %v2940
      %v3069 = vunpack.c.l.b16 %v2941
      %v3070 = vunpack.c.l.b16 %v2942
      %v3071 = vunpack.c.l.b16 %v2943
      %v3072 = vpack.c.b16 %v3057, %v3056
      %v3073 = vpack.c.b16 %v3059, %v3058
      %v3074 = vpack.c.b16 %v3061, %v3060
      %v3075 = vpack.c.b16 %v3063, %v3062
      %v3076 = vpack.c.b16 %v3065, %v3064
      %v3077 = vpack.c.b16 %v3067, %v3066
      %v3078 = vpack.c.b16 %v3069, %v3068
      %v3079 = vpack.c.b16 %v3071, %v3070
      %3088 = vmatpush.bf16.msra.mxu0 %v3079
      %3089 = vmatpush.bf16.msra.mxu0 %v3078
      %3090 = vmatpush.bf16.msra.mxu0 %v3077
      %3091 = vmatpush.bf16.msra.mxu0 %v3076
      %3092 = vmatpush.bf16.msra.mxu0 %v3075
      %3093 = vmatpush.bf16.msra.mxu0 %v3074
      %3094 = vmatpush.bf16.msra.mxu0 %v3073
      %3095 = vmatpush.bf16.msra.mxu0 %v3072
      %3096 = vmatmul.bf16.gmra.mxu0 %v3008
      %v3097 = vpop.f32.mrf.mxu0
      %v3098 = vadd.f32 0.0, %v3097
      %v3099 = vpop.f32.mrf.mxu0
      %v3100 = vadd.f32 0.0, %v3099
      %3101 = vmatmul.bf16.gmra.mxu0 %v3009
      %v3102 = vpop.f32.mrf.mxu0
      %v3103 = vadd.f32 0.0, %v3102
      %v3104 = vpop.f32.mrf.mxu0
      %v3105 = vadd.f32 0.0, %v3104
      %3106 = vmatmul.bf16.gmra.mxu0 %v3010
      %v3107 = vpop.f32.mrf.mxu0
      %v3108 = vadd.f32 0.0, %v3107
      %v3109 = vpop.f32.mrf.mxu0
      %v3110 = vadd.f32 0.0, %v3109
      %3111 = vmatmul.bf16.gmra.mxu0 %v3011
      %v3112 = vpop.f32.mrf.mxu0
      %v3113 = vadd.f32 0.0, %v3112
      %v3114 = vpop.f32.mrf.mxu0
      %v3115 = vadd.f32 0.0, %v3114
      %3116 = vmatmul.bf16.gmra.mxu0 %v3012
      %v3117 = vpop.f32.mrf.mxu0
      %v3118 = vadd.f32 0.0, %v3117
      %v3119 = vpop.f32.mrf.mxu0
      %v3120 = vadd.f32 0.0, %v3119
      %3121 = vmatmul.bf16.gmra.mxu0 %v3013
      %v3122 = vpop.f32.mrf.mxu0
      %v3123 = vadd.f32 0.0, %v3122
      %v3124 = vpop.f32.mrf.mxu0
      %v3125 = vadd.f32 0.0, %v3124
      %3126 = vmatmul.bf16.gmra.mxu0 %v3014
      %v3127 = vpop.f32.mrf.mxu0
      %v3128 = vadd.f32 0.0, %v3127
      %v3129 = vpop.f32.mrf.mxu0
      %v3130 = vadd.f32 0.0, %v3129
      %3131 = vmatmul.bf16.gmra.mxu0 %v3015
      %v3132 = vpop.f32.mrf.mxu0
      %v3133 = vadd.f32 0.0, %v3132
      %v3134 = vpop.f32.mrf.mxu0
      %v3135 = vadd.f32 0.0, %v3134
      %3136 = vmatmul.bf16.gmra.mxu0 %v3016
      %v3137 = vpop.f32.mrf.mxu0
      %v3138 = vadd.f32 0.0, %v3137
      %v3139 = vpop.f32.mrf.mxu0
      %v3140 = vadd.f32 0.0, %v3139
      %3141 = vmatmul.bf16.gmra.mxu0 %v3017
      %v3142 = vpop.f32.mrf.mxu0
      %v3143 = vadd.f32 0.0, %v3142
      %v3144 = vpop.f32.mrf.mxu0
      %v3145 = vadd.f32 0.0, %v3144
      %3146 = vmatmul.bf16.gmra.mxu0 %v3018
      %v3147 = vpop.f32.mrf.mxu0
      %v3148 = vadd.f32 0.0, %v3147
      %v3149 = vpop.f32.mrf.mxu0
      %v3150 = vadd.f32 0.0, %v3149
      %3151 = vmatmul.bf16.gmra.mxu0 %v3019
      %v3152 = vpop.f32.mrf.mxu0
      %v3153 = vadd.f32 0.0, %v3152
      %v3154 = vpop.f32.mrf.mxu0
      %v3155 = vadd.f32 0.0, %v3154
      %3156 = vmatmul.bf16.gmra.mxu0 %v3020
      %v3157 = vpop.f32.mrf.mxu0
      %v3158 = vadd.f32 0.0, %v3157
      %v3159 = vpop.f32.mrf.mxu0
      %v3160 = vadd.f32 0.0, %v3159
      %3161 = vmatmul.bf16.gmra.mxu0 %v3021
      %v3162 = vpop.f32.mrf.mxu0
      %v3163 = vadd.f32 0.0, %v3162
      %v3164 = vpop.f32.mrf.mxu0
      %v3165 = vadd.f32 0.0, %v3164
      %3166 = vmatmul.bf16.gmra.mxu0 %v3022
      %v3167 = vpop.f32.mrf.mxu0
      %v3168 = vadd.f32 0.0, %v3167
      %v3169 = vpop.f32.mrf.mxu0
      %v3170 = vadd.f32 0.0, %v3169
      %3171 = vmatmul.bf16.gmra.mxu0 %v3023
      %v3172 = vpop.f32.mrf.mxu0
      %v3173 = vadd.f32 0.0, %v3172
      %v3174 = vpop.f32.mrf.mxu0
      %v3175 = vadd.f32 0.0, %v3174
      %3176 = vdwg.mxu0
      %v3177 = vadd.f32 %v2843, %v3098
      %v3178 = vadd.f32 %v2844, %v3100
      %v3179 = vadd.f32 %v2845, %v3103
      %v3180 = vadd.f32 %v2846, %v3105
      %v3181 = vadd.f32 %v2847, %v3108
      %v3182 = vadd.f32 %v2848, %v3110
      %v3183 = vadd.f32 %v2849, %v3113
      %v3184 = vadd.f32 %v2850, %v3115
      %v3185 = vadd.f32 %v2851, %v3118
      %v3186 = vadd.f32 %v2852, %v3120
      %v3187 = vadd.f32 %v2853, %v3123
      %v3188 = vadd.f32 %v2854, %v3125
      %v3189 = vadd.f32 %v2855, %v3128
      %v3190 = vadd.f32 %v2856, %v3130
      %v3191 = vadd.f32 %v2857, %v3133
      %v3192 = vadd.f32 %v2858, %v3135
      %v3193 = vadd.f32 %v2859, %v3138
      %v3194 = vadd.f32 %v2860, %v3140
      %v3195 = vadd.f32 %v2861, %v3143
      %v3196 = vadd.f32 %v2862, %v3145
      %v3197 = vadd.f32 %v2863, %v3148
      %v3198 = vadd.f32 %v2864, %v3150
      %v3199 = vadd.f32 %v2865, %v3153
      %v3200 = vadd.f32 %v2866, %v3155
      %v3201 = vadd.f32 %v2867, %v3158
      %v3202 = vadd.f32 %v2868, %v3160
      %v3203 = vadd.f32 %v2869, %v3163
      %v3204 = vadd.f32 %v2870, %v3165
      %v3205 = vadd.f32 %v2871, %v3168
      %v3206 = vadd.f32 %v2872, %v3170
      %v3207 = vadd.f32 %v2873, %v3173
      %v3208 = vadd.f32 %v2874, %v3175
      %v3210 = vshrl.u32 %v2879, 16
      %v3212 = vrot.slane %v3210, 4
      %v3213 = vshll.u32 %v2879, 16
      %v3215 = vrot.slane %v3213, 5
      %v3216 = vor.u32 %v3212, %v3215
      %v3217 = vrot.slane %v3216, 4
      %v3219 = vshll.u32 %v2880, 16
      %v3221 = vrot.slane %v3219, 5
      %v3222 = vsel %vm312, %v3217, %v3221
      %v3223 = vshrl.u32 %v2880, 16
      %v3225 = vrot.slane %v3223, 4
      %v3226 = vor.u32 %v3225, %v3221
      %v3227 = vrot.slane %v3226, 4
      %v3229 = vshll.u32 %v2881, 16
      %v3231 = vrot.slane %v3229, 5
      %v3232 = vsel %vm312, %v3227, %v3231
      %v3234 = vshrl.u32 %v2882, 16
      %v3236 = vrot.slane %v3234, 4
      %v3237 = vshll.u32 %v2882, 16
      %v3239 = vrot.slane %v3237, 5
      %v3240 = vor.u32 %v3236, %v3239
      %v3241 = vrot.slane %v3240, 4
      %v3243 = vshll.u32 %v2883, 16
      %v3245 = vrot.slane %v3243, 5
      %v3246 = vsel %vm312, %v3241, %v3245
      %v3247 = vshrl.u32 %v2883, 16
      %v3249 = vrot.slane %v3247, 4
      %v3250 = vor.u32 %v3249, %v3245
      %v3251 = vrot.slane %v3250, 4
      %v3253 = vshll.u32 %v2884, 16
      %v3255 = vrot.slane %v3253, 5
      %v3256 = vsel %vm312, %v3251, %v3255
      %v3258 = vshrl.u32 %v2885, 16
      %v3260 = vrot.slane %v3258, 4
      %v3261 = vshll.u32 %v2885, 16
      %v3263 = vrot.slane %v3261, 5
      %v3264 = vor.u32 %v3260, %v3263
      %v3265 = vrot.slane %v3264, 4
      %v3267 = vshll.u32 %v2886, 16
      %v3269 = vrot.slane %v3267, 5
      %v3270 = vsel %vm312, %v3265, %v3269
      %v3271 = vshrl.u32 %v2886, 16
      %v3273 = vrot.slane %v3271, 4
      %v3274 = vor.u32 %v3273, %v3269
      %v3275 = vrot.slane %v3274, 4
      %v3277 = vshll.u32 %v2887, 16
      %v3279 = vrot.slane %v3277, 5
      %v3280 = vsel %vm312, %v3275, %v3279
      %v3282 = vshrl.u32 %v2888, 16
      %v3284 = vrot.slane %v3282, 4
      %v3285 = vshll.u32 %v2888, 16
      %v3287 = vrot.slane %v3285, 5
      %v3288 = vor.u32 %v3284, %v3287
      %v3289 = vrot.slane %v3288, 4
      %v3291 = vshll.u32 %v2889, 16
      %v3293 = vrot.slane %v3291, 5
      %v3294 = vsel %vm312, %v3289, %v3293
      %v3295 = vshrl.u32 %v2889, 16
      %v3297 = vrot.slane %v3295, 4
      %v3298 = vor.u32 %v3297, %v3293
      %v3299 = vrot.slane %v3298, 4
      %v3301 = vshll.u32 %v2890, 16
      %v3303 = vrot.slane %v3301, 5
      %v3304 = vsel %vm312, %v3299, %v3303
      %v3306 = vshrl.u32 %v2891, 16
      %v3308 = vrot.slane %v3306, 4
      %v3309 = vshll.u32 %v2891, 16
      %v3311 = vrot.slane %v3309, 5
      %v3312 = vor.u32 %v3308, %v3311
      %v3313 = vrot.slane %v3312, 4
      %v3315 = vshll.u32 %v2892, 16
      %v3317 = vrot.slane %v3315, 5
      %v3318 = vsel %vm312, %v3313, %v3317
      %v3319 = vshrl.u32 %v2892, 16
      %v3321 = vrot.slane %v3319, 4
      %v3322 = vor.u32 %v3321, %v3317
      %v3323 = vrot.slane %v3322, 4
      %v3325 = vshll.u32 %v2893, 16
      %v3327 = vrot.slane %v3325, 5
      %v3328 = vsel %vm312, %v3323, %v3327
      %v3330 = vshrl.u32 %v2894, 16
      %v3332 = vrot.slane %v3330, 4
      %v3333 = vshll.u32 %v2894, 16
      %v3335 = vrot.slane %v3333, 5
      %v3336 = vor.u32 %v3332, %v3335
      %v3337 = vrot.slane %v3336, 4
      %v3339 = vshll.u32 %v2895, 16
      %v3341 = vrot.slane %v3339, 5
      %v3342 = vsel %vm312, %v3337, %v3341
      %v3343 = vshrl.u32 %v2895, 16
      %v3345 = vrot.slane %v3343, 4
      %v3346 = vor.u32 %v3345, %v3341
      %v3347 = vrot.slane %v3346, 4
      %v3349 = vshll.u32 %v2896, 16
      %v3351 = vrot.slane %v3349, 5
      %v3352 = vsel %vm312, %v3347, %v3351
      %v3354 = vshrl.u32 %v2897, 16
      %v3356 = vrot.slane %v3354, 4
      %v3357 = vshll.u32 %v2897, 16
      %v3359 = vrot.slane %v3357, 5
      %v3360 = vor.u32 %v3356, %v3359
      %v3361 = vrot.slane %v3360, 4
      %v3363 = vshll.u32 %v2898, 16
      %v3365 = vrot.slane %v3363, 5
      %v3366 = vsel %vm312, %v3361, %v3365
      %v3367 = vshrl.u32 %v2898, 16
      %v3369 = vrot.slane %v3367, 4
      %v3370 = vor.u32 %v3369, %v3365
      %v3371 = vrot.slane %v3370, 4
      %v3373 = vshll.u32 %v2899, 16
      %v3375 = vrot.slane %v3373, 5
      %v3376 = vsel %vm312, %v3371, %v3375
      %v3378 = vshrl.u32 %v2900, 16
      %v3380 = vrot.slane %v3378, 4
      %v3381 = vshll.u32 %v2900, 16
      %v3383 = vrot.slane %v3381, 5
      %v3384 = vor.u32 %v3380, %v3383
      %v3385 = vrot.slane %v3384, 4
      %v3387 = vshll.u32 %v2901, 16
      %v3389 = vrot.slane %v3387, 5
      %v3390 = vsel %vm312, %v3385, %v3389
      %v3391 = vshrl.u32 %v2901, 16
      %v3393 = vrot.slane %v3391, 4
      %v3394 = vor.u32 %v3393, %v3389
      %v3395 = vrot.slane %v3394, 4
      %v3397 = vshll.u32 %v2902, 16
      %v3399 = vrot.slane %v3397, 5
      %v3400 = vsel %vm312, %v3395, %v3399
      %v3402 = vshrl.u32 %v2903, 16
      %v3404 = vrot.slane %v3402, 4
      %v3405 = vshll.u32 %v2903, 16
      %v3407 = vrot.slane %v3405, 5
      %v3408 = vor.u32 %v3404, %v3407
      %v3409 = vrot.slane %v3408, 4
      %v3411 = vshll.u32 %v2904, 16
      %v3413 = vrot.slane %v3411, 5
      %v3414 = vsel %vm312, %v3409, %v3413
      %v3415 = vshrl.u32 %v2904, 16
      %v3417 = vrot.slane %v3415, 4
      %v3418 = vor.u32 %v3417, %v3413
      %v3419 = vrot.slane %v3418, 4
      %v3421 = vshll.u32 %v2905, 16
      %v3423 = vrot.slane %v3421, 5
      %v3424 = vsel %vm312, %v3419, %v3423
      %v3426 = vshrl.u32 %v2906, 16
      %v3428 = vrot.slane %v3426, 4
      %v3429 = vshll.u32 %v2906, 16
      %v3431 = vrot.slane %v3429, 5
      %v3432 = vor.u32 %v3428, %v3431
      %v3433 = vrot.slane %v3432, 4
      %v3435 = vshll.u32 %v2907, 16
      %v3437 = vrot.slane %v3435, 5
      %v3438 = vsel %vm312, %v3433, %v3437
      %v3439 = vshrl.u32 %v2907, 16
      %v3441 = vrot.slane %v3439, 4
      %v3442 = vor.u32 %v3441, %v3437
      %v3443 = vrot.slane %v3442, 4
      %v3445 = vshll.u32 %v2908, 16
      %v3447 = vrot.slane %v3445, 5
      %v3448 = vsel %vm312, %v3443, %v3447
      %v3450 = vshrl.u32 %v2909, 16
      %v3452 = vrot.slane %v3450, 4
      %v3453 = vshll.u32 %v2909, 16
      %v3455 = vrot.slane %v3453, 5
      %v3456 = vor.u32 %v3452, %v3455
      %v3457 = vrot.slane %v3456, 4
      %v3459 = vshll.u32 %v2910, 16
      %v3461 = vrot.slane %v3459, 5
      %v3462 = vsel %vm312, %v3457, %v3461
      %v3463 = vshrl.u32 %v2910, 16
      %v3465 = vrot.slane %v3463, 4
      %v3466 = vor.u32 %v3465, %v3461
      %v3467 = vrot.slane %v3466, 4
      %v3469 = vshll.u32 %v2911, 16
      %v3471 = vrot.slane %v3469, 5
      %v3472 = vsel %vm312, %v3467, %v3471
      %v3474 = vshrl.u32 %v2912, 16
      %v3476 = vrot.slane %v3474, 4
      %v3477 = vshll.u32 %v2912, 16
      %v3479 = vrot.slane %v3477, 5
      %v3480 = vor.u32 %v3476, %v3479
      %v3481 = vrot.slane %v3480, 4
      %v3483 = vshll.u32 %v2913, 16
      %v3485 = vrot.slane %v3483, 5
      %v3486 = vsel %vm312, %v3481, %v3485
      %v3487 = vshrl.u32 %v2913, 16
      %v3489 = vrot.slane %v3487, 4
      %v3490 = vor.u32 %v3489, %v3485
      %v3491 = vrot.slane %v3490, 4
      %v3493 = vshll.u32 %v2914, 16
      %v3495 = vrot.slane %v3493, 5
      %v3496 = vsel %vm312, %v3491, %v3495
      %v3498 = vshrl.u32 %v2915, 16
      %v3500 = vrot.slane %v3498, 4
      %v3501 = vshll.u32 %v2915, 16
      %v3503 = vrot.slane %v3501, 5
      %v3504 = vor.u32 %v3500, %v3503
      %v3505 = vrot.slane %v3504, 4
      %v3507 = vshll.u32 %v2916, 16
      %v3509 = vrot.slane %v3507, 5
      %v3510 = vsel %vm312, %v3505, %v3509
      %v3511 = vshrl.u32 %v2916, 16
      %v3513 = vrot.slane %v3511, 4
      %v3514 = vor.u32 %v3513, %v3509
      %v3515 = vrot.slane %v3514, 4
      %v3517 = vshll.u32 %v2917, 16
      %v3519 = vrot.slane %v3517, 5
      %v3520 = vsel %vm312, %v3515, %v3519
      %v3522 = vshrl.u32 %v2918, 16
      %v3524 = vrot.slane %v3522, 4
      %v3525 = vshll.u32 %v2918, 16
      %v3527 = vrot.slane %v3525, 5
      %v3528 = vor.u32 %v3524, %v3527
      %v3529 = vrot.slane %v3528, 4
      %v3531 = vshll.u32 %v2919, 16
      %v3533 = vrot.slane %v3531, 5
      %v3534 = vsel %vm312, %v3529, %v3533
      %v3535 = vshrl.u32 %v2919, 16
      %v3537 = vrot.slane %v3535, 4
      %v3538 = vor.u32 %v3537, %v3533
      %v3539 = vrot.slane %v3538, 4
      %v3541 = vshll.u32 %v2920, 16
      %v3543 = vrot.slane %v3541, 5
      %v3544 = vsel %vm312, %v3539, %v3543
      %v3546 = vshrl.u32 %v2921, 16
      %v3548 = vrot.slane %v3546, 4
      %v3549 = vshll.u32 %v2921, 16
      %v3551 = vrot.slane %v3549, 5
      %v3552 = vor.u32 %v3548, %v3551
      %v3553 = vrot.slane %v3552, 4
      %v3555 = vshll.u32 %v2922, 16
      %v3557 = vrot.slane %v3555, 5
      %v3558 = vsel %vm312, %v3553, %v3557
      %v3559 = vshrl.u32 %v2922, 16
      %v3561 = vrot.slane %v3559, 4
      %v3562 = vor.u32 %v3561, %v3557
      %v3563 = vrot.slane %v3562, 4
      %v3565 = vshll.u32 %v2923, 16
      %v3567 = vrot.slane %v3565, 5
      %v3568 = vsel %vm312, %v3563, %v3567
      %v3570 = vshrl.u32 %v2924, 16
      %v3572 = vrot.slane %v3570, 4
      %v3573 = vshll.u32 %v2924, 16
      %v3575 = vrot.slane %v3573, 5
      %v3576 = vor.u32 %v3572, %v3575
      %v3577 = vrot.slane %v3576, 4
      %v3579 = vshll.u32 %v2925, 16
      %v3581 = vrot.slane %v3579, 5
      %v3582 = vsel %vm312, %v3577, %v3581
      %v3583 = vshrl.u32 %v2925, 16
      %v3585 = vrot.slane %v3583, 4
      %v3586 = vor.u32 %v3585, %v3581
      %v3587 = vrot.slane %v3586, 4
      %v3589 = vshll.u32 %v2926, 16
      %v3591 = vrot.slane %v3589, 5
      %v3592 = vsel %vm312, %v3587, %v3591
      %s3593 = scalar_lea.vmem %s1, 448
      %v3594 = vld [vmem:[%s3593] sm:$0xf]
      %v3595 = vld [vmem:[%s3593 + $0x4] sm:$0xf]
      %v3596 = vld [vmem:[%s3593 + $0x8] sm:$0xf]
      %v3597 = vld [vmem:[%s3593 + $0xc] sm:$0xf]
      %v3598 = vld [vmem:[%s3593 + $0x10] sm:$0xf]
      %v3599 = vld [vmem:[%s3593 + $0x14] sm:$0xf]
      %v3600 = vld [vmem:[%s3593 + $0x18] sm:$0xf]
      %v3601 = vld [vmem:[%s3593 + $0x1c] sm:$0xf]
      %v3602 = vld [vmem:[%s3593 + $0x20] sm:$0xf]
      %v3603 = vld [vmem:[%s3593 + $0x24] sm:$0xf]
      %v3604 = vld [vmem:[%s3593 + $0x28] sm:$0xf]
      %v3605 = vld [vmem:[%s3593 + $0x2c] sm:$0xf]
      %v3606 = vld [vmem:[%s3593 + $0x30] sm:$0xf]
      %v3607 = vld [vmem:[%s3593 + $0x34] sm:$0xf]
      %v3608 = vld [vmem:[%s3593 + $0x38] sm:$0xf]
      %v3609 = vld [vmem:[%s3593 + $0x3c] sm:$0xf]
      %v3610 = vunpack.c.l.b16 %v3222
      %v3611 = vunpack.c.l.b16 %v3232
      %v3612 = vunpack.c.l.b16 %v3246
      %v3613 = vunpack.c.l.b16 %v3256
      %v3614 = vunpack.c.l.b16 %v3270
      %v3615 = vunpack.c.l.b16 %v3280
      %v3616 = vunpack.c.l.b16 %v3294
      %v3617 = vunpack.c.l.b16 %v3304
      %v3618 = vunpack.c.l.b16 %v3318
      %v3619 = vunpack.c.l.b16 %v3328
      %v3620 = vunpack.c.l.b16 %v3342
      %v3621 = vunpack.c.l.b16 %v3352
      %v3622 = vunpack.c.l.b16 %v3366
      %v3623 = vunpack.c.l.b16 %v3376
      %v3624 = vunpack.c.l.b16 %v3390
      %v3625 = vunpack.c.l.b16 %v3400
      %v3626 = vunpack.c.l.b16 %v3414
      %v3627 = vunpack.c.l.b16 %v3424
      %v3628 = vunpack.c.l.b16 %v3438
      %v3629 = vunpack.c.l.b16 %v3448
      %v3630 = vunpack.c.l.b16 %v3462
      %v3631 = vunpack.c.l.b16 %v3472
      %v3632 = vunpack.c.l.b16 %v3486
      %v3633 = vunpack.c.l.b16 %v3496
      %v3634 = vunpack.c.l.b16 %v3510
      %v3635 = vunpack.c.l.b16 %v3520
      %v3636 = vunpack.c.l.b16 %v3534
      %v3637 = vunpack.c.l.b16 %v3544
      %v3638 = vunpack.c.l.b16 %v3558
      %v3639 = vunpack.c.l.b16 %v3568
      %v3640 = vunpack.c.l.b16 %v3582
      %v3641 = vunpack.c.l.b16 %v3592
      %v3642 = vpack.c.b16 %v3611, %v3610
      %v3643 = vpack.c.b16 %v3613, %v3612
      %v3644 = vpack.c.b16 %v3615, %v3614
      %v3645 = vpack.c.b16 %v3617, %v3616
      %v3646 = vpack.c.b16 %v3619, %v3618
      %v3647 = vpack.c.b16 %v3621, %v3620
      %v3648 = vpack.c.b16 %v3623, %v3622
      %v3649 = vpack.c.b16 %v3625, %v3624
      %v3650 = vpack.c.b16 %v3627, %v3626
      %v3651 = vpack.c.b16 %v3629, %v3628
      %v3652 = vpack.c.b16 %v3631, %v3630
      %v3653 = vpack.c.b16 %v3633, %v3632
      %v3654 = vpack.c.b16 %v3635, %v3634
      %v3655 = vpack.c.b16 %v3637, %v3636
      %v3656 = vpack.c.b16 %v3639, %v3638
      %v3657 = vpack.c.b16 %v3641, %v3640
      %v3690 = vunpack.c.l.b16 %v3594
      %v3691 = vunpack.c.l.b16 %v3595
      %v3692 = vunpack.c.l.b16 %v3596
      %v3693 = vunpack.c.l.b16 %v3597
      %v3694 = vunpack.c.l.b16 %v3598
      %v3695 = vunpack.c.l.b16 %v3599
      %v3696 = vunpack.c.l.b16 %v3600
      %v3697 = vunpack.c.l.b16 %v3601
      %v3698 = vunpack.c.l.b16 %v3602
      %v3699 = vunpack.c.l.b16 %v3603
      %v3700 = vunpack.c.l.b16 %v3604
      %v3701 = vunpack.c.l.b16 %v3605
      %v3702 = vunpack.c.l.b16 %v3606
      %v3703 = vunpack.c.l.b16 %v3607
      %v3704 = vunpack.c.l.b16 %v3608
      %v3705 = vunpack.c.l.b16 %v3609
      %v3706 = vpack.c.b16 %v3691, %v3690
      %v3707 = vpack.c.b16 %v3693, %v3692
      %v3708 = vpack.c.b16 %v3695, %v3694
      %v3709 = vpack.c.b16 %v3697, %v3696
      %v3710 = vpack.c.b16 %v3699, %v3698
      %v3711 = vpack.c.b16 %v3701, %v3700
      %v3712 = vpack.c.b16 %v3703, %v3702
      %v3713 = vpack.c.b16 %v3705, %v3704
      %3722 = vmatpush.bf16.msra.mxu0 %v3713
      %3723 = vmatpush.bf16.msra.mxu0 %v3712
      %3724 = vmatpush.bf16.msra.mxu0 %v3711
      %3725 = vmatpush.bf16.msra.mxu0 %v3710
      %3726 = vmatpush.bf16.msra.mxu0 %v3709
      %3727 = vmatpush.bf16.msra.mxu0 %v3708
      %3728 = vmatpush.bf16.msra.mxu0 %v3707
      %3729 = vmatpush.bf16.msra.mxu0 %v3706
      %3730 = vmatmul.bf16.gmra.mxu0 %v3642
      %v3731 = vpop.f32.mrf.mxu0
      %v3732 = vadd.f32 0.0, %v3731
      %v3733 = vpop.f32.mrf.mxu0
      %v3734 = vadd.f32 0.0, %v3733
      %3735 = vmatmul.bf16.gmra.mxu0 %v3643
      %v3736 = vpop.f32.mrf.mxu0
      %v3737 = vadd.f32 0.0, %v3736
      %v3738 = vpop.f32.mrf.mxu0
      %v3739 = vadd.f32 0.0, %v3738
      %3740 = vmatmul.bf16.gmra.mxu0 %v3644
      %v3741 = vpop.f32.mrf.mxu0
      %v3742 = vadd.f32 0.0, %v3741
      %v3743 = vpop.f32.mrf.mxu0
      %v3744 = vadd.f32 0.0, %v3743
      %3745 = vmatmul.bf16.gmra.mxu0 %v3645
      %v3746 = vpop.f32.mrf.mxu0
      %v3747 = vadd.f32 0.0, %v3746
      %v3748 = vpop.f32.mrf.mxu0
      %v3749 = vadd.f32 0.0, %v3748
      %3750 = vmatmul.bf16.gmra.mxu0 %v3646
      %v3751 = vpop.f32.mrf.mxu0
      %v3752 = vadd.f32 0.0, %v3751
      %v3753 = vpop.f32.mrf.mxu0
      %v3754 = vadd.f32 0.0, %v3753
      %3755 = vmatmul.bf16.gmra.mxu0 %v3647
      %v3756 = vpop.f32.mrf.mxu0
      %v3757 = vadd.f32 0.0, %v3756
      %v3758 = vpop.f32.mrf.mxu0
      %v3759 = vadd.f32 0.0, %v3758
      %3760 = vmatmul.bf16.gmra.mxu0 %v3648
      %v3761 = vpop.f32.mrf.mxu0
      %v3762 = vadd.f32 0.0, %v3761
      %v3763 = vpop.f32.mrf.mxu0
      %v3764 = vadd.f32 0.0, %v3763
      %3765 = vmatmul.bf16.gmra.mxu0 %v3649
      %v3766 = vpop.f32.mrf.mxu0
      %v3767 = vadd.f32 0.0, %v3766
      %v3768 = vpop.f32.mrf.mxu0
      %v3769 = vadd.f32 0.0, %v3768
      %3770 = vmatmul.bf16.gmra.mxu0 %v3650
      %v3771 = vpop.f32.mrf.mxu0
      %v3772 = vadd.f32 0.0, %v3771
      %v3773 = vpop.f32.mrf.mxu0
      %v3774 = vadd.f32 0.0, %v3773
      %3775 = vmatmul.bf16.gmra.mxu0 %v3651
      %v3776 = vpop.f32.mrf.mxu0
      %v3777 = vadd.f32 0.0, %v3776
      %v3778 = vpop.f32.mrf.mxu0
      %v3779 = vadd.f32 0.0, %v3778
      %3780 = vmatmul.bf16.gmra.mxu0 %v3652
      %v3781 = vpop.f32.mrf.mxu0
      %v3782 = vadd.f32 0.0, %v3781
      %v3783 = vpop.f32.mrf.mxu0
      %v3784 = vadd.f32 0.0, %v3783
      %3785 = vmatmul.bf16.gmra.mxu0 %v3653
      %v3786 = vpop.f32.mrf.mxu0
      %v3787 = vadd.f32 0.0, %v3786
      %v3788 = vpop.f32.mrf.mxu0
      %v3789 = vadd.f32 0.0, %v3788
      %3790 = vmatmul.bf16.gmra.mxu0 %v3654
      %v3791 = vpop.f32.mrf.mxu0
      %v3792 = vadd.f32 0.0, %v3791
      %v3793 = vpop.f32.mrf.mxu0
      %v3794 = vadd.f32 0.0, %v3793
      %3795 = vmatmul.bf16.gmra.mxu0 %v3655
      %v3796 = vpop.f32.mrf.mxu0
      %v3797 = vadd.f32 0.0, %v3796
      %v3798 = vpop.f32.mrf.mxu0
      %v3799 = vadd.f32 0.0, %v3798
      %3800 = vmatmul.bf16.gmra.mxu0 %v3656
      %v3801 = vpop.f32.mrf.mxu0
      %v3802 = vadd.f32 0.0, %v3801
      %v3803 = vpop.f32.mrf.mxu0
      %v3804 = vadd.f32 0.0, %v3803
      %3805 = vmatmul.bf16.gmra.mxu0 %v3657
      %v3806 = vpop.f32.mrf.mxu0
      %v3807 = vadd.f32 0.0, %v3806
      %v3808 = vpop.f32.mrf.mxu0
      %v3809 = vadd.f32 0.0, %v3808
      %3810 = vdwg.mxu0
      %v3811 = vadd.f32 %v3177, %v3732
      %v3812 = vadd.f32 %v3178, %v3734
      %v3813 = vadd.f32 %v3179, %v3737
      %v3814 = vadd.f32 %v3180, %v3739
      %v3815 = vadd.f32 %v3181, %v3742
      %v3816 = vadd.f32 %v3182, %v3744
      %v3817 = vadd.f32 %v3183, %v3747
      %v3818 = vadd.f32 %v3184, %v3749
      %v3819 = vadd.f32 %v3185, %v3752
      %v3820 = vadd.f32 %v3186, %v3754
      %v3821 = vadd.f32 %v3187, %v3757
      %v3822 = vadd.f32 %v3188, %v3759
      %v3823 = vadd.f32 %v3189, %v3762
      %v3824 = vadd.f32 %v3190, %v3764
      %v3825 = vadd.f32 %v3191, %v3767
      %v3826 = vadd.f32 %v3192, %v3769
      %v3827 = vadd.f32 %v3193, %v3772
      %v3828 = vadd.f32 %v3194, %v3774
      %v3829 = vadd.f32 %v3195, %v3777
      %v3830 = vadd.f32 %v3196, %v3779
      %v3831 = vadd.f32 %v3197, %v3782
      %v3832 = vadd.f32 %v3198, %v3784
      %v3833 = vadd.f32 %v3199, %v3787
      %v3834 = vadd.f32 %v3200, %v3789
      %v3835 = vadd.f32 %v3201, %v3792
      %v3836 = vadd.f32 %v3202, %v3794
      %v3837 = vadd.f32 %v3203, %v3797
      %v3838 = vadd.f32 %v3204, %v3799
      %v3839 = vadd.f32 %v3205, %v3802
      %v3840 = vadd.f32 %v3206, %v3804
      %v3841 = vadd.f32 %v3207, %v3807
      %v3842 = vadd.f32 %v3208, %v3809
      %v3859 = vrot.slane %v2879, 5
      %v3860 = vrot.slane %v3859, 4
      %v3861 = vrot.slane %v2880, 5
      %v3862 = vsel %vm1166, %v3860, %v3861
      %v3863 = vrot.slane %v3861, 4
      %v3864 = vrot.slane %v2881, 5
      %v3865 = vsel %vm1166, %v3863, %v3864
      %v3866 = vrot.slane %v2882, 5
      %v3867 = vrot.slane %v3866, 4
      %v3868 = vrot.slane %v2883, 5
      %v3869 = vsel %vm1166, %v3867, %v3868
      %v3870 = vrot.slane %v3868, 4
      %v3871 = vrot.slane %v2884, 5
      %v3872 = vsel %vm1166, %v3870, %v3871
      %v3873 = vrot.slane %v2885, 5
      %v3874 = vrot.slane %v3873, 4
      %v3875 = vrot.slane %v2886, 5
      %v3876 = vsel %vm1166, %v3874, %v3875
      %v3877 = vrot.slane %v3875, 4
      %v3878 = vrot.slane %v2887, 5
      %v3879 = vsel %vm1166, %v3877, %v3878
      %v3880 = vrot.slane %v2888, 5
      %v3881 = vrot.slane %v3880, 4
      %v3882 = vrot.slane %v2889, 5
      %v3883 = vsel %vm1166, %v3881, %v3882
      %v3884 = vrot.slane %v3882, 4
      %v3885 = vrot.slane %v2890, 5
      %v3886 = vsel %vm1166, %v3884, %v3885
      %v3887 = vrot.slane %v2891, 5
      %v3888 = vrot.slane %v3887, 4
      %v3889 = vrot.slane %v2892, 5
      %v3890 = vsel %vm1166, %v3888, %v3889
      %v3891 = vrot.slane %v3889, 4
      %v3892 = vrot.slane %v2893, 5
      %v3893 = vsel %vm1166, %v3891, %v3892
      %v3894 = vrot.slane %v2894, 5
      %v3895 = vrot.slane %v3894, 4
      %v3896 = vrot.slane %v2895, 5
      %v3897 = vsel %vm1166, %v3895, %v3896
      %v3898 = vrot.slane %v3896, 4
      %v3899 = vrot.slane %v2896, 5
      %v3900 = vsel %vm1166, %v3898, %v3899
      %v3901 = vrot.slane %v2897, 5
      %v3902 = vrot.slane %v3901, 4
      %v3903 = vrot.slane %v2898, 5
      %v3904 = vsel %vm1166, %v3902, %v3903
      %v3905 = vrot.slane %v3903, 4
      %v3906 = vrot.slane %v2899, 5
      %v3907 = vsel %vm1166, %v3905, %v3906
      %v3908 = vrot.slane %v2900, 5
      %v3909 = vrot.slane %v3908, 4
      %v3910 = vrot.slane %v2901, 5
      %v3911 = vsel %vm1166, %v3909, %v3910
      %v3912 = vrot.slane %v3910, 4
      %v3913 = vrot.slane %v2902, 5
      %v3914 = vsel %vm1166, %v3912, %v3913
      %v3915 = vrot.slane %v2903, 5
      %v3916 = vrot.slane %v3915, 4
      %v3917 = vrot.slane %v2904, 5
      %v3918 = vsel %vm1166, %v3916, %v3917
      %v3919 = vrot.slane %v3917, 4
      %v3920 = vrot.slane %v2905, 5
      %v3921 = vsel %vm1166, %v3919, %v3920
      %v3922 = vrot.slane %v2906, 5
      %v3923 = vrot.slane %v3922, 4
      %v3924 = vrot.slane %v2907, 5
      %v3925 = vsel %vm1166, %v3923, %v3924
      %v3926 = vrot.slane %v3924, 4
      %v3927 = vrot.slane %v2908, 5
      %v3928 = vsel %vm1166, %v3926, %v3927
      %v3929 = vrot.slane %v2909, 5
      %v3930 = vrot.slane %v3929, 4
      %v3931 = vrot.slane %v2910, 5
      %v3932 = vsel %vm1166, %v3930, %v3931
      %v3933 = vrot.slane %v3931, 4
      %v3934 = vrot.slane %v2911, 5
      %v3935 = vsel %vm1166, %v3933, %v3934
      %v3936 = vrot.slane %v2912, 5
      %v3937 = vrot.slane %v3936, 4
      %v3938 = vrot.slane %v2913, 5
      %v3939 = vsel %vm1166, %v3937, %v3938
      %v3940 = vrot.slane %v3938, 4
      %v3941 = vrot.slane %v2914, 5
      %v3942 = vsel %vm1166, %v3940, %v3941
      %v3943 = vrot.slane %v2915, 5
      %v3944 = vrot.slane %v3943, 4
      %v3945 = vrot.slane %v2916, 5
      %v3946 = vsel %vm1166, %v3944, %v3945
      %v3947 = vrot.slane %v3945, 4
      %v3948 = vrot.slane %v2917, 5
      %v3949 = vsel %vm1166, %v3947, %v3948
      %v3950 = vrot.slane %v2918, 5
      %v3951 = vrot.slane %v3950, 4
      %v3952 = vrot.slane %v2919, 5
      %v3953 = vsel %vm1166, %v3951, %v3952
      %v3954 = vrot.slane %v3952, 4
      %v3955 = vrot.slane %v2920, 5
      %v3956 = vsel %vm1166, %v3954, %v3955
      %v3957 = vrot.slane %v2921, 5
      %v3958 = vrot.slane %v3957, 4
      %v3959 = vrot.slane %v2922, 5
      %v3960 = vsel %vm1166, %v3958, %v3959
      %v3961 = vrot.slane %v3959, 4
      %v3962 = vrot.slane %v2923, 5
      %v3963 = vsel %vm1166, %v3961, %v3962
      %v3964 = vrot.slane %v2924, 5
      %v3965 = vrot.slane %v3964, 4
      %v3966 = vrot.slane %v2925, 5
      %v3967 = vsel %vm1166, %v3965, %v3966
      %v3968 = vrot.slane %v3966, 4
      %v3969 = vrot.slane %v2926, 5
      %v3970 = vsel %vm1166, %v3968, %v3969
      %s3971 = scalar_lea.vmem %s1, 512
      %v3972 = vld [vmem:[%s3971] sm:$0xf]
      %v3973 = vld [vmem:[%s3971 + $0x4] sm:$0xf]
      %v3974 = vld [vmem:[%s3971 + $0x8] sm:$0xf]
      %v3975 = vld [vmem:[%s3971 + $0xc] sm:$0xf]
      %v3976 = vld [vmem:[%s3971 + $0x10] sm:$0xf]
      %v3977 = vld [vmem:[%s3971 + $0x14] sm:$0xf]
      %v3978 = vld [vmem:[%s3971 + $0x18] sm:$0xf]
      %v3979 = vld [vmem:[%s3971 + $0x1c] sm:$0xf]
      %v3980 = vld [vmem:[%s3971 + $0x20] sm:$0xf]
      %v3981 = vld [vmem:[%s3971 + $0x24] sm:$0xf]
      %v3982 = vld [vmem:[%s3971 + $0x28] sm:$0xf]
      %v3983 = vld [vmem:[%s3971 + $0x2c] sm:$0xf]
      %v3984 = vld [vmem:[%s3971 + $0x30] sm:$0xf]
      %v3985 = vld [vmem:[%s3971 + $0x34] sm:$0xf]
      %v3986 = vld [vmem:[%s3971 + $0x38] sm:$0xf]
      %v3987 = vld [vmem:[%s3971 + $0x3c] sm:$0xf]
      %v3988 = vunpack.c.l.b16 %v3862
      %v3989 = vunpack.c.l.b16 %v3865
      %v3990 = vunpack.c.l.b16 %v3869
      %v3991 = vunpack.c.l.b16 %v3872
      %v3992 = vunpack.c.l.b16 %v3876
      %v3993 = vunpack.c.l.b16 %v3879
      %v3994 = vunpack.c.l.b16 %v3883
      %v3995 = vunpack.c.l.b16 %v3886
      %v3996 = vunpack.c.l.b16 %v3890
      %v3997 = vunpack.c.l.b16 %v3893
      %v3998 = vunpack.c.l.b16 %v3897
      %v3999 = vunpack.c.l.b16 %v3900
      %v4000 = vunpack.c.l.b16 %v3904
      %v4001 = vunpack.c.l.b16 %v3907
      %v4002 = vunpack.c.l.b16 %v3911
      %v4003 = vunpack.c.l.b16 %v3914
      %v4004 = vunpack.c.l.b16 %v3918
      %v4005 = vunpack.c.l.b16 %v3921
      %v4006 = vunpack.c.l.b16 %v3925
      %v4007 = vunpack.c.l.b16 %v3928
      %v4008 = vunpack.c.l.b16 %v3932
      %v4009 = vunpack.c.l.b16 %v3935
      %v4010 = vunpack.c.l.b16 %v3939
      %v4011 = vunpack.c.l.b16 %v3942
      %v4012 = vunpack.c.l.b16 %v3946
      %v4013 = vunpack.c.l.b16 %v3949
      %v4014 = vunpack.c.l.b16 %v3953
      %v4015 = vunpack.c.l.b16 %v3956
      %v4016 = vunpack.c.l.b16 %v3960
      %v4017 = vunpack.c.l.b16 %v3963
      %v4018 = vunpack.c.l.b16 %v3967
      %v4019 = vunpack.c.l.b16 %v3970
      %v4020 = vpack.c.b16 %v3989, %v3988
      %v4021 = vpack.c.b16 %v3991, %v3990
      %v4022 = vpack.c.b16 %v3993, %v3992
      %v4023 = vpack.c.b16 %v3995, %v3994
      %v4024 = vpack.c.b16 %v3997, %v3996
      %v4025 = vpack.c.b16 %v3999, %v3998
      %v4026 = vpack.c.b16 %v4001, %v4000
      %v4027 = vpack.c.b16 %v4003, %v4002
      %v4028 = vpack.c.b16 %v4005, %v4004
      %v4029 = vpack.c.b16 %v4007, %v4006
      %v4030 = vpack.c.b16 %v4009, %v4008
      %v4031 = vpack.c.b16 %v4011, %v4010
      %v4032 = vpack.c.b16 %v4013, %v4012
      %v4033 = vpack.c.b16 %v4015, %v4014
      %v4034 = vpack.c.b16 %v4017, %v4016
      %v4035 = vpack.c.b16 %v4019, %v4018
      %v4068 = vunpack.c.l.b16 %v3972
      %v4069 = vunpack.c.l.b16 %v3973
      %v4070 = vunpack.c.l.b16 %v3974
      %v4071 = vunpack.c.l.b16 %v3975
      %v4072 = vunpack.c.l.b16 %v3976
      %v4073 = vunpack.c.l.b16 %v3977
      %v4074 = vunpack.c.l.b16 %v3978
      %v4075 = vunpack.c.l.b16 %v3979
      %v4076 = vunpack.c.l.b16 %v3980
      %v4077 = vunpack.c.l.b16 %v3981
      %v4078 = vunpack.c.l.b16 %v3982
      %v4079 = vunpack.c.l.b16 %v3983
      %v4080 = vunpack.c.l.b16 %v3984
      %v4081 = vunpack.c.l.b16 %v3985
      %v4082 = vunpack.c.l.b16 %v3986
      %v4083 = vunpack.c.l.b16 %v3987
      %v4084 = vpack.c.b16 %v4069, %v4068
      %v4085 = vpack.c.b16 %v4071, %v4070
      %v4086 = vpack.c.b16 %v4073, %v4072
      %v4087 = vpack.c.b16 %v4075, %v4074
      %v4088 = vpack.c.b16 %v4077, %v4076
      %v4089 = vpack.c.b16 %v4079, %v4078
      %v4090 = vpack.c.b16 %v4081, %v4080
      %v4091 = vpack.c.b16 %v4083, %v4082
      %4100 = vmatpush.bf16.msra.mxu0 %v4091
      %4101 = vmatpush.bf16.msra.mxu0 %v4090
      %4102 = vmatpush.bf16.msra.mxu0 %v4089
      %4103 = vmatpush.bf16.msra.mxu0 %v4088
      %4104 = vmatpush.bf16.msra.mxu0 %v4087
      %4105 = vmatpush.bf16.msra.mxu0 %v4086
      %4106 = vmatpush.bf16.msra.mxu0 %v4085
      %4107 = vmatpush.bf16.msra.mxu0 %v4084
      %4108 = vmatmul.bf16.gmra.mxu0 %v4020
      %v4109 = vpop.f32.mrf.mxu0
      %v4110 = vadd.f32 0.0, %v4109
      %v4111 = vpop.f32.mrf.mxu0
      %v4112 = vadd.f32 0.0, %v4111
      %4113 = vmatmul.bf16.gmra.mxu0 %v4021
      %v4114 = vpop.f32.mrf.mxu0
      %v4115 = vadd.f32 0.0, %v4114
      %v4116 = vpop.f32.mrf.mxu0
      %v4117 = vadd.f32 0.0, %v4116
      %4118 = vmatmul.bf16.gmra.mxu0 %v4022
      %v4119 = vpop.f32.mrf.mxu0
      %v4120 = vadd.f32 0.0, %v4119
      %v4121 = vpop.f32.mrf.mxu0
      %v4122 = vadd.f32 0.0, %v4121
      %4123 = vmatmul.bf16.gmra.mxu0 %v4023
      %v4124 = vpop.f32.mrf.mxu0
      %v4125 = vadd.f32 0.0, %v4124
      %v4126 = vpop.f32.mrf.mxu0
      %v4127 = vadd.f32 0.0, %v4126
      %4128 = vmatmul.bf16.gmra.mxu0 %v4024
      %v4129 = vpop.f32.mrf.mxu0
      %v4130 = vadd.f32 0.0, %v4129
      %v4131 = vpop.f32.mrf.mxu0
      %v4132 = vadd.f32 0.0, %v4131
      %4133 = vmatmul.bf16.gmra.mxu0 %v4025
      %v4134 = vpop.f32.mrf.mxu0
      %v4135 = vadd.f32 0.0, %v4134
      %v4136 = vpop.f32.mrf.mxu0
      %v4137 = vadd.f32 0.0, %v4136
      %4138 = vmatmul.bf16.gmra.mxu0 %v4026
      %v4139 = vpop.f32.mrf.mxu0
      %v4140 = vadd.f32 0.0, %v4139
      %v4141 = vpop.f32.mrf.mxu0
      %v4142 = vadd.f32 0.0, %v4141
      %4143 = vmatmul.bf16.gmra.mxu0 %v4027
      %v4144 = vpop.f32.mrf.mxu0
      %v4145 = vadd.f32 0.0, %v4144
      %v4146 = vpop.f32.mrf.mxu0
      %v4147 = vadd.f32 0.0, %v4146
      %4148 = vmatmul.bf16.gmra.mxu0 %v4028
      %v4149 = vpop.f32.mrf.mxu0
      %v4150 = vadd.f32 0.0, %v4149
      %v4151 = vpop.f32.mrf.mxu0
      %v4152 = vadd.f32 0.0, %v4151
      %4153 = vmatmul.bf16.gmra.mxu0 %v4029
      %v4154 = vpop.f32.mrf.mxu0
      %v4155 = vadd.f32 0.0, %v4154
      %v4156 = vpop.f32.mrf.mxu0
      %v4157 = vadd.f32 0.0, %v4156
      %4158 = vmatmul.bf16.gmra.mxu0 %v4030
      %v4159 = vpop.f32.mrf.mxu0
      %v4160 = vadd.f32 0.0, %v4159
      %v4161 = vpop.f32.mrf.mxu0
      %v4162 = vadd.f32 0.0, %v4161
      %4163 = vmatmul.bf16.gmra.mxu0 %v4031
      %v4164 = vpop.f32.mrf.mxu0
      %v4165 = vadd.f32 0.0, %v4164
      %v4166 = vpop.f32.mrf.mxu0
      %v4167 = vadd.f32 0.0, %v4166
      %4168 = vmatmul.bf16.gmra.mxu0 %v4032
      %v4169 = vpop.f32.mrf.mxu0
      %v4170 = vadd.f32 0.0, %v4169
      %v4171 = vpop.f32.mrf.mxu0
      %v4172 = vadd.f32 0.0, %v4171
      %4173 = vmatmul.bf16.gmra.mxu0 %v4033
      %v4174 = vpop.f32.mrf.mxu0
      %v4175 = vadd.f32 0.0, %v4174
      %v4176 = vpop.f32.mrf.mxu0
      %v4177 = vadd.f32 0.0, %v4176
      %4178 = vmatmul.bf16.gmra.mxu0 %v4034
      %v4179 = vpop.f32.mrf.mxu0
      %v4180 = vadd.f32 0.0, %v4179
      %v4181 = vpop.f32.mrf.mxu0
      %v4182 = vadd.f32 0.0, %v4181
      %4183 = vmatmul.bf16.gmra.mxu0 %v4035
      %v4184 = vpop.f32.mrf.mxu0
      %v4185 = vadd.f32 0.0, %v4184
      %v4186 = vpop.f32.mrf.mxu0
      %v4187 = vadd.f32 0.0, %v4186
      %4188 = vdwg.mxu0
      %v4189 = vadd.f32 %v3811, %v4110
      %v4190 = vadd.f32 %v3812, %v4112
      %v4191 = vadd.f32 %v3813, %v4115
      %v4192 = vadd.f32 %v3814, %v4117
      %v4193 = vadd.f32 %v3815, %v4120
      %v4194 = vadd.f32 %v3816, %v4122
      %v4195 = vadd.f32 %v3817, %v4125
      %v4196 = vadd.f32 %v3818, %v4127
      %v4197 = vadd.f32 %v3819, %v4130
      %v4198 = vadd.f32 %v3820, %v4132
      %v4199 = vadd.f32 %v3821, %v4135
      %v4200 = vadd.f32 %v3822, %v4137
      %v4201 = vadd.f32 %v3823, %v4140
      %v4202 = vadd.f32 %v3824, %v4142
      %v4203 = vadd.f32 %v3825, %v4145
      %v4204 = vadd.f32 %v3826, %v4147
      %v4205 = vadd.f32 %v3827, %v4150
      %v4206 = vadd.f32 %v3828, %v4152
      %v4207 = vadd.f32 %v3829, %v4155
      %v4208 = vadd.f32 %v3830, %v4157
      %v4209 = vadd.f32 %v3831, %v4160
      %v4210 = vadd.f32 %v3832, %v4162
      %v4211 = vadd.f32 %v3833, %v4165
      %v4212 = vadd.f32 %v3834, %v4167
      %v4213 = vadd.f32 %v3835, %v4170
      %v4214 = vadd.f32 %v3836, %v4172
      %v4215 = vadd.f32 %v3837, %v4175
      %v4216 = vadd.f32 %v3838, %v4177
      %v4217 = vadd.f32 %v3839, %v4180
      %v4218 = vadd.f32 %v3840, %v4182
      %v4219 = vadd.f32 %v3841, %v4185
      %v4220 = vadd.f32 %v3842, %v4187
      %v4221 = vld [vmem:[%s2] sm:$0x1]
      %v4223 = vperm.slane %v4221, 0
      %v4225 = vadd.f32 %v4189, %v4223
      %v4226 = vadd.f32 %v4190, %v4223
      %v4227 = vadd.f32 %v4191, %v4223
      %v4228 = vadd.f32 %v4192, %v4223
      %v4229 = vadd.f32 %v4193, %v4223
      %v4230 = vadd.f32 %v4194, %v4223
      %v4231 = vadd.f32 %v4195, %v4223
      %v4232 = vadd.f32 %v4196, %v4223
      %v4233 = vadd.f32 %v4197, %v4223
      %v4234 = vadd.f32 %v4198, %v4223
      %v4235 = vadd.f32 %v4199, %v4223
      %v4236 = vadd.f32 %v4200, %v4223
      %v4237 = vadd.f32 %v4201, %v4223
      %v4238 = vadd.f32 %v4202, %v4223
      %v4239 = vadd.f32 %v4203, %v4223
      %v4240 = vadd.f32 %v4204, %v4223
      %v4241 = vadd.f32 %v4205, %v4223
      %v4242 = vadd.f32 %v4206, %v4223
      %v4243 = vadd.f32 %v4207, %v4223
      %v4244 = vadd.f32 %v4208, %v4223
      %v4245 = vadd.f32 %v4209, %v4223
      %v4246 = vadd.f32 %v4210, %v4223
      %v4247 = vadd.f32 %v4211, %v4223
      %v4248 = vadd.f32 %v4212, %v4223
      %v4249 = vadd.f32 %v4213, %v4223
      %v4250 = vadd.f32 %v4214, %v4223
      %v4251 = vadd.f32 %v4215, %v4223
      %v4252 = vadd.f32 %v4216, %v4223
      %v4253 = vadd.f32 %v4217, %v4223
      %v4254 = vadd.f32 %v4218, %v4223
      %v4255 = vadd.f32 %v4219, %v4223
      %v4256 = vadd.f32 %v4220, %v4223
      %4257 = vst [vmem:[%s233] sm:$0xff] %v4225
      %4258 = vst [vmem:[%s233 + $0x8] sm:$0xff] %v4226
      %4259 = vst [vmem:[%s233 + $0x10] sm:$0xff] %v4227
      %4260 = vst [vmem:[%s233 + $0x18] sm:$0xff] %v4228
      %4261 = vst [vmem:[%s233 + $0x20] sm:$0xff] %v4229
      %4262 = vst [vmem:[%s233 + $0x28] sm:$0xff] %v4230
      %4263 = vst [vmem:[%s233 + $0x30] sm:$0xff] %v4231
      %4264 = vst [vmem:[%s233 + $0x38] sm:$0xff] %v4232
      %4265 = vst [vmem:[%s233 + $0x40] sm:$0xff] %v4233
      %4266 = vst [vmem:[%s233 + $0x48] sm:$0xff] %v4234
      %4267 = vst [vmem:[%s233 + $0x50] sm:$0xff] %v4235
      %4268 = vst [vmem:[%s233 + $0x58] sm:$0xff] %v4236
      %4269 = vst [vmem:[%s233 + $0x60] sm:$0xff] %v4237
      %4270 = vst [vmem:[%s233 + $0x68] sm:$0xff] %v4238
      %4271 = vst [vmem:[%s233 + $0x70] sm:$0xff] %v4239
      %4272 = vst [vmem:[%s233 + $0x78] sm:$0xff] %v4240
      %4273 = vst [vmem:[%s233 + $0x80] sm:$0xff] %v4241
      %4274 = vst [vmem:[%s233 + $0x88] sm:$0xff] %v4242
      %4275 = vst [vmem:[%s233 + $0x90] sm:$0xff] %v4243
      %4276 = vst [vmem:[%s233 + $0x98] sm:$0xff] %v4244
      %4277 = vst [vmem:[%s233 + $0xa0] sm:$0xff] %v4245
      %4278 = vst [vmem:[%s233 + $0xa8] sm:$0xff] %v4246
      %4279 = vst [vmem:[%s233 + $0xb0] sm:$0xff] %v4247
      %4280 = vst [vmem:[%s233 + $0xb8] sm:$0xff] %v4248
      %4281 = vst [vmem:[%s233 + $0xc0] sm:$0xff] %v4249
      %4282 = vst [vmem:[%s233 + $0xc8] sm:$0xff] %v4250
      %4283 = vst [vmem:[%s233 + $0xd0] sm:$0xff] %v4251
      %4284 = vst [vmem:[%s233 + $0xd8] sm:$0xff] %v4252
      %4285 = vst [vmem:[%s233 + $0xe0] sm:$0xff] %v4253
      %4286 = vst [vmem:[%s233 + $0xe8] sm:$0xff] %v4254
      %4287 = vst [vmem:[%s233 + $0xf0] sm:$0xff] %v4255
      %4288 = vst [vmem:[%s233 + $0xf8] sm:$0xff] %v4256
      %v4289 = vadd.f32 %v4225, %v4226
      %v4290 = vadd.f32 %v4289, %v4227
      %v4291 = vadd.f32 %v4290, %v4228
      %v4292 = vadd.f32 %v4291, %v4229
      %v4293 = vadd.f32 %v4292, %v4230
      %v4294 = vadd.f32 %v4293, %v4231
      %v4295 = vadd.f32 %v4294, %v4232
      %v4296 = vadd.f32 %v4295, %v4233
      %v4297 = vadd.f32 %v4296, %v4234
      %v4298 = vadd.f32 %v4297, %v4235
      %v4299 = vadd.f32 %v4298, %v4236
      %v4300 = vadd.f32 %v4299, %v4237
      %v4301 = vadd.f32 %v4300, %v4238
      %v4302 = vadd.f32 %v4301, %v4239
      %v4303 = vadd.f32 %v4302, %v4240
      %v4304 = vadd.f32 %v4303, %v4241
      %v4305 = vadd.f32 %v4304, %v4242
      %v4306 = vadd.f32 %v4305, %v4243
      %v4307 = vadd.f32 %v4306, %v4244
      %v4308 = vadd.f32 %v4307, %v4245
      %v4309 = vadd.f32 %v4308, %v4246
      %v4310 = vadd.f32 %v4309, %v4247
      %v4311 = vadd.f32 %v4310, %v4248
      %v4312 = vadd.f32 %v4311, %v4249
      %v4313 = vadd.f32 %v4312, %v4250
      %v4314 = vadd.f32 %v4313, %v4251
      %v4315 = vadd.f32 %v4314, %v4252
      %v4316 = vadd.f32 %v4315, %v4253
      %v4317 = vadd.f32 %v4316, %v4254
      %v4318 = vadd.f32 %v4317, %v4255
      %v4319 = vadd.f32 %v4318, %v4256
      %v4320 = vrot.slane %v4319, 4
      %v4321 = vadd.f32 %v4319, %v4320
      %v4322 = vrot.slane %v4321, 2
      %v4323 = vadd.f32 %v4321, %v4322
      %v4324 = vrot.slane %v4323, 1
      %v4325 = vadd.f32 %v4323, %v4324
      %4326 = vst [vmem:[%s241] sm:$0x1] %v4325
      %v4327 = vmul.f32 %v4225, %v4225
      %v4328 = vmul.f32 %v4226, %v4226
      %v4329 = vmul.f32 %v4227, %v4227
      %v4330 = vmul.f32 %v4228, %v4228
      %v4331 = vmul.f32 %v4229, %v4229
      %v4332 = vmul.f32 %v4230, %v4230
      %v4333 = vmul.f32 %v4231, %v4231
      %v4334 = vmul.f32 %v4232, %v4232
      %v4335 = vmul.f32 %v4233, %v4233
      %v4336 = vmul.f32 %v4234, %v4234
      %v4337 = vmul.f32 %v4235, %v4235
      %v4338 = vmul.f32 %v4236, %v4236
      %v4339 = vmul.f32 %v4237, %v4237
      %v4340 = vmul.f32 %v4238, %v4238
      %v4341 = vmul.f32 %v4239, %v4239
      %v4342 = vmul.f32 %v4240, %v4240
      %v4343 = vmul.f32 %v4241, %v4241
      %v4344 = vmul.f32 %v4242, %v4242
      %v4345 = vmul.f32 %v4243, %v4243
      %v4346 = vmul.f32 %v4244, %v4244
      %v4347 = vmul.f32 %v4245, %v4245
      %v4348 = vmul.f32 %v4246, %v4246
      %v4349 = vmul.f32 %v4247, %v4247
      %v4350 = vmul.f32 %v4248, %v4248
      %v4351 = vmul.f32 %v4249, %v4249
      %v4352 = vmul.f32 %v4250, %v4250
      %v4353 = vmul.f32 %v4251, %v4251
      %v4354 = vmul.f32 %v4252, %v4252
      %v4355 = vmul.f32 %v4253, %v4253
      %v4356 = vmul.f32 %v4254, %v4254
      %v4357 = vmul.f32 %v4255, %v4255
      %v4358 = vmul.f32 %v4256, %v4256
      %v4359 = vadd.f32 %v4327, %v4328
      %v4360 = vadd.f32 %v4359, %v4329
      %v4361 = vadd.f32 %v4360, %v4330
      %v4362 = vadd.f32 %v4361, %v4331
      %v4363 = vadd.f32 %v4362, %v4332
      %v4364 = vadd.f32 %v4363, %v4333
      %v4365 = vadd.f32 %v4364, %v4334
      %v4366 = vadd.f32 %v4365, %v4335
      %v4367 = vadd.f32 %v4366, %v4336
      %v4368 = vadd.f32 %v4367, %v4337
      %v4369 = vadd.f32 %v4368, %v4338
      %v4370 = vadd.f32 %v4369, %v4339
      %v4371 = vadd.f32 %v4370, %v4340
      %v4372 = vadd.f32 %v4371, %v4341
      %v4373 = vadd.f32 %v4372, %v4342
      %v4374 = vadd.f32 %v4373, %v4343
      %v4375 = vadd.f32 %v4374, %v4344
      %v4376 = vadd.f32 %v4375, %v4345
      %v4377 = vadd.f32 %v4376, %v4346
      %v4378 = vadd.f32 %v4377, %v4347
      %v4379 = vadd.f32 %v4378, %v4348
      %v4380 = vadd.f32 %v4379, %v4349
      %v4381 = vadd.f32 %v4380, %v4350
      %v4382 = vadd.f32 %v4381, %v4351
      %v4383 = vadd.f32 %v4382, %v4352
      %v4384 = vadd.f32 %v4383, %v4353
      %v4385 = vadd.f32 %v4384, %v4354
      %v4386 = vadd.f32 %v4385, %v4355
      %v4387 = vadd.f32 %v4386, %v4356
      %v4388 = vadd.f32 %v4387, %v4357
      %v4389 = vadd.f32 %v4388, %v4358
      %v4390 = vrot.slane %v4389, 4
      %v4391 = vadd.f32 %v4389, %v4390
      %v4392 = vrot.slane %v4391, 2
      %v4393 = vadd.f32 %v4391, %v4392
      %v4394 = vrot.slane %v4393, 1
      %v4395 = vadd.f32 %v4393, %v4394
      %4396 = vst [vmem:[%s241 + $0x1] sm:$0x1] %v4395
      %s4397 = smul.u32 16, %s21
      %p4398 = scmp.lt.s32.totalorder %s20, 1
      %s4399 = scalar_select %p4398, %s20, 1
      %p4400 = scmp.lt.s32.totalorder %s4397, 15
      %s4401 = scalar_select %p4400, %s4397, 15
      %s4402 = smul.addr %s4401, 2
      %s4403 = smul.addr %s4399, 32
      %s4404 = sadd.s32 %s4402, %s4403
      %s4405 = smul.addr %s4404, 8
      %s4406 = scalar_lea.vmem %s3, %s4405
      %p4407 = scmp.lt.s32.totalorder %s20, 1
      %s4408 = scalar_select %p4407, %s20, 1
      %p4409 = scmp.lt.s32.totalorder %s21, 0
      %s4410 = scalar_select %p4409, %s21, 0
      %s4411 = sadd.s32 %s4410, %s4408
      %s4412 = smul.addr %s4411, 2
      %s4413 = scalar_lea.vmem %s4, %s4412
      // Predicated region
      $region33: #{down_block.4} parent=31 // pred_check
        %p4414 = pneg %p116
      $region34: #{down_block.4} parent=31 // pred_check_branch
        %4416 = sbr.rel (%p4414) target = $region36
      $region35: #{down_block.4} parent=31 // pred_region
        %s4417 = smul.u32 16, %s21
      $region36: #{down_block.4} parent=31 // pred_fallthru
        _
      // Predicated region
      $region37: #{down_block.4} parent=31 // pred_check
        %p4418 = pneg %p144
      $region38: #{down_block.4} parent=31 // pred_check_branch
        %4420 = sbr.rel (%p4418) target = $region40
      $region39: #{down_block.4} parent=31 // pred_region
        _
      $region40: #{down_block.4} parent=31 // pred_fallthru
        _
    $region32: #{down_block.4} parent=5 // pred_fallthru
      _
    %p4421 = scmp.le.s32.totalorder 2, %s11
    // Predicated region
    $region41: #{down_block.4} parent=5 // pred_check
      %p4422 = pneg %p4421
    $region42: #{down_block.4} parent=5 // pred_check_branch
      %4424 = sbr.rel (%p4422) target = $region44
    $region43: #{down_block.4} parent=5 // pred_region
      %s4425 = ssub.s32 %s11, 2
      // Predicated region
      $region45: #{down_block.4} parent=43 // pred_check
        %p4426 = pneg %p122
      $region46: #{down_block.4} parent=43 // pred_check_branch
        %4428 = sbr.rel (%p4426) target = $region48
      $region47: #{down_block.4} parent=43 // pred_region
        %s4429 = smul.u32 16, %s23
        %p4430 = scmp.lt.s32.totalorder %s22, 1
        %s4431 = scalar_select %p4430, %s22, 1
        %p4432 = scmp.lt.s32.totalorder %s4429, 15
        %s4433 = scalar_select %p4432, %s4429, 15
        %s4434 = smul.addr %s4433, 2
        %s4435 = smul.addr %s4431, 32
        %s4436 = sadd.s32 %s4434, %s4435
        %s4437 = smul.addr %s4436, 8
        %s4438 = scalar_lea.vmem %s3, %s4437
      $region48: #{down_block.4} parent=43 // pred_fallthru
        _
      // Predicated region
      $region49: #{down_block.4} parent=43 // pred_check
        %p4439 = pneg %p150
      $region50: #{down_block.4} parent=43 // pred_check_branch
        %4441 = sbr.rel (%p4439) target = $region52
      $region51: #{down_block.4} parent=43 // pred_region
        %p4442 = scmp.lt.s32.totalorder %s22, 1
        %s4443 = scalar_select %p4442, %s22, 1
        %p4444 = scmp.lt.s32.totalorder %s23, 0
        %s4445 = scalar_select %p4444, %s23, 0
        %s4446 = sadd.s32 %s4445, %s4443
        %s4447 = smul.addr %s4446, 2
        %s4448 = scalar_lea.vmem %s4, %s4447
      $region52: #{down_block.4} parent=43 // pred_fallthru
        _
    $region44: #{down_block.4} parent=5 // pred_fallthru
      _
  $region6: #{down_block.4} parent=0 // loop_footer
    %s15 = sadd.s32 1, %s11
  $region7: #{down_block.4} parent=0 // loop_footer_branch
    %10 = sbr.rel target = $region3
  $region8: #{down_block.4} parent=0 // loop_exit
    _

</llo_original>
